<compile_context>
chip_gen: v7x
topology: tpu7x:2x2x1
jax: 0.10.0
libtpu: 0.0.40
codegen_flags: <defaults>
</compile_context>

<pallas_src>
import math
import functools

import jax
import jax.numpy as jnp
from jax import lax
from jax.experimental import pallas as pl
from jax.experimental.pallas import tpu as pltpu

N_BISECT = 7   # bracket [-1, 0] down to width 2^-7
N_NEWTON = 3   # quadratic convergence from the left bracket end


def _entmax15_halved(x):
    """1.5-entmax along the last axis.

    `x` must already include the entmax 0.5 factor (scores * 0.5/sqrt(d)).
    Solves p_i = max(x_i - max(x) - tau, 0)^2 with sum_i p_i = 1 via a short
    bisection bracket followed by unrolled Newton steps.
    """
    x = x - jnp.max(x, axis=-1, keepdims=True)            # row max is now exactly 0
    lo = jnp.full(x.shape[:-1] + (1,), -1.0, x.dtype)     # f(lo) >= 0
    hi = jnp.zeros_like(lo)                               # f(hi) = -1 < 0

    def bisect(_, carry):
        lo, hi = carry
        tau = (lo + hi) * 0.5
        p = jnp.maximum(x - tau, 0.0)
        ge = jnp.sum(p * p, axis=-1, keepdims=True) >= 1.0
        return jnp.where(ge, tau, lo), jnp.where(ge, hi, tau)

    lo, _ = lax.fori_loop(0, N_BISECT, bisect, (lo, hi), unroll=True)

    # Newton from the left bracket end: f convex & decreasing, f(lo) >= 0, so
    # iterates increase monotonically toward the root and never overshoot;
    # |f'(tau)| = 2*sum((x-tau)_+) >= 2/sqrt(K) > 0, so the divide is safe.
    def newton(_, tau):
        p = jnp.maximum(x - tau, 0.0)
        ssq = jnp.sum(p * p, axis=-1, keepdims=True)
        s1 = jnp.sum(p, axis=-1, keepdims=True)
        return tau + (ssq - 1.0) * 0.5 / s1

    tau = lax.fori_loop(0, N_NEWTON, newton, lo, unroll=True)

    p = jnp.maximum(x - tau, 0.0)                         # recompute at converged tau
    return p * p


def _mha_kernel(xq_ref, xk_ref, xv_ref,
                wq_ref, wk_ref, wv_ref, wo_ref,
                bq_ref, bk_ref, bv_ref, bo_ref,
                out_ref, *, b_tile, seq, heads, hidden):
    dn = (((1,), (1,)), ((), ()))   # contract last dims of both operands (== x @ w.T)

    xq = xq_ref[...]                # (b_tile*seq, inputs)
    xk = xk_ref[...]
    xv = xv_ref[...]

    scale = 0.5 / math.sqrt(hidden)   # entmax 0.5 factor folded into the score scale

    # Full-width projections: one MXU contraction each over all batch rows.
    qp = (lax.dot_general(xq, wq_ref[...], dn, preferred_element_type=jnp.float32)
          + bq_ref[...]) * scale      # scale hoisted out of the head loop
    kp = lax.dot_general(xk, wk_ref[...], dn, preferred_element_type=jnp.float32) + bk_ref[...]
    vp = lax.dot_general(xv, wv_ref[...], dn, preferred_element_type=jnp.float32) + bv_ref[...]

    # Per-(batch, head) score blocks; concatenate so ONE entmax serial chain
    # covers every block (the root-find is the kernel's critical path).
    scores = []
    for b in range(b_tile):
        rows = slice(b * seq, (b + 1) * seq)
        for h in range(heads):
            cols = slice(h * hidden, (h + 1) * hidden)
            scores.append(lax.dot_general(qp[rows, cols], kp[rows, cols], dn,
                                          preferred_element_type=jnp.float32))
    attn = _entmax15_halved(jnp.concatenate(scores, axis=0))   # (b_tile*heads*seq, seq)

    # attn @ V per block, packed into a (b_tile*seq, inputs) slab so the output
    # projection is a single contraction over the full `inputs` dim.
    y_rows = []
    for b in range(b_tile):
        rows = slice(b * seq, (b + 1) * seq)
        y_heads = []
        for h in range(heads):
            blk = b * heads + h
            a = attn[blk * seq:(blk + 1) * seq, :]
            cols = slice(h * hidden, (h + 1) * hidden)
            y_heads.append(jnp.dot(a, vp[rows, cols],
                                   preferred_element_type=jnp.float32))
        y_rows.append(jnp.concatenate(y_heads, axis=-1))        # (seq, inputs)
    y_full = y_rows[0] if b_tile == 1 else jnp.concatenate(y_rows, axis=0)

    # Fused output projection + bias.
    out_ref[...] = (lax.dot_general(y_full, wo_ref[...], dn,
                                    preferred_element_type=jnp.float32)
                    + bo_ref[...])


def multi_head_attention(q, k, v, params, heads, b_tile=None):
    bs, seq, inputs = q.shape
    assert inputs % heads == 0
    hidden = inputs // heads

    if b_tile is None:
        b_tile = bs            # single program: best on single-TC v5e/v6e
    assert bs % b_tile == 0    # on v7x pass b_tile = bs // 2 to use both cores

    wq, bq = params["wq"], params["bq"]
    wk, bk = params["wk"], params["bk"]
    wv, bv = params["wv"], params["bv"]
    wo, bo = params["wo"], params["bo"]

    bq_r = bq.reshape(1, inputs)
    bk_r = bk.reshape(1, inputs)
    bv_r = bv.reshape(1, inputs)
    bo_r = bo.reshape(1, inputs)

    # Free metadata reshapes: batch+seq fused into the row (sublane) axis.
    q2 = q.reshape(bs * seq, inputs)
    k2 = k.reshape(bs * seq, inputs)
    v2 = v.reshape(bs * seq, inputs)

    x_spec = pl.BlockSpec((b_tile * seq, inputs), lambda b: (b, 0))
    w_spec = pl.BlockSpec((inputs, inputs), lambda b: (0, 0))   # resident across batch loop
    b_spec = pl.BlockSpec((1, inputs), lambda b: (0, 0))

    out = pl.pallas_call(
        functools.partial(_mha_kernel, b_tile=b_tile, seq=seq,
                          heads=heads, hidden=hidden),
        out_shape=jax.ShapeDtypeStruct((bs * seq, inputs), jnp.float32),
        grid_spec=pltpu.PrefetchScalarGridSpec(
            num_scalar_prefetch=0,
            grid=(bs // b_tile,),
            in_specs=[x_spec, x_spec, x_spec,
                      w_spec, w_spec, w_spec, w_spec,
                      b_spec, b_spec, b_spec, b_spec],
            out_specs=pl.BlockSpec((b_tile * seq, inputs), lambda b: (b, 0)),
        ),
        compiler_params=pltpu.CompilerParams(
            dimension_semantics=("parallel",)),
    )(q2, k2, v2, wq, wk, wv, wo, bq_r, bk_r, bv_r, bo_r)

    # PyTorch: y = y.view(bs, -1)   (dropouts are Identity since p=None)
    return out.reshape(bs, seq * inputs)


# --------------------------- pure-JAX reference --------------------------- #

def _entmax15_ref(x, axis=-1):
    """Exact sort-based entmax15 (Peters et al. 2019), matching the entmax package."""
    x = x - jnp.max(x, axis=axis, keepdims=True)
    x = x * 0.5
    xs = jnp.flip(jnp.sort(x, axis=axis), axis=axis)  # descending
    K = x.shape[axis]
    rho = jnp.arange(1, K + 1, dtype=x.dtype)
    mean = jnp.cumsum(xs, axis=axis) / rho
    mean_sq = jnp.cumsum(xs * xs, axis=axis) / rho
    ss = rho * (mean_sq - mean * mean)
    delta = (1.0 - ss) / rho
    tau = mean - jnp.sqrt(jnp.clip(delta, 0.0, None))
    support = jnp.sum((tau <= xs).astype(jnp.int32), axis=axis, keepdims=True)
    tau_star = jnp.take_along_axis(tau, support - 1, axis=axis)
    p = jnp.clip(x - tau_star, 0.0, None)
    return p * p


def _ref_forward(q, k, v, params, heads):
    bs, seq, inputs = q.shape
    hidden = inputs // heads
    qp = q @ params["wq"].T + params["bq"]
    kp = k @ params["wk"].T + params["bk"]
    vp = v @ params["wv"].T + params["bv"]
    qp = qp.reshape(bs, seq, heads, hidden).transpose(0, 2, 1, 3)
    kp = kp.reshape(bs, seq, heads, hidden).transpose(0, 2, 1, 3)
    vp = vp.reshape(bs, seq, heads, hidden).transpose(0, 2, 1, 3)
    scores = jnp.einsum("bhqd,bhkd->bhqk", qp, kp) / math.sqrt(hidden)
    attn = _entmax15_ref(scores, axis=-1)
    y = jnp.einsum("bhqk,bhkd->bhqd", attn, vp)
    y = y.transpose(0, 2, 1, 3).reshape(bs, seq, inputs)
    out = y @ params["wo"].T + params["bo"]
    return out.reshape(bs, -1)


# --------------------------------- main ----------------------------------- #

if __name__ == "__main__":
    bs, seq, inputs, heads = 2, 8, 32, 4

    key = jax.random.PRNGKey(0)
    keys = jax.random.split(key, 12)
    bound = 1.0 / math.sqrt(inputs)

    def u(kk, shape):
        return jax.random.uniform(kk, shape, jnp.float32, minval=-bound, maxval=bound)

    params = {
        "wq": u(keys[0], (inputs, inputs)), "bq": u(keys[1], (inputs,)),
        "wk": u(keys[2], (inputs, inputs)), "bk": u(keys[3], (inputs,)),
        "wv": u(keys[4], (inputs, inputs)), "bv": u(keys[5], (inputs,)),
        "wo": u(keys[6], (inputs, inputs)), "bo": u(keys[7], (inputs,)),
    }

    q = jax.random.normal(keys[8], (bs, seq, inputs), jnp.float32)
    k = jax.random.normal(keys[9], (bs, seq, inputs), jnp.float32)
    v = jax.random.normal(keys[10], (bs, seq, inputs), jnp.float32)

    y = multi_head_attention(q, k, v, params, heads)
    y = jax.block_until_ready(y)
    assert y.shape == (bs, seq * inputs)

    y_ref = jax.block_until_ready(_ref_forward(q, k, v, params, heads))
    assert jnp.allclose(y, y_ref, rtol=2e-3, atol=2e-3), (
        float(jnp.max(jnp.abs(y - y_ref))))

    print("KERNEL_OK")
</pallas_src>

<mosaic_0001>
module attributes {stable_mosaic.version = 11 : i64} {
  func.func @_mha_kernel(%arg0: i32, %arg1: memref<16x32xf32, #tpu.memory_space<vmem>>, %arg2: memref<16x32xf32, #tpu.memory_space<vmem>>, %arg3: memref<16x32xf32, #tpu.memory_space<vmem>>, %arg4: memref<32x32xf32, #tpu.memory_space<vmem>>, %arg5: memref<32x32xf32, #tpu.memory_space<vmem>>, %arg6: memref<32x32xf32, #tpu.memory_space<vmem>>, %arg7: memref<32x32xf32, #tpu.memory_space<vmem>>, %arg8: memref<1x32xf32, #tpu.memory_space<vmem>>, %arg9: memref<1x32xf32, #tpu.memory_space<vmem>>, %arg10: memref<1x32xf32, #tpu.memory_space<vmem>>, %arg11: memref<1x32xf32, #tpu.memory_space<vmem>>, %arg12: memref<16x32xf32, #tpu.memory_space<vmem>>) attributes {dimension_semantics = [#tpu.dimension_semantics<parallel>], iteration_bounds = array<i64: 1>, scalar_prefetch = 0 : i64, scratch_operands = 0 : i64, tpu.core_type = #tpu.core_type<tc>, window_params = [{transform_indices = @transform_0, window_bounds = array<i64: 16, 32>}, {transform_indices = @transform_1, window_bounds = array<i64: 16, 32>}, {transform_indices = @transform_2, window_bounds = array<i64: 16, 32>}, {pipeline_mode = #tpu.pipeline_mode<synchronous>, transform_indices = @transform_3, window_bounds = array<i64: 32, 32>}, {pipeline_mode = #tpu.pipeline_mode<synchronous>, transform_indices = @transform_4, window_bounds = array<i64: 32, 32>}, {pipeline_mode = #tpu.pipeline_mode<synchronous>, transform_indices = @transform_5, window_bounds = array<i64: 32, 32>}, {pipeline_mode = #tpu.pipeline_mode<synchronous>, transform_indices = @transform_6, window_bounds = array<i64: 32, 32>}, {pipeline_mode = #tpu.pipeline_mode<synchronous>, transform_indices = @transform_7, window_bounds = array<i64: 1, 32>}, {pipeline_mode = #tpu.pipeline_mode<synchronous>, transform_indices = @transform_8, window_bounds = array<i64: 1, 32>}, {pipeline_mode = #tpu.pipeline_mode<synchronous>, transform_indices = @transform_9, window_bounds = array<i64: 1, 32>}, {pipeline_mode = #tpu.pipeline_mode<synchronous>, transform_indices = @transform_10, window_bounds = array<i64: 1, 32>}, {transform_indices = @transform_11, window_bounds = array<i64: 16, 32>}]} {
    %c0 = arith.constant 0 : index
    %c0_0 = arith.constant 0 : index
    %0 = vector.load %arg1[%c0, %c0_0] : memref<16x32xf32, #tpu.memory_space<vmem>>, vector<16x32xf32>
    %c0_1 = arith.constant 0 : index
    %c0_2 = arith.constant 0 : index
    %1 = vector.load %arg2[%c0_1, %c0_2] : memref<16x32xf32, #tpu.memory_space<vmem>>, vector<16x32xf32>
    %c0_3 = arith.constant 0 : index
    %c0_4 = arith.constant 0 : index
    %2 = vector.load %arg3[%c0_3, %c0_4] : memref<16x32xf32, #tpu.memory_space<vmem>>, vector<16x32xf32>
    %c0_5 = arith.constant 0 : index
    %c0_6 = arith.constant 0 : index
    %3 = vector.load %arg4[%c0_5, %c0_6] : memref<32x32xf32, #tpu.memory_space<vmem>>, vector<32x32xf32>
    %cst = arith.constant dense<0.000000e+00> : vector<16x32xf32>
    %4 = tpu.matmul %0, %3, %cst {dimension_numbers = #tpu.dot_dimension_numbers<[1], [1], [0], [0], [0, 0, 1, 0], [], []>} : vector<16x32xf32>, vector<32x32xf32>, vector<16x32xf32> -> vector<16x32xf32>
    %c0_7 = arith.constant 0 : index
    %c0_8 = arith.constant 0 : index
    %5 = vector.load %arg8[%c0_7, %c0_8] : memref<1x32xf32, #tpu.memory_space<vmem>>, vector<1x32xf32>
    %6 = vector.broadcast %5 : vector<1x32xf32> to vector<16x32xf32>
    %7 = arith.addf %4, %6 : vector<16x32xf32>
    %cst_9 = arith.constant 0.176776692 : f32
    %8 = vector.broadcast %cst_9 : f32 to vector<16x32xf32>
    %9 = arith.mulf %7, %8 : vector<16x32xf32>
    %c0_10 = arith.constant 0 : index
    %c0_11 = arith.constant 0 : index
    %10 = vector.load %arg5[%c0_10, %c0_11] : memref<32x32xf32, #tpu.memory_space<vmem>>, vector<32x32xf32>
    %cst_12 = arith.constant dense<0.000000e+00> : vector<16x32xf32>
    %11 = tpu.matmul %1, %10, %cst_12 {dimension_numbers = #tpu.dot_dimension_numbers<[1], [1], [0], [0], [0, 0, 1, 0], [], []>} : vector<16x32xf32>, vector<32x32xf32>, vector<16x32xf32> -> vector<16x32xf32>
    %c0_13 = arith.constant 0 : index
    %c0_14 = arith.constant 0 : index
    %12 = vector.load %arg9[%c0_13, %c0_14] : memref<1x32xf32, #tpu.memory_space<vmem>>, vector<1x32xf32>
    %13 = vector.broadcast %12 : vector<1x32xf32> to vector<16x32xf32>
    %14 = arith.addf %11, %13 : vector<16x32xf32>
    %c0_15 = arith.constant 0 : index
    %c0_16 = arith.constant 0 : index
    %15 = vector.load %arg6[%c0_15, %c0_16] : memref<32x32xf32, #tpu.memory_space<vmem>>, vector<32x32xf32>
    %cst_17 = arith.constant dense<0.000000e+00> : vector<16x32xf32>
    %16 = tpu.matmul %2, %15, %cst_17 {dimension_numbers = #tpu.dot_dimension_numbers<[1], [1], [0], [0], [0, 0, 1, 0], [], []>} : vector<16x32xf32>, vector<32x32xf32>, vector<16x32xf32> -> vector<16x32xf32>
    %c0_18 = arith.constant 0 : index
    %c0_19 = arith.constant 0 : index
    %17 = vector.load %arg10[%c0_18, %c0_19] : memref<1x32xf32, #tpu.memory_space<vmem>>, vector<1x32xf32>
    %18 = vector.broadcast %17 : vector<1x32xf32> to vector<16x32xf32>
    %19 = arith.addf %16, %18 : vector<16x32xf32>
    %20 = vector.extract_strided_slice %9 {offsets = [0, 0], sizes = [8, 8], strides = [1, 1]} : vector<16x32xf32> to vector<8x8xf32>
    %21 = vector.extract_strided_slice %14 {offsets = [0, 0], sizes = [8, 8], strides = [1, 1]} : vector<16x32xf32> to vector<8x8xf32>
    %cst_20 = arith.constant dense<0.000000e+00> : vector<8x8xf32>
    %22 = tpu.matmul %20, %21, %cst_20 {dimension_numbers = #tpu.dot_dimension_numbers<[1], [1], [0], [0], [0, 0, 1, 0], [], []>} : vector<8x8xf32>, vector<8x8xf32>, vector<8x8xf32> -> vector<8x8xf32>
    %23 = vector.extract_strided_slice %9 {offsets = [0, 8], sizes = [8, 8], strides = [1, 1]} : vector<16x32xf32> to vector<8x8xf32>
    %24 = vector.extract_strided_slice %14 {offsets = [0, 8], sizes = [8, 8], strides = [1, 1]} : vector<16x32xf32> to vector<8x8xf32>
    %cst_21 = arith.constant dense<0.000000e+00> : vector<8x8xf32>
    %25 = tpu.matmul %23, %24, %cst_21 {dimension_numbers = #tpu.dot_dimension_numbers<[1], [1], [0], [0], [0, 0, 1, 0], [], []>} : vector<8x8xf32>, vector<8x8xf32>, vector<8x8xf32> -> vector<8x8xf32>
    %26 = vector.extract_strided_slice %9 {offsets = [0, 16], sizes = [8, 8], strides = [1, 1]} : vector<16x32xf32> to vector<8x8xf32>
    %27 = vector.extract_strided_slice %14 {offsets = [0, 16], sizes = [8, 8], strides = [1, 1]} : vector<16x32xf32> to vector<8x8xf32>
    %cst_22 = arith.constant dense<0.000000e+00> : vector<8x8xf32>
    %28 = tpu.matmul %26, %27, %cst_22 {dimension_numbers = #tpu.dot_dimension_numbers<[1], [1], [0], [0], [0, 0, 1, 0], [], []>} : vector<8x8xf32>, vector<8x8xf32>, vector<8x8xf32> -> vector<8x8xf32>
    %29 = vector.extract_strided_slice %9 {offsets = [0, 24], sizes = [8, 8], strides = [1, 1]} : vector<16x32xf32> to vector<8x8xf32>
    %30 = vector.extract_strided_slice %14 {offsets = [0, 24], sizes = [8, 8], strides = [1, 1]} : vector<16x32xf32> to vector<8x8xf32>
    %cst_23 = arith.constant dense<0.000000e+00> : vector<8x8xf32>
    %31 = tpu.matmul %29, %30, %cst_23 {dimension_numbers = #tpu.dot_dimension_numbers<[1], [1], [0], [0], [0, 0, 1, 0], [], []>} : vector<8x8xf32>, vector<8x8xf32>, vector<8x8xf32> -> vector<8x8xf32>
    %32 = vector.extract_strided_slice %9 {offsets = [8, 0], sizes = [8, 8], strides = [1, 1]} : vector<16x32xf32> to vector<8x8xf32>
    %33 = vector.extract_strided_slice %14 {offsets = [8, 0], sizes = [8, 8], strides = [1, 1]} : vector<16x32xf32> to vector<8x8xf32>
    %cst_24 = arith.constant dense<0.000000e+00> : vector<8x8xf32>
    %34 = tpu.matmul %32, %33, %cst_24 {dimension_numbers = #tpu.dot_dimension_numbers<[1], [1], [0], [0], [0, 0, 1, 0], [], []>} : vector<8x8xf32>, vector<8x8xf32>, vector<8x8xf32> -> vector<8x8xf32>
    %35 = vector.extract_strided_slice %9 {offsets = [8, 8], sizes = [8, 8], strides = [1, 1]} : vector<16x32xf32> to vector<8x8xf32>
    %36 = vector.extract_strided_slice %14 {offsets = [8, 8], sizes = [8, 8], strides = [1, 1]} : vector<16x32xf32> to vector<8x8xf32>
    %cst_25 = arith.constant dense<0.000000e+00> : vector<8x8xf32>
    %37 = tpu.matmul %35, %36, %cst_25 {dimension_numbers = #tpu.dot_dimension_numbers<[1], [1], [0], [0], [0, 0, 1, 0], [], []>} : vector<8x8xf32>, vector<8x8xf32>, vector<8x8xf32> -> vector<8x8xf32>
    %38 = vector.extract_strided_slice %9 {offsets = [8, 16], sizes = [8, 8], strides = [1, 1]} : vector<16x32xf32> to vector<8x8xf32>
    %39 = vector.extract_strided_slice %14 {offsets = [8, 16], sizes = [8, 8], strides = [1, 1]} : vector<16x32xf32> to vector<8x8xf32>
    %cst_26 = arith.constant dense<0.000000e+00> : vector<8x8xf32>
    %40 = tpu.matmul %38, %39, %cst_26 {dimension_numbers = #tpu.dot_dimension_numbers<[1], [1], [0], [0], [0, 0, 1, 0], [], []>} : vector<8x8xf32>, vector<8x8xf32>, vector<8x8xf32> -> vector<8x8xf32>
    %41 = vector.extract_strided_slice %9 {offsets = [8, 24], sizes = [8, 8], strides = [1, 1]} : vector<16x32xf32> to vector<8x8xf32>
    %42 = vector.extract_strided_slice %14 {offsets = [8, 24], sizes = [8, 8], strides = [1, 1]} : vector<16x32xf32> to vector<8x8xf32>
    %cst_27 = arith.constant dense<0.000000e+00> : vector<8x8xf32>
    %43 = tpu.matmul %41, %42, %cst_27 {dimension_numbers = #tpu.dot_dimension_numbers<[1], [1], [0], [0], [0, 0, 1, 0], [], []>} : vector<8x8xf32>, vector<8x8xf32>, vector<8x8xf32> -> vector<8x8xf32>
    %44 = tpu.concatenate %22, %25, %28, %31, %34, %37, %40, %43 in 0 : vector<8x8xf32>, vector<8x8xf32>, vector<8x8xf32>, vector<8x8xf32>, vector<8x8xf32>, vector<8x8xf32>, vector<8x8xf32>, vector<8x8xf32> -> vector<64x8xf32>
    %cst_28 = arith.constant dense<0xFF800000> : vector<64xf32>
    %45 = vector.multi_reduction <maximumf>, %44, %cst_28 [1] : vector<64x8xf32> to vector<64xf32>
    %46 = vector.shape_cast %45 : vector<64xf32> to vector<64x1xf32>
    %47 = vector.broadcast %46 : vector<64x1xf32> to vector<64x8xf32>
    %48 = arith.subf %44, %47 : vector<64x8xf32>
    %cst_29 = arith.constant -1.000000e+00 : f32
    %49 = vector.broadcast %cst_29 : f32 to vector<64x1xf32>
    %cst_30 = arith.constant 0.000000e+00 : f32
    %50 = vector.broadcast %cst_30 : f32 to vector<64x1xf32>
    %c0_i32 = arith.constant 0 : i32
    %51 = arith.addf %49, %50 : vector<64x1xf32>
    %cst_31 = arith.constant 5.000000e-01 : f32
    %52 = vector.broadcast %cst_31 : f32 to vector<64x1xf32>
    %53 = arith.mulf %51, %52 : vector<64x1xf32>
    %54 = vector.broadcast %53 : vector<64x1xf32> to vector<64x8xf32>
    %55 = arith.subf %48, %54 : vector<64x8xf32>
    %cst_32 = arith.constant 0.000000e+00 : f32
    %56 = vector.broadcast %cst_32 : f32 to vector<64x8xf32>
    %57 = arith.maximumf %55, %56 : vector<64x8xf32>
    %58 = arith.mulf %57, %57 : vector<64x8xf32>
    %cst_33 = arith.constant dense<0.000000e+00> : vector<64xf32>
    %59 = vector.multi_reduction <add>, %58, %cst_33 [1] : vector<64x8xf32> to vector<64xf32>
    %60 = vector.shape_cast %59 : vector<64xf32> to vector<64x1xf32>
    %cst_34 = arith.constant 1.000000e+00 : f32
    %61 = vector.broadcast %cst_34 : f32 to vector<64x1xf32>
    %62 = arith.cmpf oge, %60, %61 : vector<64x1xf32>
    %63 = arith.select %62, %53, %49 : vector<64x1xi1>, vector<64x1xf32>
    %64 = arith.select %62, %50, %53 : vector<64x1xi1>, vector<64x1xf32>
    %c1_i32 = arith.constant 1 : i32
    %65 = arith.addf %63, %64 : vector<64x1xf32>
    %cst_35 = arith.constant 5.000000e-01 : f32
    %66 = vector.broadcast %cst_35 : f32 to vector<64x1xf32>
    %67 = arith.mulf %65, %66 : vector<64x1xf32>
    %68 = vector.broadcast %67 : vector<64x1xf32> to vector<64x8xf32>
    %69 = arith.subf %48, %68 : vector<64x8xf32>
    %cst_36 = arith.constant 0.000000e+00 : f32
    %70 = vector.broadcast %cst_36 : f32 to vector<64x8xf32>
    %71 = arith.maximumf %69, %70 : vector<64x8xf32>
    %72 = arith.mulf %71, %71 : vector<64x8xf32>
    %cst_37 = arith.constant dense<0.000000e+00> : vector<64xf32>
    %73 = vector.multi_reduction <add>, %72, %cst_37 [1] : vector<64x8xf32> to vector<64xf32>
    %74 = vector.shape_cast %73 : vector<64xf32> to vector<64x1xf32>
    %cst_38 = arith.constant 1.000000e+00 : f32
    %75 = vector.broadcast %cst_38 : f32 to vector<64x1xf32>
    %76 = arith.cmpf oge, %74, %75 : vector<64x1xf32>
    %77 = arith.select %76, %67, %63 : vector<64x1xi1>, vector<64x1xf32>
    %78 = arith.select %76, %64, %67 : vector<64x1xi1>, vector<64x1xf32>
    %c2_i32 = arith.constant 2 : i32
    %79 = arith.addf %77, %78 : vector<64x1xf32>
    %cst_39 = arith.constant 5.000000e-01 : f32
    %80 = vector.broadcast %cst_39 : f32 to vector<64x1xf32>
    %81 = arith.mulf %79, %80 : vector<64x1xf32>
    %82 = vector.broadcast %81 : vector<64x1xf32> to vector<64x8xf32>
    %83 = arith.subf %48, %82 : vector<64x8xf32>
    %cst_40 = arith.constant 0.000000e+00 : f32
    %84 = vector.broadcast %cst_40 : f32 to vector<64x8xf32>
    %85 = arith.maximumf %83, %84 : vector<64x8xf32>
    %86 = arith.mulf %85, %85 : vector<64x8xf32>
    %cst_41 = arith.constant dense<0.000000e+00> : vector<64xf32>
    %87 = vector.multi_reduction <add>, %86, %cst_41 [1] : vector<64x8xf32> to vector<64xf32>
    %88 = vector.shape_cast %87 : vector<64xf32> to vector<64x1xf32>
    %cst_42 = arith.constant 1.000000e+00 : f32
    %89 = vector.broadcast %cst_42 : f32 to vector<64x1xf32>
    %90 = arith.cmpf oge, %88, %89 : vector<64x1xf32>
    %91 = arith.select %90, %81, %77 : vector<64x1xi1>, vector<64x1xf32>
    %92 = arith.select %90, %78, %81 : vector<64x1xi1>, vector<64x1xf32>
    %c3_i32 = arith.constant 3 : i32
    %93 = arith.addf %91, %92 : vector<64x1xf32>
    %cst_43 = arith.constant 5.000000e-01 : f32
    %94 = vector.broadcast %cst_43 : f32 to vector<64x1xf32>
    %95 = arith.mulf %93, %94 : vector<64x1xf32>
    %96 = vector.broadcast %95 : vector<64x1xf32> to vector<64x8xf32>
    %97 = arith.subf %48, %96 : vector<64x8xf32>
    %cst_44 = arith.constant 0.000000e+00 : f32
    %98 = vector.broadcast %cst_44 : f32 to vector<64x8xf32>
    %99 = arith.maximumf %97, %98 : vector<64x8xf32>
    %100 = arith.mulf %99, %99 : vector<64x8xf32>
    %cst_45 = arith.constant dense<0.000000e+00> : vector<64xf32>
    %101 = vector.multi_reduction <add>, %100, %cst_45 [1] : vector<64x8xf32> to vector<64xf32>
    %102 = vector.shape_cast %101 : vector<64xf32> to vector<64x1xf32>
    %cst_46 = arith.constant 1.000000e+00 : f32
    %103 = vector.broadcast %cst_46 : f32 to vector<64x1xf32>
    %104 = arith.cmpf oge, %102, %103 : vector<64x1xf32>
    %105 = arith.select %104, %95, %91 : vector<64x1xi1>, vector<64x1xf32>
    %106 = arith.select %104, %92, %95 : vector<64x1xi1>, vector<64x1xf32>
    %c4_i32 = arith.constant 4 : i32
    %107 = arith.addf %105, %106 : vector<64x1xf32>
    %cst_47 = arith.constant 5.000000e-01 : f32
    %108 = vector.broadcast %cst_47 : f32 to vector<64x1xf32>
    %109 = arith.mulf %107, %108 : vector<64x1xf32>
    %110 = vector.broadcast %109 : vector<64x1xf32> to vector<64x8xf32>
    %111 = arith.subf %48, %110 : vector<64x8xf32>
    %cst_48 = arith.constant 0.000000e+00 : f32
    %112 = vector.broadcast %cst_48 : f32 to vector<64x8xf32>
    %113 = arith.maximumf %111, %112 : vector<64x8xf32>
    %114 = arith.mulf %113, %113 : vector<64x8xf32>
    %cst_49 = arith.constant dense<0.000000e+00> : vector<64xf32>
    %115 = vector.multi_reduction <add>, %114, %cst_49 [1] : vector<64x8xf32> to vector<64xf32>
    %116 = vector.shape_cast %115 : vector<64xf32> to vector<64x1xf32>
    %cst_50 = arith.constant 1.000000e+00 : f32
    %117 = vector.broadcast %cst_50 : f32 to vector<64x1xf32>
    %118 = arith.cmpf oge, %116, %117 : vector<64x1xf32>
    %119 = arith.select %118, %109, %105 : vector<64x1xi1>, vector<64x1xf32>
    %120 = arith.select %118, %106, %109 : vector<64x1xi1>, vector<64x1xf32>
    %c5_i32 = arith.constant 5 : i32
    %121 = arith.addf %119, %120 : vector<64x1xf32>
    %cst_51 = arith.constant 5.000000e-01 : f32
    %122 = vector.broadcast %cst_51 : f32 to vector<64x1xf32>
    %123 = arith.mulf %121, %122 : vector<64x1xf32>
    %124 = vector.broadcast %123 : vector<64x1xf32> to vector<64x8xf32>
    %125 = arith.subf %48, %124 : vector<64x8xf32>
    %cst_52 = arith.constant 0.000000e+00 : f32
    %126 = vector.broadcast %cst_52 : f32 to vector<64x8xf32>
    %127 = arith.maximumf %125, %126 : vector<64x8xf32>
    %128 = arith.mulf %127, %127 : vector<64x8xf32>
    %cst_53 = arith.constant dense<0.000000e+00> : vector<64xf32>
    %129 = vector.multi_reduction <add>, %128, %cst_53 [1] : vector<64x8xf32> to vector<64xf32>
    %130 = vector.shape_cast %129 : vector<64xf32> to vector<64x1xf32>
    %cst_54 = arith.constant 1.000000e+00 : f32
    %131 = vector.broadcast %cst_54 : f32 to vector<64x1xf32>
    %132 = arith.cmpf oge, %130, %131 : vector<64x1xf32>
    %133 = arith.select %132, %123, %119 : vector<64x1xi1>, vector<64x1xf32>
    %134 = arith.select %132, %120, %123 : vector<64x1xi1>, vector<64x1xf32>
    %c6_i32 = arith.constant 6 : i32
    %135 = arith.addf %133, %134 : vector<64x1xf32>
    %cst_55 = arith.constant 5.000000e-01 : f32
    %136 = vector.broadcast %cst_55 : f32 to vector<64x1xf32>
    %137 = arith.mulf %135, %136 : vector<64x1xf32>
    %138 = vector.broadcast %137 : vector<64x1xf32> to vector<64x8xf32>
    %139 = arith.subf %48, %138 : vector<64x8xf32>
    %cst_56 = arith.constant 0.000000e+00 : f32
    %140 = vector.broadcast %cst_56 : f32 to vector<64x8xf32>
    %141 = arith.maximumf %139, %140 : vector<64x8xf32>
    %142 = arith.mulf %141, %141 : vector<64x8xf32>
    %cst_57 = arith.constant dense<0.000000e+00> : vector<64xf32>
    %143 = vector.multi_reduction <add>, %142, %cst_57 [1] : vector<64x8xf32> to vector<64xf32>
    %144 = vector.shape_cast %143 : vector<64xf32> to vector<64x1xf32>
    %cst_58 = arith.constant 1.000000e+00 : f32
    %145 = vector.broadcast %cst_58 : f32 to vector<64x1xf32>
    %146 = arith.cmpf oge, %144, %145 : vector<64x1xf32>
    %147 = arith.select %146, %137, %133 : vector<64x1xi1>, vector<64x1xf32>
    %148 = arith.select %146, %134, %137 : vector<64x1xi1>, vector<64x1xf32>
    %c0_i32_59 = arith.constant 0 : i32
    %149 = vector.broadcast %147 : vector<64x1xf32> to vector<64x8xf32>
    %150 = arith.subf %48, %149 : vector<64x8xf32>
    %cst_60 = arith.constant 0.000000e+00 : f32
    %151 = vector.broadcast %cst_60 : f32 to vector<64x8xf32>
    %152 = arith.maximumf %150, %151 : vector<64x8xf32>
    %153 = arith.mulf %152, %152 : vector<64x8xf32>
    %cst_61 = arith.constant dense<0.000000e+00> : vector<64xf32>
    %154 = vector.multi_reduction <add>, %153, %cst_61 [1] : vector<64x8xf32> to vector<64xf32>
    %155 = vector.shape_cast %154 : vector<64xf32> to vector<64x1xf32>
    %cst_62 = arith.constant dense<0.000000e+00> : vector<64xf32>
    %156 = vector.multi_reduction <add>, %152, %cst_62 [1] : vector<64x8xf32> to vector<64xf32>
    %157 = vector.shape_cast %156 : vector<64xf32> to vector<64x1xf32>
    %cst_63 = arith.constant 1.000000e+00 : f32
    %158 = vector.broadcast %cst_63 : f32 to vector<64x1xf32>
    %159 = arith.subf %155, %158 : vector<64x1xf32>
    %cst_64 = arith.constant 5.000000e-01 : f32
    %160 = vector.broadcast %cst_64 : f32 to vector<64x1xf32>
    %161 = arith.mulf %159, %160 : vector<64x1xf32>
    %162 = arith.divf %161, %157 : vector<64x1xf32>
    %163 = arith.addf %147, %162 : vector<64x1xf32>
    %c1_i32_65 = arith.constant 1 : i32
    %164 = vector.broadcast %163 : vector<64x1xf32> to vector<64x8xf32>
    %165 = arith.subf %48, %164 : vector<64x8xf32>
    %cst_66 = arith.constant 0.000000e+00 : f32
    %166 = vector.broadcast %cst_66 : f32 to vector<64x8xf32>
    %167 = arith.maximumf %165, %166 : vector<64x8xf32>
    %168 = arith.mulf %167, %167 : vector<64x8xf32>
    %cst_67 = arith.constant dense<0.000000e+00> : vector<64xf32>
    %169 = vector.multi_reduction <add>, %168, %cst_67 [1] : vector<64x8xf32> to vector<64xf32>
    %170 = vector.shape_cast %169 : vector<64xf32> to vector<64x1xf32>
    %cst_68 = arith.constant dense<0.000000e+00> : vector<64xf32>
    %171 = vector.multi_reduction <add>, %167, %cst_68 [1] : vector<64x8xf32> to vector<64xf32>
    %172 = vector.shape_cast %171 : vector<64xf32> to vector<64x1xf32>
    %cst_69 = arith.constant 1.000000e+00 : f32
    %173 = vector.broadcast %cst_69 : f32 to vector<64x1xf32>
    %174 = arith.subf %170, %173 : vector<64x1xf32>
    %cst_70 = arith.constant 5.000000e-01 : f32
    %175 = vector.broadcast %cst_70 : f32 to vector<64x1xf32>
    %176 = arith.mulf %174, %175 : vector<64x1xf32>
    %177 = arith.divf %176, %172 : vector<64x1xf32>
    %178 = arith.addf %163, %177 : vector<64x1xf32>
    %c2_i32_71 = arith.constant 2 : i32
    %179 = vector.broadcast %178 : vector<64x1xf32> to vector<64x8xf32>
    %180 = arith.subf %48, %179 : vector<64x8xf32>
    %cst_72 = arith.constant 0.000000e+00 : f32
    %181 = vector.broadcast %cst_72 : f32 to vector<64x8xf32>
    %182 = arith.maximumf %180, %181 : vector<64x8xf32>
    %183 = arith.mulf %182, %182 : vector<64x8xf32>
    %cst_73 = arith.constant dense<0.000000e+00> : vector<64xf32>
    %184 = vector.multi_reduction <add>, %183, %cst_73 [1] : vector<64x8xf32> to vector<64xf32>
    %185 = vector.shape_cast %184 : vector<64xf32> to vector<64x1xf32>
    %cst_74 = arith.constant dense<0.000000e+00> : vector<64xf32>
    %186 = vector.multi_reduction <add>, %182, %cst_74 [1] : vector<64x8xf32> to vector<64xf32>
    %187 = vector.shape_cast %186 : vector<64xf32> to vector<64x1xf32>
    %cst_75 = arith.constant 1.000000e+00 : f32
    %188 = vector.broadcast %cst_75 : f32 to vector<64x1xf32>
    %189 = arith.subf %185, %188 : vector<64x1xf32>
    %cst_76 = arith.constant 5.000000e-01 : f32
    %190 = vector.broadcast %cst_76 : f32 to vector<64x1xf32>
    %191 = arith.mulf %189, %190 : vector<64x1xf32>
    %192 = arith.divf %191, %187 : vector<64x1xf32>
    %193 = arith.addf %178, %192 : vector<64x1xf32>
    %194 = vector.broadcast %193 : vector<64x1xf32> to vector<64x8xf32>
    %195 = arith.subf %48, %194 : vector<64x8xf32>
    %cst_77 = arith.constant 0.000000e+00 : f32
    %196 = vector.broadcast %cst_77 : f32 to vector<64x8xf32>
    %197 = arith.maximumf %195, %196 : vector<64x8xf32>
    %198 = arith.mulf %197, %197 : vector<64x8xf32>
    %199 = vector.extract_strided_slice %198 {offsets = [0, 0], sizes = [8, 8], strides = [1, 1]} : vector<64x8xf32> to vector<8x8xf32>
    %200 = vector.extract_strided_slice %19 {offsets = [0, 0], sizes = [8, 8], strides = [1, 1]} : vector<16x32xf32> to vector<8x8xf32>
    %cst_78 = arith.constant dense<0.000000e+00> : vector<8x8xf32>
    %201 = tpu.matmul %199, %200, %cst_78 {dimension_numbers = #tpu.dot_dimension_numbers<[1], [0], [0], [1], [0, 0, 1, 1], [], []>} : vector<8x8xf32>, vector<8x8xf32>, vector<8x8xf32> -> vector<8x8xf32>
    %202 = vector.extract_strided_slice %198 {offsets = [8, 0], sizes = [8, 8], strides = [1, 1]} : vector<64x8xf32> to vector<8x8xf32>
    %203 = vector.extract_strided_slice %19 {offsets = [0, 8], sizes = [8, 8], strides = [1, 1]} : vector<16x32xf32> to vector<8x8xf32>
    %cst_79 = arith.constant dense<0.000000e+00> : vector<8x8xf32>
    %204 = tpu.matmul %202, %203, %cst_79 {dimension_numbers = #tpu.dot_dimension_numbers<[1], [0], [0], [1], [0, 0, 1, 1], [], []>} : vector<8x8xf32>, vector<8x8xf32>, vector<8x8xf32> -> vector<8x8xf32>
    %205 = vector.extract_strided_slice %198 {offsets = [16, 0], sizes = [8, 8], strides = [1, 1]} : vector<64x8xf32> to vector<8x8xf32>
    %206 = vector.extract_strided_slice %19 {offsets = [0, 16], sizes = [8, 8], strides = [1, 1]} : vector<16x32xf32> to vector<8x8xf32>
    %cst_80 = arith.constant dense<0.000000e+00> : vector<8x8xf32>
    %207 = tpu.matmul %205, %206, %cst_80 {dimension_numbers = #tpu.dot_dimension_numbers<[1], [0], [0], [1], [0, 0, 1, 1], [], []>} : vector<8x8xf32>, vector<8x8xf32>, vector<8x8xf32> -> vector<8x8xf32>
    %208 = vector.extract_strided_slice %198 {offsets = [24, 0], sizes = [8, 8], strides = [1, 1]} : vector<64x8xf32> to vector<8x8xf32>
    %209 = vector.extract_strided_slice %19 {offsets = [0, 24], sizes = [8, 8], strides = [1, 1]} : vector<16x32xf32> to vector<8x8xf32>
    %cst_81 = arith.constant dense<0.000000e+00> : vector<8x8xf32>
    %210 = tpu.matmul %208, %209, %cst_81 {dimension_numbers = #tpu.dot_dimension_numbers<[1], [0], [0], [1], [0, 0, 1, 1], [], []>} : vector<8x8xf32>, vector<8x8xf32>, vector<8x8xf32> -> vector<8x8xf32>
    %211 = tpu.concatenate %201, %204, %207, %210 in 1 : vector<8x8xf32>, vector<8x8xf32>, vector<8x8xf32>, vector<8x8xf32> -> vector<8x32xf32>
    %212 = vector.extract_strided_slice %198 {offsets = [32, 0], sizes = [8, 8], strides = [1, 1]} : vector<64x8xf32> to vector<8x8xf32>
    %213 = vector.extract_strided_slice %19 {offsets = [8, 0], sizes = [8, 8], strides = [1, 1]} : vector<16x32xf32> to vector<8x8xf32>
    %cst_82 = arith.constant dense<0.000000e+00> : vector<8x8xf32>
    %214 = tpu.matmul %212, %213, %cst_82 {dimension_numbers = #tpu.dot_dimension_numbers<[1], [0], [0], [1], [0, 0, 1, 1], [], []>} : vector<8x8xf32>, vector<8x8xf32>, vector<8x8xf32> -> vector<8x8xf32>
    %215 = vector.extract_strided_slice %198 {offsets = [40, 0], sizes = [8, 8], strides = [1, 1]} : vector<64x8xf32> to vector<8x8xf32>
    %216 = vector.extract_strided_slice %19 {offsets = [8, 8], sizes = [8, 8], strides = [1, 1]} : vector<16x32xf32> to vector<8x8xf32>
    %cst_83 = arith.constant dense<0.000000e+00> : vector<8x8xf32>
    %217 = tpu.matmul %215, %216, %cst_83 {dimension_numbers = #tpu.dot_dimension_numbers<[1], [0], [0], [1], [0, 0, 1, 1], [], []>} : vector<8x8xf32>, vector<8x8xf32>, vector<8x8xf32> -> vector<8x8xf32>
    %218 = vector.extract_strided_slice %198 {offsets = [48, 0], sizes = [8, 8], strides = [1, 1]} : vector<64x8xf32> to vector<8x8xf32>
    %219 = vector.extract_strided_slice %19 {offsets = [8, 16], sizes = [8, 8], strides = [1, 1]} : vector<16x32xf32> to vector<8x8xf32>
    %cst_84 = arith.constant dense<0.000000e+00> : vector<8x8xf32>
    %220 = tpu.matmul %218, %219, %cst_84 {dimension_numbers = #tpu.dot_dimension_numbers<[1], [0], [0], [1], [0, 0, 1, 1], [], []>} : vector<8x8xf32>, vector<8x8xf32>, vector<8x8xf32> -> vector<8x8xf32>
    %221 = vector.extract_strided_slice %198 {offsets = [56, 0], sizes = [8, 8], strides = [1, 1]} : vector<64x8xf32> to vector<8x8xf32>
    %222 = vector.extract_strided_slice %19 {offsets = [8, 24], sizes = [8, 8], strides = [1, 1]} : vector<16x32xf32> to vector<8x8xf32>
    %cst_85 = arith.constant dense<0.000000e+00> : vector<8x8xf32>
    %223 = tpu.matmul %221, %222, %cst_85 {dimension_numbers = #tpu.dot_dimension_numbers<[1], [0], [0], [1], [0, 0, 1, 1], [], []>} : vector<8x8xf32>, vector<8x8xf32>, vector<8x8xf32> -> vector<8x8xf32>
    %224 = tpu.concatenate %214, %217, %220, %223 in 1 : vector<8x8xf32>, vector<8x8xf32>, vector<8x8xf32>, vector<8x8xf32> -> vector<8x32xf32>
    %225 = tpu.concatenate %211, %224 in 0 : vector<8x32xf32>, vector<8x32xf32> -> vector<16x32xf32>
    %c0_86 = arith.constant 0 : index
    %c0_87 = arith.constant 0 : index
    %226 = vector.load %arg7[%c0_86, %c0_87] : memref<32x32xf32, #tpu.memory_space<vmem>>, vector<32x32xf32>
    %cst_88 = arith.constant dense<0.000000e+00> : vector<16x32xf32>
    %227 = tpu.matmul %225, %226, %cst_88 {dimension_numbers = #tpu.dot_dimension_numbers<[1], [1], [0], [0], [0, 0, 1, 0], [], []>} : vector<16x32xf32>, vector<32x32xf32>, vector<16x32xf32> -> vector<16x32xf32>
    %c0_89 = arith.constant 0 : index
    %c0_90 = arith.constant 0 : index
    %228 = vector.load %arg11[%c0_89, %c0_90] : memref<1x32xf32, #tpu.memory_space<vmem>>, vector<1x32xf32>
    %229 = vector.broadcast %228 : vector<1x32xf32> to vector<16x32xf32>
    %230 = arith.addf %227, %229 : vector<16x32xf32>
    %c0_91 = arith.constant 0 : index
    %c0_92 = arith.constant 0 : index
    %231 = vector.load %arg12[%c0_91, %c0_92] : memref<16x32xf32, #tpu.memory_space<vmem>>, vector<16x32xf32>
    tpu.vector_store %arg12[%c0_91, %c0_92], %230 {strides = array<i32>} : memref<16x32xf32, #tpu.memory_space<vmem>>, vector<16x32xf32>,
    return
  }
  func.func @transform_0(%arg0: i32) -> (i32, i32) {
    %c0_i32 = arith.constant 0 : i32
    %c0_i32_0 = arith.constant 0 : i32
    return %arg0, %c0_i32 : i32, i32
  }
  func.func @transform_1(%arg0: i32) -> (i32, i32) {
    %c0_i32 = arith.constant 0 : i32
    %c0_i32_0 = arith.constant 0 : i32
    return %arg0, %c0_i32 : i32, i32
  }
  func.func @transform_2(%arg0: i32) -> (i32, i32) {
    %c0_i32 = arith.constant 0 : i32
    %c0_i32_0 = arith.constant 0 : i32
    return %arg0, %c0_i32 : i32, i32
  }
  func.func @transform_3(%arg0: i32) -> (i32, i32) {
    %c0_i32 = arith.constant 0 : i32
    %c0_i32_0 = arith.constant 0 : i32
    %c0_i32_1 = arith.constant 0 : i32
    return %c0_i32, %c0_i32_0 : i32, i32
  }
  func.func @transform_4(%arg0: i32) -> (i32, i32) {
    %c0_i32 = arith.constant 0 : i32
    %c0_i32_0 = arith.constant 0 : i32
    %c0_i32_1 = arith.constant 0 : i32
    return %c0_i32, %c0_i32_0 : i32, i32
  }
  func.func @transform_5(%arg0: i32) -> (i32, i32) {
    %c0_i32 = arith.constant 0 : i32
    %c0_i32_0 = arith.constant 0 : i32
    %c0_i32_1 = arith.constant 0 : i32
    return %c0_i32, %c0_i32_0 : i32, i32
  }
  func.func @transform_6(%arg0: i32) -> (i32, i32) {
    %c0_i32 = arith.constant 0 : i32
    %c0_i32_0 = arith.constant 0 : i32
    %c0_i32_1 = arith.constant 0 : i32
    return %c0_i32, %c0_i32_0 : i32, i32
  }
  func.func @transform_7(%arg0: i32) -> (i32, i32) {
    %c0_i32 = arith.constant 0 : i32
    %c0_i32_0 = arith.constant 0 : i32
    %c0_i32_1 = arith.constant 0 : i32
    return %c0_i32, %c0_i32_0 : i32, i32
  }
  func.func @transform_8(%arg0: i32) -> (i32, i32) {
    %c0_i32 = arith.constant 0 : i32
    %c0_i32_0 = arith.constant 0 : i32
    %c0_i32_1 = arith.constant 0 : i32
    return %c0_i32, %c0_i32_0 : i32, i32
  }
  func.func @transform_9(%arg0: i32) -> (i32, i32) {
    %c0_i32 = arith.constant 0 : i32
    %c0_i32_0 = arith.constant 0 : i32
    %c0_i32_1 = arith.constant 0 : i32
    return %c0_i32, %c0_i32_0 : i32, i32
  }
  func.func @transform_10(%arg0: i32) -> (i32, i32) {
    %c0_i32 = arith.constant 0 : i32
    %c0_i32_0 = arith.constant 0 : i32
    %c0_i32_1 = arith.constant 0 : i32
    return %c0_i32, %c0_i32_0 : i32, i32
  }
  func.func @transform_11(%arg0: i32) -> (i32, i32) {
    %c0_i32 = arith.constant 0 : i32
    %c0_i32_0 = arith.constant 0 : i32
    return %arg0, %c0_i32 : i32, i32
  }
}

</mosaic_0001>

<llo_original>
// kernel: tpu_custom_call.1
$region0: #{tpu_custom_call.1}
  #allocation0 [shape = 'u32[]', space=smem, size = 0x4, offset = 0x4, fixed_abs, tag = 'smem constant byte address 0x4 - core index']
  #allocation1 [shape = 'u32[144,128]{1,0:T(1,128)}', space=vmem, size = 0x12000, scoped, tag = 'internal scratch']
  %s0 = inlined_call_operand.hbm [shape: f32[16,32], index: 0, kind: input, shape index: {}]
  %s1 = inlined_call_operand.hbm [shape: f32[16,32], index: 1, kind: input, shape index: {}]
  %s2 = inlined_call_operand.hbm [shape: f32[16,32], index: 2, kind: input, shape index: {}]
  %s3 = inlined_call_operand.hbm [shape: f32[32,32], index: 3, kind: input, shape index: {}]
  %s4 = inlined_call_operand.hbm [shape: f32[32,32], index: 4, kind: input, shape index: {}]
  %s5 = inlined_call_operand.hbm [shape: f32[32,32], index: 5, kind: input, shape index: {}]
  %s6 = inlined_call_operand.hbm [shape: f32[32,32], index: 6, kind: input, shape index: {}]
  %s7 = inlined_call_operand.vmem [shape: f32[1,32], index: 7, kind: input, shape index: {}]
  %s8 = inlined_call_operand.vmem [shape: f32[1,32], index: 8, kind: input, shape index: {}]
  %s9 = inlined_call_operand.vmem [shape: f32[1,32], index: 9, kind: input, shape index: {}]
  %s10 = inlined_call_operand.vmem [shape: f32[1,32], index: 10, kind: input, shape index: {}]
  %s11 = inlined_call_operand.hbm [shape: f32[16,32], index: 11, kind: output, shape index: {}]
  %s12 = sld [smem:[#allocation0]]
  $region82: #{tpu_custom_call.1} parent=0
    _
  %s14 = ssub.s32 1, %s12
  %s15 = scalar_select 0, %s14, %s12
  $region1: #{tpu_custom_call.1} parent=0
    #allocation2 [shape = 'u8[8192]{0}', space=vmem, size = 0x2000, scoped, tag = 'input window, operand 0, single buffered']
    #allocation3 [shape = 's32[1]{0}', space=sflag, size = 0x4, scoped, tag = 'scoped memory for tpu_custom_call.1']
    #allocation4 [shape = 's32[1]{0}', space=sflag, size = 0x4, scoped, tag = 'scoped memory for tpu_custom_call.1']
    #allocation5 [shape = 'u8[8192]{0}', space=vmem, size = 0x2000, scoped, tag = 'input window, operand 1, single buffered']
    #allocation6 [shape = 's32[1]{0}', space=sflag, size = 0x4, scoped, tag = 'scoped memory for tpu_custom_call.1']
    #allocation7 [shape = 'u8[8192]{0}', space=vmem, size = 0x2000, scoped, tag = 'input window, operand 2, single buffered']
    #allocation8 [shape = 'u8[16384]{0}', space=vmem, size = 0x4000, scoped, tag = 'input window, operand 3, single buffered']
    #allocation9 [shape = 's32[1]{0}', space=sflag, size = 0x4, scoped, tag = 'scoped memory for tpu_custom_call.1']
    #allocation10 [shape = 'u8[16384]{0}', space=vmem, size = 0x4000, scoped, tag = 'input window, operand 4, single buffered']
    #allocation11 [shape = 'u8[16384]{0}', space=vmem, size = 0x4000, scoped, tag = 'input window, operand 5, single buffered']
    #allocation12 [shape = 's32[1]{0}', space=sflag, size = 0x4, scoped, tag = 'scoped memory for tpu_custom_call.1']
    #allocation13 [shape = 'u8[16384]{0}', space=vmem, size = 0x4000, scoped, tag = 'input window, operand 6, single buffered']
    #allocation14 [shape = 'u8[8192]{0}', space=vmem, size = 0x2000, scoped, tag = 'output window, operand 0, single buffered']
    %16 = vsyncpa [#allocation3], 0
    %17 = vsyncpa [#allocation6], 0
    %18 = vsyncpa [#allocation9], 0
    %19 = vsyncpa [#allocation12], 0
    %20 = vsyncpa [#allocation4], 0
    // Predicated region
    $region2: #{tpu_custom_call.1} parent=1 // pred_check
      _
    $region3: #{tpu_custom_call.1} parent=1 // pred_check_branch
      %22 = sbr.rel (0) target = $region5
    $region4: #{tpu_custom_call.1} parent=1 // pred_region
      %s24 = ssub.s32 256, 256
      %25 = vsyncadd [#allocation3], %s24
      %s26 = sshll.u32 [#allocation2], 4
      %s27 = int_to_ptr.vmem [resolvable:$true] %s26
      %32 = dma.hbm_to_vmem [thread:$0]  %s0, 256, %s27, [#allocation3], 128, 128, 8
    $region5: #{tpu_custom_call.1} parent=1 // pred_fallthru
      _
    // Predicated region
    $region6: #{tpu_custom_call.1} parent=1 // pred_check
      _
    $region7: #{tpu_custom_call.1} parent=1 // pred_check_branch
      %34 = sbr.rel (0) target = $region9
    $region8: #{tpu_custom_call.1} parent=1 // pred_region
      %s36 = ssub.s32 256, 256
      %37 = vsyncadd [#allocation6], %s36
      %s38 = sshll.u32 [#allocation5], 4
      %s39 = int_to_ptr.vmem [resolvable:$true] %s38
      %44 = dma.hbm_to_vmem [thread:$0]  %s1, 256, %s39, [#allocation6], 128, 128, 8
    $region9: #{tpu_custom_call.1} parent=1 // pred_fallthru
      _
    // Predicated region
    $region10: #{tpu_custom_call.1} parent=1 // pred_check
      _
    $region11: #{tpu_custom_call.1} parent=1 // pred_check_branch
      %46 = sbr.rel (0) target = $region13
    $region12: #{tpu_custom_call.1} parent=1 // pred_region
      %s48 = ssub.s32 256, 256
      %49 = vsyncadd [#allocation6], %s48
      %s50 = sshll.u32 [#allocation7], 4
      %s51 = int_to_ptr.vmem [resolvable:$true] %s50
      %56 = dma.hbm_to_vmem [thread:$0]  %s2, 256, %s51, [#allocation6], 128, 128, 8
    $region13: #{tpu_custom_call.1} parent=1 // pred_fallthru
      _
    // Predicated region
    $region14: #{tpu_custom_call.1} parent=1 // pred_check
      _
    $region15: #{tpu_custom_call.1} parent=1 // pred_check_branch
      %58 = sbr.rel (0) target = $region17
    $region16: #{tpu_custom_call.1} parent=1 // pred_region
      %s60 = ssub.s32 512, 512
      %61 = vsyncadd [#allocation9], %s60
      %s62 = sshll.u32 [#allocation8], 4
      %s63 = int_to_ptr.vmem [resolvable:$true] %s62
      %68 = dma.hbm_to_vmem [thread:$0]  %s3, 512, %s63, [#allocation9], 128, 128, 8
    $region17: #{tpu_custom_call.1} parent=1 // pred_fallthru
      _
    // Predicated region
    $region18: #{tpu_custom_call.1} parent=1 // pred_check
      _
    $region19: #{tpu_custom_call.1} parent=1 // pred_check_branch
      %70 = sbr.rel (0) target = $region21
    $region20: #{tpu_custom_call.1} parent=1 // pred_region
      %s72 = ssub.s32 512, 512
      %73 = vsyncadd [#allocation9], %s72
      %s74 = sshll.u32 [#allocation10], 4
      %s75 = int_to_ptr.vmem [resolvable:$true] %s74
      %80 = dma.hbm_to_vmem [thread:$0]  %s4, 512, %s75, [#allocation9], 128, 128, 8
    $region21: #{tpu_custom_call.1} parent=1 // pred_fallthru
      _
    // Predicated region
    $region22: #{tpu_custom_call.1} parent=1 // pred_check
      _
    $region23: #{tpu_custom_call.1} parent=1 // pred_check_branch
      %82 = sbr.rel (0) target = $region25
    $region24: #{tpu_custom_call.1} parent=1 // pred_region
      %s84 = ssub.s32 512, 512
      %85 = vsyncadd [#allocation12], %s84
      %s86 = sshll.u32 [#allocation11], 4
      %s87 = int_to_ptr.vmem [resolvable:$true] %s86
      %92 = dma.hbm_to_vmem [thread:$0]  %s5, 512, %s87, [#allocation12], 128, 128, 8
    $region25: #{tpu_custom_call.1} parent=1 // pred_fallthru
      _
    // Predicated region
    $region26: #{tpu_custom_call.1} parent=1 // pred_check
      _
    $region27: #{tpu_custom_call.1} parent=1 // pred_check_branch
      %94 = sbr.rel (0) target = $region29
    $region28: #{tpu_custom_call.1} parent=1 // pred_region
      %s96 = ssub.s32 512, 512
      %97 = vsyncadd [#allocation12], %s96
      %s98 = sshll.u32 [#allocation13], 4
      %s99 = int_to_ptr.vmem [resolvable:$true] %s98
      %104 = dma.hbm_to_vmem [thread:$0]  %s6, 512, %s99, [#allocation12], 128, 128, 8
    $region29: #{tpu_custom_call.1} parent=1 // pred_fallthru
      _
    // Predicated region
    $region30: #{tpu_custom_call.1} parent=1 // pred_check
      _
    $region31: #{tpu_custom_call.1} parent=1 // pred_check_branch
      %106 = sbr.rel (0) target = $region33
    $region32: #{tpu_custom_call.1} parent=1 // pred_region
      _
    $region33: #{tpu_custom_call.1} parent=1 // pred_fallthru
      _
    // Predicated region
    $region34: #{tpu_custom_call.1} parent=1 // pred_check
      _
    $region35: #{tpu_custom_call.1} parent=1 // pred_check_branch
      %108 = sbr.rel (0) target = $region37
    $region36: #{tpu_custom_call.1} parent=1 // pred_region
      _
    $region37: #{tpu_custom_call.1} parent=1 // pred_fallthru
      _
    // Predicated region
    $region38: #{tpu_custom_call.1} parent=1 // pred_check
      _
    $region39: #{tpu_custom_call.1} parent=1 // pred_check_branch
      %110 = sbr.rel (0) target = $region41
    $region40: #{tpu_custom_call.1} parent=1 // pred_region
      _
    $region41: #{tpu_custom_call.1} parent=1 // pred_fallthru
      _
    // Predicated region
    $region42: #{tpu_custom_call.1} parent=1 // pred_check
      _
    $region43: #{tpu_custom_call.1} parent=1 // pred_check_branch
      %112 = sbr.rel (0) target = $region45
    $region44: #{tpu_custom_call.1} parent=1 // pred_region
      _
    $region45: #{tpu_custom_call.1} parent=1 // pred_fallthru
      _
    // Predicated region
    $region46: #{tpu_custom_call.1} parent=1 // pred_check
      _
    $region47: #{tpu_custom_call.1} parent=1 // pred_check_branch
      %114 = sbr.rel (0) target = $region49
    $region48: #{tpu_custom_call.1} parent=1 // pred_region
      %115 = dma.done [#allocation3], 256
    $region49: #{tpu_custom_call.1} parent=1 // pred_fallthru
      _
    // Predicated region
    $region50: #{tpu_custom_call.1} parent=1 // pred_check
      _
    $region51: #{tpu_custom_call.1} parent=1 // pred_check_branch
      %117 = sbr.rel (0) target = $region53
    $region52: #{tpu_custom_call.1} parent=1 // pred_region
      %118 = dma.done [#allocation6], 256
    $region53: #{tpu_custom_call.1} parent=1 // pred_fallthru
      _
    // Predicated region
    $region54: #{tpu_custom_call.1} parent=1 // pred_check
      _
    $region55: #{tpu_custom_call.1} parent=1 // pred_check_branch
      %120 = sbr.rel (0) target = $region57
    $region56: #{tpu_custom_call.1} parent=1 // pred_region
      %121 = dma.done [#allocation6], 256
    $region57: #{tpu_custom_call.1} parent=1 // pred_fallthru
      _
    // Predicated region
    $region58: #{tpu_custom_call.1} parent=1 // pred_check
      _
    $region59: #{tpu_custom_call.1} parent=1 // pred_check_branch
      %123 = sbr.rel (0) target = $region61
    $region60: #{tpu_custom_call.1} parent=1 // pred_region
      %124 = dma.done [#allocation9], 512
    $region61: #{tpu_custom_call.1} parent=1 // pred_fallthru
      _
    // Predicated region
    $region62: #{tpu_custom_call.1} parent=1 // pred_check
      _
    $region63: #{tpu_custom_call.1} parent=1 // pred_check_branch
      %126 = sbr.rel (0) target = $region65
    $region64: #{tpu_custom_call.1} parent=1 // pred_region
      %127 = dma.done [#allocation9], 512
    $region65: #{tpu_custom_call.1} parent=1 // pred_fallthru
      _
    // Predicated region
    $region66: #{tpu_custom_call.1} parent=1 // pred_check
      _
    $region67: #{tpu_custom_call.1} parent=1 // pred_check_branch
      %129 = sbr.rel (0) target = $region69
    $region68: #{tpu_custom_call.1} parent=1 // pred_region
      %130 = dma.done [#allocation12], 512
    $region69: #{tpu_custom_call.1} parent=1 // pred_fallthru
      _
    // Predicated region
    $region70: #{tpu_custom_call.1} parent=1 // pred_check
      _
    $region71: #{tpu_custom_call.1} parent=1 // pred_check_branch
      %132 = sbr.rel (0) target = $region73
    $region72: #{tpu_custom_call.1} parent=1 // pred_region
      %133 = dma.done [#allocation12], 512
    $region73: #{tpu_custom_call.1} parent=1 // pred_fallthru
      _
    %v134 = vld [vmem:[#allocation2] sm:$0xff]
    %v135 = vld [vmem:[#allocation2 + $0x8] sm:$0xff]
    %v136 = vld [vmem:[#allocation5] sm:$0xff]
    %v137 = vld [vmem:[#allocation5 + $0x8] sm:$0xff]
    %v138 = vld [vmem:[#allocation7] sm:$0xff]
    %v139 = vld [vmem:[#allocation7 + $0x8] sm:$0xff]
    %v140 = vld [vmem:[#allocation8] sm:$0xff]
    %v141 = vld [vmem:[#allocation8 + $0x8] sm:$0xff]
    %v142 = vld [vmem:[#allocation8 + $0x10] sm:$0xff]
    %v143 = vld [vmem:[#allocation8 + $0x18] sm:$0xff]
    %v144 = vld [vmem:[%s7] sm:$0x1]
    %v146 = vlaneseq
    %v147 = vshrl.u32 %v146, 7
    %v148 = vsub.s32 0, %v147
    %v149 = vrot.slane %v144, %v148
    %vm151 = vcmask 261120
    %v153 = vsel %vm151, %v134, 0
    %v156 = vsel %vm151, %v135, 0
    %v159 = vsel %vm151, %v140, 0
    %v162 = vsel %vm151, %v141, 0
    %v165 = vsel %vm151, %v142, 0
    %v168 = vsel %vm151, %v143, 0
    %170 = vmatprep.subr.mxu0 0.0
    %171 = vmatpush1.xpose.msra.mxu0 %v159
    %172 = vmatprep.subr.mxu0 0.0
    %173 = vmatpush1.xpose.msra.mxu0 %v162
    %174 = vmatprep.subr.mxu0 0.0
    %175 = vmatpush1.xpose.msra.mxu0 %v165
    %176 = vmatprep.subr.mxu0 0.0
    %177 = vmatpush1.xpose.msra.mxu0 %v168
    %178 = vmatprep.subr.mxu0 0.0
    %179 = vmatpush1.xpose.msra.mxu0 0.0
    %180 = vmatprep.subr.mxu0 0.0
    %181 = vmatpush1.xpose.msra.mxu0 0.0
    %182 = vmatprep.subr.mxu0 0.0
    %183 = vmatpush1.xpose.msra.mxu0 0.0
    %184 = vmatprep.subr.mxu0 0.0
    %185 = vmatpush1.xpose.msra.mxu0 0.0
    %186 = vmatprep.subr.mxu0 0.0
    %187 = vmatpush1.xpose.msra.mxu0 0.0
    %188 = vmatprep.subr.mxu0 0.0
    %189 = vmatpush1.xpose.msra.mxu0 0.0
    %190 = vmatprep.subr.mxu0 0.0
    %191 = vmatpush1.xpose.msra.mxu0 0.0
    %192 = vmatprep.subr.mxu0 0.0
    %193 = vmatpush1.xpose.msra.mxu0 0.0
    %194 = vmatprep.subr.mxu0 0.0
    %195 = vmatpush1.xpose.msra.mxu0 0.0
    %196 = vmatprep.subr.mxu0 0.0
    %197 = vmatpush1.xpose.msra.mxu0 0.0
    %198 = vmatprep.subr.mxu0 0.0
    %199 = vmatpush1.xpose.msra.mxu0 0.0
    %200 = vmatprep.subr.mxu0 0.0
    %201 = vmatpush1.xpose.msra.mxu0 0.0
    %202 = vmatprep.subr.mxu0 0.0
    %203 = vmatpush1.xpose.msra.mxu0 0.0
    %204 = vmatprep.subr.mxu0 0.0
    %205 = vmatpush1.xpose.msra.mxu0 0.0
    %206 = vmatprep.subr.mxu0 0.0
    %207 = vmatpush1.xpose.msra.mxu0 0.0
    %208 = vmatprep.subr.mxu0 0.0
    %209 = vmatpush1.xpose.msra.mxu0 0.0
    %210 = vmatprep.subr.mxu0 0.0
    %211 = vmatpush1.xpose.msra.mxu0 0.0
    %212 = vmatprep.subr.mxu0 0.0
    %213 = vmatpush1.xpose.msra.mxu0 0.0
    %214 = vmatprep.subr.mxu0 0.0
    %215 = vmatpush1.xpose.msra.mxu0 0.0
    %216 = vmatprep.subr.mxu0 0.0
    %217 = vmatpush1.xpose.msra.mxu0 0.0
    %218 = vmatprep.subr.mxu0 0.0
    %219 = vmatpush1.xpose.msra.mxu0 0.0
    %220 = vmatprep.subr.mxu0 0.0
    %221 = vmatpush1.xpose.msra.mxu0 0.0
    %222 = vmatprep.subr.mxu0 0.0
    %223 = vmatpush1.xpose.msra.mxu0 0.0
    %224 = vmatprep.subr.mxu0 0.0
    %225 = vmatpush1.xpose.msra.mxu0 0.0
    %226 = vmatprep.subr.mxu0 0.0
    %227 = vmatpush1.xpose.msra.mxu0 0.0
    %228 = vmatprep.subr.mxu0 0.0
    %229 = vmatpush1.xpose.msra.mxu0 0.0
    %230 = vmatprep.subr.mxu0 0.0
    %231 = vmatpush1.xpose.msra.mxu0 0.0
    %232 = vmatprep.subr.mxu0 0.0
    %233 = vmatpush1.xpose.msra.mxu0 0.0
    %234 = vmatprep.mubr.f32.mxu0 0.0
    %235 = vmatmul.mubr.f32.gmra.mrb[0].mxu0 %v153
    %v236 = vpop.f32.mrb[0].mxu0
    %v237 = vadd.f32 %v149, %v236
    %v238 = vpop.f32.mrb[0].mxu0
    %239 = vmatprep.mubr.f32.mxu0 0.0
    %240 = vmatmul.mubr.f32.gmra.mrb[0].mxu0 %v156
    %v241 = vpop.f32.mrb[0].mxu0
    %v242 = vadd.f32 %v149, %v241
    %v243 = vpop.f32.mrb[0].mxu0
    %244 = vdwg.mxu0
    %v245 = vmul.f32 %v237, 0.17677669
    %v246 = vmul.f32 %v242, 0.17677669
    %v247 = vld [vmem:[#allocation10] sm:$0xff]
    %v248 = vld [vmem:[#allocation10 + $0x8] sm:$0xff]
    %v249 = vld [vmem:[#allocation10 + $0x10] sm:$0xff]
    %v250 = vld [vmem:[#allocation10 + $0x18] sm:$0xff]
    %v251 = vld [vmem:[%s8] sm:$0x1]
    %v253 = vlaneseq
    %v254 = vshrl.u32 %v253, 7
    %v255 = vsub.s32 0, %v254
    %v256 = vrot.slane %v251, %v255
    %v259 = vsel %vm151, %v136, 0
    %v262 = vsel %vm151, %v137, 0
    %v265 = vsel %vm151, %v247, 0
    %v268 = vsel %vm151, %v248, 0
    %v271 = vsel %vm151, %v249, 0
    %v274 = vsel %vm151, %v250, 0
    %276 = vmatprep.subr.mxu0 0.0
    %277 = vmatpush1.xpose.msra.mxu0 %v265
    %278 = vmatprep.subr.mxu0 0.0
    %279 = vmatpush1.xpose.msra.mxu0 %v268
    %280 = vmatprep.subr.mxu0 0.0
    %281 = vmatpush1.xpose.msra.mxu0 %v271
    %282 = vmatprep.subr.mxu0 0.0
    %283 = vmatpush1.xpose.msra.mxu0 %v274
    %284 = vmatprep.subr.mxu0 0.0
    %285 = vmatpush1.xpose.msra.mxu0 0.0
    %286 = vmatprep.subr.mxu0 0.0
    %287 = vmatpush1.xpose.msra.mxu0 0.0
    %288 = vmatprep.subr.mxu0 0.0
    %289 = vmatpush1.xpose.msra.mxu0 0.0
    %290 = vmatprep.subr.mxu0 0.0
    %291 = vmatpush1.xpose.msra.mxu0 0.0
    %292 = vmatprep.subr.mxu0 0.0
    %293 = vmatpush1.xpose.msra.mxu0 0.0
    %294 = vmatprep.subr.mxu0 0.0
    %295 = vmatpush1.xpose.msra.mxu0 0.0
    %296 = vmatprep.subr.mxu0 0.0
    %297 = vmatpush1.xpose.msra.mxu0 0.0
    %298 = vmatprep.subr.mxu0 0.0
    %299 = vmatpush1.xpose.msra.mxu0 0.0
    %300 = vmatprep.subr.mxu0 0.0
    %301 = vmatpush1.xpose.msra.mxu0 0.0
    %302 = vmatprep.subr.mxu0 0.0
    %303 = vmatpush1.xpose.msra.mxu0 0.0
    %304 = vmatprep.subr.mxu0 0.0
    %305 = vmatpush1.xpose.msra.mxu0 0.0
    %306 = vmatprep.subr.mxu0 0.0
    %307 = vmatpush1.xpose.msra.mxu0 0.0
    %308 = vmatprep.subr.mxu0 0.0
    %309 = vmatpush1.xpose.msra.mxu0 0.0
    %310 = vmatprep.subr.mxu0 0.0
    %311 = vmatpush1.xpose.msra.mxu0 0.0
    %312 = vmatprep.subr.mxu0 0.0
    %313 = vmatpush1.xpose.msra.mxu0 0.0
    %314 = vmatprep.subr.mxu0 0.0
    %315 = vmatpush1.xpose.msra.mxu0 0.0
    %316 = vmatprep.subr.mxu0 0.0
    %317 = vmatpush1.xpose.msra.mxu0 0.0
    %318 = vmatprep.subr.mxu0 0.0
    %319 = vmatpush1.xpose.msra.mxu0 0.0
    %320 = vmatprep.subr.mxu0 0.0
    %321 = vmatpush1.xpose.msra.mxu0 0.0
    %322 = vmatprep.subr.mxu0 0.0
    %323 = vmatpush1.xpose.msra.mxu0 0.0
    %324 = vmatprep.subr.mxu0 0.0
    %325 = vmatpush1.xpose.msra.mxu0 0.0
    %326 = vmatprep.subr.mxu0 0.0
    %327 = vmatpush1.xpose.msra.mxu0 0.0
    %328 = vmatprep.subr.mxu0 0.0
    %329 = vmatpush1.xpose.msra.mxu0 0.0
    %330 = vmatprep.subr.mxu0 0.0
    %331 = vmatpush1.xpose.msra.mxu0 0.0
    %332 = vmatprep.subr.mxu0 0.0
    %333 = vmatpush1.xpose.msra.mxu0 0.0
    %334 = vmatprep.subr.mxu0 0.0
    %335 = vmatpush1.xpose.msra.mxu0 0.0
    %336 = vmatprep.subr.mxu0 0.0
    %337 = vmatpush1.xpose.msra.mxu0 0.0
    %338 = vmatprep.subr.mxu0 0.0
    %339 = vmatpush1.xpose.msra.mxu0 0.0
    %340 = vmatprep.mubr.f32.mxu0 0.0
    %341 = vmatmul.mubr.f32.gmra.mrb[0].mxu0 %v259
    %v342 = vpop.f32.mrb[0].mxu0
    %v343 = vadd.f32 %v256, %v342
    %v344 = vpop.f32.mrb[0].mxu0
    %345 = vmatprep.mubr.f32.mxu0 0.0
    %346 = vmatmul.mubr.f32.gmra.mrb[0].mxu0 %v262
    %v347 = vpop.f32.mrb[0].mxu0
    %v348 = vadd.f32 %v256, %v347
    %v349 = vpop.f32.mrb[0].mxu0
    %350 = vdwg.mxu0
    %v351 = vld [vmem:[#allocation11] sm:$0xff]
    %v352 = vld [vmem:[#allocation11 + $0x8] sm:$0xff]
    %v353 = vld [vmem:[#allocation11 + $0x10] sm:$0xff]
    %v354 = vld [vmem:[#allocation11 + $0x18] sm:$0xff]
    %v355 = vld [vmem:[%s9] sm:$0x1]
    %v357 = vlaneseq
    %v358 = vshrl.u32 %v357, 7
    %v359 = vsub.s32 0, %v358
    %v360 = vrot.slane %v355, %v359
    %v363 = vsel %vm151, %v138, 0
    %v366 = vsel %vm151, %v139, 0
    %v369 = vsel %vm151, %v351, 0
    %v372 = vsel %vm151, %v352, 0
    %v375 = vsel %vm151, %v353, 0
    %v378 = vsel %vm151, %v354, 0
    %380 = vmatprep.subr.mxu0 0.0
    %381 = vmatpush1.xpose.msra.mxu0 %v369
    %382 = vmatprep.subr.mxu0 0.0
    %383 = vmatpush1.xpose.msra.mxu0 %v372
    %384 = vmatprep.subr.mxu0 0.0
    %385 = vmatpush1.xpose.msra.mxu0 %v375
    %386 = vmatprep.subr.mxu0 0.0
    %387 = vmatpush1.xpose.msra.mxu0 %v378
    %388 = vmatprep.subr.mxu0 0.0
    %389 = vmatpush1.xpose.msra.mxu0 0.0
    %390 = vmatprep.subr.mxu0 0.0
    %391 = vmatpush1.xpose.msra.mxu0 0.0
    %392 = vmatprep.subr.mxu0 0.0
    %393 = vmatpush1.xpose.msra.mxu0 0.0
    %394 = vmatprep.subr.mxu0 0.0
    %395 = vmatpush1.xpose.msra.mxu0 0.0
    %396 = vmatprep.subr.mxu0 0.0
    %397 = vmatpush1.xpose.msra.mxu0 0.0
    %398 = vmatprep.subr.mxu0 0.0
    %399 = vmatpush1.xpose.msra.mxu0 0.0
    %400 = vmatprep.subr.mxu0 0.0
    %401 = vmatpush1.xpose.msra.mxu0 0.0
    %402 = vmatprep.subr.mxu0 0.0
    %403 = vmatpush1.xpose.msra.mxu0 0.0
    %404 = vmatprep.subr.mxu0 0.0
    %405 = vmatpush1.xpose.msra.mxu0 0.0
    %406 = vmatprep.subr.mxu0 0.0
    %407 = vmatpush1.xpose.msra.mxu0 0.0
    %408 = vmatprep.subr.mxu0 0.0
    %409 = vmatpush1.xpose.msra.mxu0 0.0
    %410 = vmatprep.subr.mxu0 0.0
    %411 = vmatpush1.xpose.msra.mxu0 0.0
    %412 = vmatprep.subr.mxu0 0.0
    %413 = vmatpush1.xpose.msra.mxu0 0.0
    %414 = vmatprep.subr.mxu0 0.0
    %415 = vmatpush1.xpose.msra.mxu0 0.0
    %416 = vmatprep.subr.mxu0 0.0
    %417 = vmatpush1.xpose.msra.mxu0 0.0
    %418 = vmatprep.subr.mxu0 0.0
    %419 = vmatpush1.xpose.msra.mxu0 0.0
    %420 = vmatprep.subr.mxu0 0.0
    %421 = vmatpush1.xpose.msra.mxu0 0.0
    %422 = vmatprep.subr.mxu0 0.0
    %423 = vmatpush1.xpose.msra.mxu0 0.0
    %424 = vmatprep.subr.mxu0 0.0
    %425 = vmatpush1.xpose.msra.mxu0 0.0
    %426 = vmatprep.subr.mxu0 0.0
    %427 = vmatpush1.xpose.msra.mxu0 0.0
    %428 = vmatprep.subr.mxu0 0.0
    %429 = vmatpush1.xpose.msra.mxu0 0.0
    %430 = vmatprep.subr.mxu0 0.0
    %431 = vmatpush1.xpose.msra.mxu0 0.0
    %432 = vmatprep.subr.mxu0 0.0
    %433 = vmatpush1.xpose.msra.mxu0 0.0
    %434 = vmatprep.subr.mxu0 0.0
    %435 = vmatpush1.xpose.msra.mxu0 0.0
    %436 = vmatprep.subr.mxu0 0.0
    %437 = vmatpush1.xpose.msra.mxu0 0.0
    %438 = vmatprep.subr.mxu0 0.0
    %439 = vmatpush1.xpose.msra.mxu0 0.0
    %440 = vmatprep.subr.mxu0 0.0
    %441 = vmatpush1.xpose.msra.mxu0 0.0
    %442 = vmatprep.subr.mxu0 0.0
    %443 = vmatpush1.xpose.msra.mxu0 0.0
    %444 = vmatprep.mubr.f32.mxu0 0.0
    %445 = vmatmul.mubr.f32.gmra.mrb[0].mxu0 %v363
    %v446 = vpop.f32.mrb[0].mxu0
    %v447 = vadd.f32 %v360, %v446
    %v448 = vpop.f32.mrb[0].mxu0
    %449 = vmatprep.mubr.f32.mxu0 0.0
    %450 = vmatmul.mubr.f32.gmra.mrb[0].mxu0 %v366
    %v451 = vpop.f32.mrb[0].mxu0
    %v452 = vadd.f32 %v360, %v451
    %v453 = vpop.f32.mrb[0].mxu0
    %454 = vdwg.mxu0
    %vm455 = vcmask 64512
    %v457 = vsel %vm455, %v245, 0
    %v460 = vsel %vm455, %v343, 0
    %462 = vmatprep.subr.mxu0 0.0
    %463 = vmatpush1.xpose.msra.mxu0 %v460
    %464 = vmatprep.subr.mxu0 0.0
    %465 = vmatpush1.xpose.msra.mxu0 0.0
    %466 = vmatprep.subr.mxu0 0.0
    %467 = vmatpush1.xpose.msra.mxu0 0.0
    %468 = vmatprep.subr.mxu0 0.0
    %469 = vmatpush1.xpose.msra.mxu0 0.0
    %470 = vmatprep.subr.mxu0 0.0
    %471 = vmatpush1.xpose.msra.mxu0 0.0
    %472 = vmatprep.subr.mxu0 0.0
    %473 = vmatpush1.xpose.msra.mxu0 0.0
    %474 = vmatprep.subr.mxu0 0.0
    %475 = vmatpush1.xpose.msra.mxu0 0.0
    %476 = vmatprep.subr.mxu0 0.0
    %477 = vmatpush1.xpose.msra.mxu0 0.0
    %478 = vmatprep.subr.mxu0 0.0
    %479 = vmatpush1.xpose.msra.mxu0 0.0
    %480 = vmatprep.subr.mxu0 0.0
    %481 = vmatpush1.xpose.msra.mxu0 0.0
    %482 = vmatprep.subr.mxu0 0.0
    %483 = vmatpush1.xpose.msra.mxu0 0.0
    %484 = vmatprep.subr.mxu0 0.0
    %485 = vmatpush1.xpose.msra.mxu0 0.0
    %486 = vmatprep.subr.mxu0 0.0
    %487 = vmatpush1.xpose.msra.mxu0 0.0
    %488 = vmatprep.subr.mxu0 0.0
    %489 = vmatpush1.xpose.msra.mxu0 0.0
    %490 = vmatprep.subr.mxu0 0.0
    %491 = vmatpush1.xpose.msra.mxu0 0.0
    %492 = vmatprep.subr.mxu0 0.0
    %493 = vmatpush1.xpose.msra.mxu0 0.0
    %494 = vmatprep.subr.mxu0 0.0
    %495 = vmatpush1.xpose.msra.mxu0 0.0
    %496 = vmatprep.subr.mxu0 0.0
    %497 = vmatpush1.xpose.msra.mxu0 0.0
    %498 = vmatprep.subr.mxu0 0.0
    %499 = vmatpush1.xpose.msra.mxu0 0.0
    %500 = vmatprep.subr.mxu0 0.0
    %501 = vmatpush1.xpose.msra.mxu0 0.0
    %502 = vmatprep.subr.mxu0 0.0
    %503 = vmatpush1.xpose.msra.mxu0 0.0
    %504 = vmatprep.subr.mxu0 0.0
    %505 = vmatpush1.xpose.msra.mxu0 0.0
    %506 = vmatprep.subr.mxu0 0.0
    %507 = vmatpush1.xpose.msra.mxu0 0.0
    %508 = vmatprep.subr.mxu0 0.0
    %509 = vmatpush1.xpose.msra.mxu0 0.0
    %510 = vmatprep.subr.mxu0 0.0
    %511 = vmatpush1.xpose.msra.mxu0 0.0
    %512 = vmatprep.subr.mxu0 0.0
    %513 = vmatpush1.xpose.msra.mxu0 0.0
    %514 = vmatprep.subr.mxu0 0.0
    %515 = vmatpush1.xpose.msra.mxu0 0.0
    %516 = vmatprep.subr.mxu0 0.0
    %517 = vmatpush1.xpose.msra.mxu0 0.0
    %518 = vmatprep.subr.mxu0 0.0
    %519 = vmatpush1.xpose.msra.mxu0 0.0
    %520 = vmatprep.subr.mxu0 0.0
    %521 = vmatpush1.xpose.msra.mxu0 0.0
    %522 = vmatprep.subr.mxu0 0.0
    %523 = vmatpush1.xpose.msra.mxu0 0.0
    %524 = vmatprep.subr.mxu0 0.0
    %525 = vmatpush1.xpose.msra.mxu0 0.0
    %526 = vmatprep.mubr.f32.mxu0 0.0
    %527 = vmatmul.mubr.f32.gmra.mrb[0].mxu0 %v457
    %v528 = vpop.f32.mrb[0].mxu0
    %v529 = vadd.f32 0.0, %v528
    %v530 = vpop.f32.mrb[0].mxu0
    %531 = vdwg.mxu0
    %532 = vrot.lane.b32.xlu0 %v245, 120
    %v533 = vpop.permute.xlu0 %532
    %534 = vrot.lane.b32.xlu0 %v343, 120
    %v535 = vpop.permute.xlu0 %534
    %v536 = vsel %vm455, %v533, 0
    %v538 = vsel %vm455, %v535, 0
    %540 = vmatprep.subr.mxu0 0.0
    %541 = vmatpush1.xpose.msra.mxu0 %v538
    %542 = vmatprep.subr.mxu0 0.0
    %543 = vmatpush1.xpose.msra.mxu0 0.0
    %544 = vmatprep.subr.mxu0 0.0
    %545 = vmatpush1.xpose.msra.mxu0 0.0
    %546 = vmatprep.subr.mxu0 0.0
    %547 = vmatpush1.xpose.msra.mxu0 0.0
    %548 = vmatprep.subr.mxu0 0.0
    %549 = vmatpush1.xpose.msra.mxu0 0.0
    %550 = vmatprep.subr.mxu0 0.0
    %551 = vmatpush1.xpose.msra.mxu0 0.0
    %552 = vmatprep.subr.mxu0 0.0
    %553 = vmatpush1.xpose.msra.mxu0 0.0
    %554 = vmatprep.subr.mxu0 0.0
    %555 = vmatpush1.xpose.msra.mxu0 0.0
    %556 = vmatprep.subr.mxu0 0.0
    %557 = vmatpush1.xpose.msra.mxu0 0.0
    %558 = vmatprep.subr.mxu0 0.0
    %559 = vmatpush1.xpose.msra.mxu0 0.0
    %560 = vmatprep.subr.mxu0 0.0
    %561 = vmatpush1.xpose.msra.mxu0 0.0
    %562 = vmatprep.subr.mxu0 0.0
    %563 = vmatpush1.xpose.msra.mxu0 0.0
    %564 = vmatprep.subr.mxu0 0.0
    %565 = vmatpush1.xpose.msra.mxu0 0.0
    %566 = vmatprep.subr.mxu0 0.0
    %567 = vmatpush1.xpose.msra.mxu0 0.0
    %568 = vmatprep.subr.mxu0 0.0
    %569 = vmatpush1.xpose.msra.mxu0 0.0
    %570 = vmatprep.subr.mxu0 0.0
    %571 = vmatpush1.xpose.msra.mxu0 0.0
    %572 = vmatprep.subr.mxu0 0.0
    %573 = vmatpush1.xpose.msra.mxu0 0.0
    %574 = vmatprep.subr.mxu0 0.0
    %575 = vmatpush1.xpose.msra.mxu0 0.0
    %576 = vmatprep.subr.mxu0 0.0
    %577 = vmatpush1.xpose.msra.mxu0 0.0
    %578 = vmatprep.subr.mxu0 0.0
    %579 = vmatpush1.xpose.msra.mxu0 0.0
    %580 = vmatprep.subr.mxu0 0.0
    %581 = vmatpush1.xpose.msra.mxu0 0.0
    %582 = vmatprep.subr.mxu0 0.0
    %583 = vmatpush1.xpose.msra.mxu0 0.0
    %584 = vmatprep.subr.mxu0 0.0
    %585 = vmatpush1.xpose.msra.mxu0 0.0
    %586 = vmatprep.subr.mxu0 0.0
    %587 = vmatpush1.xpose.msra.mxu0 0.0
    %588 = vmatprep.subr.mxu0 0.0
    %589 = vmatpush1.xpose.msra.mxu0 0.0
    %590 = vmatprep.subr.mxu0 0.0
    %591 = vmatpush1.xpose.msra.mxu0 0.0
    %592 = vmatprep.subr.mxu0 0.0
    %593 = vmatpush1.xpose.msra.mxu0 0.0
    %594 = vmatprep.subr.mxu0 0.0
    %595 = vmatpush1.xpose.msra.mxu0 0.0
    %596 = vmatprep.subr.mxu0 0.0
    %597 = vmatpush1.xpose.msra.mxu0 0.0
    %598 = vmatprep.subr.mxu0 0.0
    %599 = vmatpush1.xpose.msra.mxu0 0.0
    %600 = vmatprep.subr.mxu0 0.0
    %601 = vmatpush1.xpose.msra.mxu0 0.0
    %602 = vmatprep.subr.mxu0 0.0
    %603 = vmatpush1.xpose.msra.mxu0 0.0
    %604 = vmatprep.mubr.f32.mxu0 0.0
    %605 = vmatmul.mubr.f32.gmra.mrb[0].mxu0 %v536
    %v606 = vpop.f32.mrb[0].mxu0
    %v607 = vadd.f32 0.0, %v606
    %v608 = vpop.f32.mrb[0].mxu0
    %609 = vdwg.mxu0
    %610 = vrot.lane.b32.xlu0 %v245, 112
    %v611 = vpop.permute.xlu0 %610
    %612 = vrot.lane.b32.xlu0 %v343, 112
    %v613 = vpop.permute.xlu0 %612
    %v614 = vsel %vm455, %v611, 0
    %v616 = vsel %vm455, %v613, 0
    %618 = vmatprep.subr.mxu0 0.0
    %619 = vmatpush1.xpose.msra.mxu0 %v616
    %620 = vmatprep.subr.mxu0 0.0
    %621 = vmatpush1.xpose.msra.mxu0 0.0
    %622 = vmatprep.subr.mxu0 0.0
    %623 = vmatpush1.xpose.msra.mxu0 0.0
    %624 = vmatprep.subr.mxu0 0.0
    %625 = vmatpush1.xpose.msra.mxu0 0.0
    %626 = vmatprep.subr.mxu0 0.0
    %627 = vmatpush1.xpose.msra.mxu0 0.0
    %628 = vmatprep.subr.mxu0 0.0
    %629 = vmatpush1.xpose.msra.mxu0 0.0
    %630 = vmatprep.subr.mxu0 0.0
    %631 = vmatpush1.xpose.msra.mxu0 0.0
    %632 = vmatprep.subr.mxu0 0.0
    %633 = vmatpush1.xpose.msra.mxu0 0.0
    %634 = vmatprep.subr.mxu0 0.0
    %635 = vmatpush1.xpose.msra.mxu0 0.0
    %636 = vmatprep.subr.mxu0 0.0
    %637 = vmatpush1.xpose.msra.mxu0 0.0
    %638 = vmatprep.subr.mxu0 0.0
    %639 = vmatpush1.xpose.msra.mxu0 0.0
    %640 = vmatprep.subr.mxu0 0.0
    %641 = vmatpush1.xpose.msra.mxu0 0.0
    %642 = vmatprep.subr.mxu0 0.0
    %643 = vmatpush1.xpose.msra.mxu0 0.0
    %644 = vmatprep.subr.mxu0 0.0
    %645 = vmatpush1.xpose.msra.mxu0 0.0
    %646 = vmatprep.subr.mxu0 0.0
    %647 = vmatpush1.xpose.msra.mxu0 0.0
    %648 = vmatprep.subr.mxu0 0.0
    %649 = vmatpush1.xpose.msra.mxu0 0.0
    %650 = vmatprep.subr.mxu0 0.0
    %651 = vmatpush1.xpose.msra.mxu0 0.0
    %652 = vmatprep.subr.mxu0 0.0
    %653 = vmatpush1.xpose.msra.mxu0 0.0
    %654 = vmatprep.subr.mxu0 0.0
    %655 = vmatpush1.xpose.msra.mxu0 0.0
    %656 = vmatprep.subr.mxu0 0.0
    %657 = vmatpush1.xpose.msra.mxu0 0.0
    %658 = vmatprep.subr.mxu0 0.0
    %659 = vmatpush1.xpose.msra.mxu0 0.0
    %660 = vmatprep.subr.mxu0 0.0
    %661 = vmatpush1.xpose.msra.mxu0 0.0
    %662 = vmatprep.subr.mxu0 0.0
    %663 = vmatpush1.xpose.msra.mxu0 0.0
    %664 = vmatprep.subr.mxu0 0.0
    %665 = vmatpush1.xpose.msra.mxu0 0.0
    %666 = vmatprep.subr.mxu0 0.0
    %667 = vmatpush1.xpose.msra.mxu0 0.0
    %668 = vmatprep.subr.mxu0 0.0
    %669 = vmatpush1.xpose.msra.mxu0 0.0
    %670 = vmatprep.subr.mxu0 0.0
    %671 = vmatpush1.xpose.msra.mxu0 0.0
    %672 = vmatprep.subr.mxu0 0.0
    %673 = vmatpush1.xpose.msra.mxu0 0.0
    %674 = vmatprep.subr.mxu0 0.0
    %675 = vmatpush1.xpose.msra.mxu0 0.0
    %676 = vmatprep.subr.mxu0 0.0
    %677 = vmatpush1.xpose.msra.mxu0 0.0
    %678 = vmatprep.subr.mxu0 0.0
    %679 = vmatpush1.xpose.msra.mxu0 0.0
    %680 = vmatprep.subr.mxu0 0.0
    %681 = vmatpush1.xpose.msra.mxu0 0.0
    %682 = vmatprep.mubr.f32.mxu0 0.0
    %683 = vmatmul.mubr.f32.gmra.mrb[0].mxu0 %v614
    %v684 = vpop.f32.mrb[0].mxu0
    %v685 = vadd.f32 0.0, %v684
    %v686 = vpop.f32.mrb[0].mxu0
    %687 = vdwg.mxu0
    %688 = vrot.lane.b32.xlu0 %v245, 104
    %v689 = vpop.permute.xlu0 %688
    %690 = vrot.lane.b32.xlu0 %v343, 104
    %v691 = vpop.permute.xlu0 %690
    %v692 = vsel %vm455, %v689, 0
    %v694 = vsel %vm455, %v691, 0
    %696 = vmatprep.subr.mxu0 0.0
    %697 = vmatpush1.xpose.msra.mxu0 %v694
    %698 = vmatprep.subr.mxu0 0.0
    %699 = vmatpush1.xpose.msra.mxu0 0.0
    %700 = vmatprep.subr.mxu0 0.0
    %701 = vmatpush1.xpose.msra.mxu0 0.0
    %702 = vmatprep.subr.mxu0 0.0
    %703 = vmatpush1.xpose.msra.mxu0 0.0
    %704 = vmatprep.subr.mxu0 0.0
    %705 = vmatpush1.xpose.msra.mxu0 0.0
    %706 = vmatprep.subr.mxu0 0.0
    %707 = vmatpush1.xpose.msra.mxu0 0.0
    %708 = vmatprep.subr.mxu0 0.0
    %709 = vmatpush1.xpose.msra.mxu0 0.0
    %710 = vmatprep.subr.mxu0 0.0
    %711 = vmatpush1.xpose.msra.mxu0 0.0
    %712 = vmatprep.subr.mxu0 0.0
    %713 = vmatpush1.xpose.msra.mxu0 0.0
    %714 = vmatprep.subr.mxu0 0.0
    %715 = vmatpush1.xpose.msra.mxu0 0.0
    %716 = vmatprep.subr.mxu0 0.0
    %717 = vmatpush1.xpose.msra.mxu0 0.0
    %718 = vmatprep.subr.mxu0 0.0
    %719 = vmatpush1.xpose.msra.mxu0 0.0
    %720 = vmatprep.subr.mxu0 0.0
    %721 = vmatpush1.xpose.msra.mxu0 0.0
    %722 = vmatprep.subr.mxu0 0.0
    %723 = vmatpush1.xpose.msra.mxu0 0.0
    %724 = vmatprep.subr.mxu0 0.0
    %725 = vmatpush1.xpose.msra.mxu0 0.0
    %726 = vmatprep.subr.mxu0 0.0
    %727 = vmatpush1.xpose.msra.mxu0 0.0
    %728 = vmatprep.subr.mxu0 0.0
    %729 = vmatpush1.xpose.msra.mxu0 0.0
    %730 = vmatprep.subr.mxu0 0.0
    %731 = vmatpush1.xpose.msra.mxu0 0.0
    %732 = vmatprep.subr.mxu0 0.0
    %733 = vmatpush1.xpose.msra.mxu0 0.0
    %734 = vmatprep.subr.mxu0 0.0
    %735 = vmatpush1.xpose.msra.mxu0 0.0
    %736 = vmatprep.subr.mxu0 0.0
    %737 = vmatpush1.xpose.msra.mxu0 0.0
    %738 = vmatprep.subr.mxu0 0.0
    %739 = vmatpush1.xpose.msra.mxu0 0.0
    %740 = vmatprep.subr.mxu0 0.0
    %741 = vmatpush1.xpose.msra.mxu0 0.0
    %742 = vmatprep.subr.mxu0 0.0
    %743 = vmatpush1.xpose.msra.mxu0 0.0
    %744 = vmatprep.subr.mxu0 0.0
    %745 = vmatpush1.xpose.msra.mxu0 0.0
    %746 = vmatprep.subr.mxu0 0.0
    %747 = vmatpush1.xpose.msra.mxu0 0.0
    %748 = vmatprep.subr.mxu0 0.0
    %749 = vmatpush1.xpose.msra.mxu0 0.0
    %750 = vmatprep.subr.mxu0 0.0
    %751 = vmatpush1.xpose.msra.mxu0 0.0
    %752 = vmatprep.subr.mxu0 0.0
    %753 = vmatpush1.xpose.msra.mxu0 0.0
    %754 = vmatprep.subr.mxu0 0.0
    %755 = vmatpush1.xpose.msra.mxu0 0.0
    %756 = vmatprep.subr.mxu0 0.0
    %757 = vmatpush1.xpose.msra.mxu0 0.0
    %758 = vmatprep.subr.mxu0 0.0
    %759 = vmatpush1.xpose.msra.mxu0 0.0
    %760 = vmatprep.mubr.f32.mxu0 0.0
    %761 = vmatmul.mubr.f32.gmra.mrb[0].mxu0 %v692
    %v762 = vpop.f32.mrb[0].mxu0
    %v763 = vadd.f32 0.0, %v762
    %v764 = vpop.f32.mrb[0].mxu0
    %765 = vdwg.mxu0
    %v767 = vsel %vm455, %v246, 0
    %v770 = vsel %vm455, %v348, 0
    %772 = vmatprep.subr.mxu0 0.0
    %773 = vmatpush1.xpose.msra.mxu0 %v770
    %774 = vmatprep.subr.mxu0 0.0
    %775 = vmatpush1.xpose.msra.mxu0 0.0
    %776 = vmatprep.subr.mxu0 0.0
    %777 = vmatpush1.xpose.msra.mxu0 0.0
    %778 = vmatprep.subr.mxu0 0.0
    %779 = vmatpush1.xpose.msra.mxu0 0.0
    %780 = vmatprep.subr.mxu0 0.0
    %781 = vmatpush1.xpose.msra.mxu0 0.0
    %782 = vmatprep.subr.mxu0 0.0
    %783 = vmatpush1.xpose.msra.mxu0 0.0
    %784 = vmatprep.subr.mxu0 0.0
    %785 = vmatpush1.xpose.msra.mxu0 0.0
    %786 = vmatprep.subr.mxu0 0.0
    %787 = vmatpush1.xpose.msra.mxu0 0.0
    %788 = vmatprep.subr.mxu0 0.0
    %789 = vmatpush1.xpose.msra.mxu0 0.0
    %790 = vmatprep.subr.mxu0 0.0
    %791 = vmatpush1.xpose.msra.mxu0 0.0
    %792 = vmatprep.subr.mxu0 0.0
    %793 = vmatpush1.xpose.msra.mxu0 0.0
    %794 = vmatprep.subr.mxu0 0.0
    %795 = vmatpush1.xpose.msra.mxu0 0.0
    %796 = vmatprep.subr.mxu0 0.0
    %797 = vmatpush1.xpose.msra.mxu0 0.0
    %798 = vmatprep.subr.mxu0 0.0
    %799 = vmatpush1.xpose.msra.mxu0 0.0
    %800 = vmatprep.subr.mxu0 0.0
    %801 = vmatpush1.xpose.msra.mxu0 0.0
    %802 = vmatprep.subr.mxu0 0.0
    %803 = vmatpush1.xpose.msra.mxu0 0.0
    %804 = vmatprep.subr.mxu0 0.0
    %805 = vmatpush1.xpose.msra.mxu0 0.0
    %806 = vmatprep.subr.mxu0 0.0
    %807 = vmatpush1.xpose.msra.mxu0 0.0
    %808 = vmatprep.subr.mxu0 0.0
    %809 = vmatpush1.xpose.msra.mxu0 0.0
    %810 = vmatprep.subr.mxu0 0.0
    %811 = vmatpush1.xpose.msra.mxu0 0.0
    %812 = vmatprep.subr.mxu0 0.0
    %813 = vmatpush1.xpose.msra.mxu0 0.0
    %814 = vmatprep.subr.mxu0 0.0
    %815 = vmatpush1.xpose.msra.mxu0 0.0
    %816 = vmatprep.subr.mxu0 0.0
    %817 = vmatpush1.xpose.msra.mxu0 0.0
    %818 = vmatprep.subr.mxu0 0.0
    %819 = vmatpush1.xpose.msra.mxu0 0.0
    %820 = vmatprep.subr.mxu0 0.0
    %821 = vmatpush1.xpose.msra.mxu0 0.0
    %822 = vmatprep.subr.mxu0 0.0
    %823 = vmatpush1.xpose.msra.mxu0 0.0
    %824 = vmatprep.subr.mxu0 0.0
    %825 = vmatpush1.xpose.msra.mxu0 0.0
    %826 = vmatprep.subr.mxu0 0.0
    %827 = vmatpush1.xpose.msra.mxu0 0.0
    %828 = vmatprep.subr.mxu0 0.0
    %829 = vmatpush1.xpose.msra.mxu0 0.0
    %830 = vmatprep.subr.mxu0 0.0
    %831 = vmatpush1.xpose.msra.mxu0 0.0
    %832 = vmatprep.subr.mxu0 0.0
    %833 = vmatpush1.xpose.msra.mxu0 0.0
    %834 = vmatprep.subr.mxu0 0.0
    %835 = vmatpush1.xpose.msra.mxu0 0.0
    %836 = vmatprep.mubr.f32.mxu0 0.0
    %837 = vmatmul.mubr.f32.gmra.mrb[0].mxu0 %v767
    %v838 = vpop.f32.mrb[0].mxu0
    %v839 = vadd.f32 0.0, %v838
    %v840 = vpop.f32.mrb[0].mxu0
    %841 = vdwg.mxu0
    %842 = vrot.lane.b32.xlu0 %v246, 120
    %v843 = vpop.permute.xlu0 %842
    %844 = vrot.lane.b32.xlu0 %v348, 120
    %v845 = vpop.permute.xlu0 %844
    %v846 = vsel %vm455, %v843, 0
    %v848 = vsel %vm455, %v845, 0
    %850 = vmatprep.subr.mxu0 0.0
    %851 = vmatpush1.xpose.msra.mxu0 %v848
    %852 = vmatprep.subr.mxu0 0.0
    %853 = vmatpush1.xpose.msra.mxu0 0.0
    %854 = vmatprep.subr.mxu0 0.0
    %855 = vmatpush1.xpose.msra.mxu0 0.0
    %856 = vmatprep.subr.mxu0 0.0
    %857 = vmatpush1.xpose.msra.mxu0 0.0
    %858 = vmatprep.subr.mxu0 0.0
    %859 = vmatpush1.xpose.msra.mxu0 0.0
    %860 = vmatprep.subr.mxu0 0.0
    %861 = vmatpush1.xpose.msra.mxu0 0.0
    %862 = vmatprep.subr.mxu0 0.0
    %863 = vmatpush1.xpose.msra.mxu0 0.0
    %864 = vmatprep.subr.mxu0 0.0
    %865 = vmatpush1.xpose.msra.mxu0 0.0
    %866 = vmatprep.subr.mxu0 0.0
    %867 = vmatpush1.xpose.msra.mxu0 0.0
    %868 = vmatprep.subr.mxu0 0.0
    %869 = vmatpush1.xpose.msra.mxu0 0.0
    %870 = vmatprep.subr.mxu0 0.0
    %871 = vmatpush1.xpose.msra.mxu0 0.0
    %872 = vmatprep.subr.mxu0 0.0
    %873 = vmatpush1.xpose.msra.mxu0 0.0
    %874 = vmatprep.subr.mxu0 0.0
    %875 = vmatpush1.xpose.msra.mxu0 0.0
    %876 = vmatprep.subr.mxu0 0.0
    %877 = vmatpush1.xpose.msra.mxu0 0.0
    %878 = vmatprep.subr.mxu0 0.0
    %879 = vmatpush1.xpose.msra.mxu0 0.0
    %880 = vmatprep.subr.mxu0 0.0
    %881 = vmatpush1.xpose.msra.mxu0 0.0
    %882 = vmatprep.subr.mxu0 0.0
    %883 = vmatpush1.xpose.msra.mxu0 0.0
    %884 = vmatprep.subr.mxu0 0.0
    %885 = vmatpush1.xpose.msra.mxu0 0.0
    %886 = vmatprep.subr.mxu0 0.0
    %887 = vmatpush1.xpose.msra.mxu0 0.0
    %888 = vmatprep.subr.mxu0 0.0
    %889 = vmatpush1.xpose.msra.mxu0 0.0
    %890 = vmatprep.subr.mxu0 0.0
    %891 = vmatpush1.xpose.msra.mxu0 0.0
    %892 = vmatprep.subr.mxu0 0.0
    %893 = vmatpush1.xpose.msra.mxu0 0.0
    %894 = vmatprep.subr.mxu0 0.0
    %895 = vmatpush1.xpose.msra.mxu0 0.0
    %896 = vmatprep.subr.mxu0 0.0
    %897 = vmatpush1.xpose.msra.mxu0 0.0
    %898 = vmatprep.subr.mxu0 0.0
    %899 = vmatpush1.xpose.msra.mxu0 0.0
    %900 = vmatprep.subr.mxu0 0.0
    %901 = vmatpush1.xpose.msra.mxu0 0.0
    %902 = vmatprep.subr.mxu0 0.0
    %903 = vmatpush1.xpose.msra.mxu0 0.0
    %904 = vmatprep.subr.mxu0 0.0
    %905 = vmatpush1.xpose.msra.mxu0 0.0
    %906 = vmatprep.subr.mxu0 0.0
    %907 = vmatpush1.xpose.msra.mxu0 0.0
    %908 = vmatprep.subr.mxu0 0.0
    %909 = vmatpush1.xpose.msra.mxu0 0.0
    %910 = vmatprep.subr.mxu0 0.0
    %911 = vmatpush1.xpose.msra.mxu0 0.0
    %912 = vmatprep.subr.mxu0 0.0
    %913 = vmatpush1.xpose.msra.mxu0 0.0
    %914 = vmatprep.mubr.f32.mxu0 0.0
    %915 = vmatmul.mubr.f32.gmra.mrb[0].mxu0 %v846
    %v916 = vpop.f32.mrb[0].mxu0
    %v917 = vadd.f32 0.0, %v916
    %v918 = vpop.f32.mrb[0].mxu0
    %919 = vdwg.mxu0
    %920 = vrot.lane.b32.xlu0 %v246, 112
    %v921 = vpop.permute.xlu0 %920
    %922 = vrot.lane.b32.xlu0 %v348, 112
    %v923 = vpop.permute.xlu0 %922
    %v924 = vsel %vm455, %v921, 0
    %v926 = vsel %vm455, %v923, 0
    %928 = vmatprep.subr.mxu0 0.0
    %929 = vmatpush1.xpose.msra.mxu0 %v926
    %930 = vmatprep.subr.mxu0 0.0
    %931 = vmatpush1.xpose.msra.mxu0 0.0
    %932 = vmatprep.subr.mxu0 0.0
    %933 = vmatpush1.xpose.msra.mxu0 0.0
    %934 = vmatprep.subr.mxu0 0.0
    %935 = vmatpush1.xpose.msra.mxu0 0.0
    %936 = vmatprep.subr.mxu0 0.0
    %937 = vmatpush1.xpose.msra.mxu0 0.0
    %938 = vmatprep.subr.mxu0 0.0
    %939 = vmatpush1.xpose.msra.mxu0 0.0
    %940 = vmatprep.subr.mxu0 0.0
    %941 = vmatpush1.xpose.msra.mxu0 0.0
    %942 = vmatprep.subr.mxu0 0.0
    %943 = vmatpush1.xpose.msra.mxu0 0.0
    %944 = vmatprep.subr.mxu0 0.0
    %945 = vmatpush1.xpose.msra.mxu0 0.0
    %946 = vmatprep.subr.mxu0 0.0
    %947 = vmatpush1.xpose.msra.mxu0 0.0
    %948 = vmatprep.subr.mxu0 0.0
    %949 = vmatpush1.xpose.msra.mxu0 0.0
    %950 = vmatprep.subr.mxu0 0.0
    %951 = vmatpush1.xpose.msra.mxu0 0.0
    %952 = vmatprep.subr.mxu0 0.0
    %953 = vmatpush1.xpose.msra.mxu0 0.0
    %954 = vmatprep.subr.mxu0 0.0
    %955 = vmatpush1.xpose.msra.mxu0 0.0
    %956 = vmatprep.subr.mxu0 0.0
    %957 = vmatpush1.xpose.msra.mxu0 0.0
    %958 = vmatprep.subr.mxu0 0.0
    %959 = vmatpush1.xpose.msra.mxu0 0.0
    %960 = vmatprep.subr.mxu0 0.0
    %961 = vmatpush1.xpose.msra.mxu0 0.0
    %962 = vmatprep.subr.mxu0 0.0
    %963 = vmatpush1.xpose.msra.mxu0 0.0
    %964 = vmatprep.subr.mxu0 0.0
    %965 = vmatpush1.xpose.msra.mxu0 0.0
    %966 = vmatprep.subr.mxu0 0.0
    %967 = vmatpush1.xpose.msra.mxu0 0.0
    %968 = vmatprep.subr.mxu0 0.0
    %969 = vmatpush1.xpose.msra.mxu0 0.0
    %970 = vmatprep.subr.mxu0 0.0
    %971 = vmatpush1.xpose.msra.mxu0 0.0
    %972 = vmatprep.subr.mxu0 0.0
    %973 = vmatpush1.xpose.msra.mxu0 0.0
    %974 = vmatprep.subr.mxu0 0.0
    %975 = vmatpush1.xpose.msra.mxu0 0.0
    %976 = vmatprep.subr.mxu0 0.0
    %977 = vmatpush1.xpose.msra.mxu0 0.0
    %978 = vmatprep.subr.mxu0 0.0
    %979 = vmatpush1.xpose.msra.mxu0 0.0
    %980 = vmatprep.subr.mxu0 0.0
    %981 = vmatpush1.xpose.msra.mxu0 0.0
    %982 = vmatprep.subr.mxu0 0.0
    %983 = vmatpush1.xpose.msra.mxu0 0.0
    %984 = vmatprep.subr.mxu0 0.0
    %985 = vmatpush1.xpose.msra.mxu0 0.0
    %986 = vmatprep.subr.mxu0 0.0
    %987 = vmatpush1.xpose.msra.mxu0 0.0
    %988 = vmatprep.subr.mxu0 0.0
    %989 = vmatpush1.xpose.msra.mxu0 0.0
    %990 = vmatprep.subr.mxu0 0.0
    %991 = vmatpush1.xpose.msra.mxu0 0.0
    %992 = vmatprep.mubr.f32.mxu0 0.0
    %993 = vmatmul.mubr.f32.gmra.mrb[0].mxu0 %v924
    %v994 = vpop.f32.mrb[0].mxu0
    %v995 = vadd.f32 0.0, %v994
    %v996 = vpop.f32.mrb[0].mxu0
    %997 = vdwg.mxu0
    %998 = vrot.lane.b32.xlu0 %v246, 104
    %v999 = vpop.permute.xlu0 %998
    %1000 = vrot.lane.b32.xlu0 %v348, 104
    %v1001 = vpop.permute.xlu0 %1000
    %v1002 = vsel %vm455, %v999, 0
    %v1004 = vsel %vm455, %v1001, 0
    %1006 = vmatprep.subr.mxu0 0.0
    %1007 = vmatpush1.xpose.msra.mxu0 %v1004
    %1008 = vmatprep.subr.mxu0 0.0
    %1009 = vmatpush1.xpose.msra.mxu0 0.0
    %1010 = vmatprep.subr.mxu0 0.0
    %1011 = vmatpush1.xpose.msra.mxu0 0.0
    %1012 = vmatprep.subr.mxu0 0.0
    %1013 = vmatpush1.xpose.msra.mxu0 0.0
    %1014 = vmatprep.subr.mxu0 0.0
    %1015 = vmatpush1.xpose.msra.mxu0 0.0
    %1016 = vmatprep.subr.mxu0 0.0
    %1017 = vmatpush1.xpose.msra.mxu0 0.0
    %1018 = vmatprep.subr.mxu0 0.0
    %1019 = vmatpush1.xpose.msra.mxu0 0.0
    %1020 = vmatprep.subr.mxu0 0.0
    %1021 = vmatpush1.xpose.msra.mxu0 0.0
    %1022 = vmatprep.subr.mxu0 0.0
    %1023 = vmatpush1.xpose.msra.mxu0 0.0
    %1024 = vmatprep.subr.mxu0 0.0
    %1025 = vmatpush1.xpose.msra.mxu0 0.0
    %1026 = vmatprep.subr.mxu0 0.0
    %1027 = vmatpush1.xpose.msra.mxu0 0.0
    %1028 = vmatprep.subr.mxu0 0.0
    %1029 = vmatpush1.xpose.msra.mxu0 0.0
    %1030 = vmatprep.subr.mxu0 0.0
    %1031 = vmatpush1.xpose.msra.mxu0 0.0
    %1032 = vmatprep.subr.mxu0 0.0
    %1033 = vmatpush1.xpose.msra.mxu0 0.0
    %1034 = vmatprep.subr.mxu0 0.0
    %1035 = vmatpush1.xpose.msra.mxu0 0.0
    %1036 = vmatprep.subr.mxu0 0.0
    %1037 = vmatpush1.xpose.msra.mxu0 0.0
    %1038 = vmatprep.subr.mxu0 0.0
    %1039 = vmatpush1.xpose.msra.mxu0 0.0
    %1040 = vmatprep.subr.mxu0 0.0
    %1041 = vmatpush1.xpose.msra.mxu0 0.0
    %1042 = vmatprep.subr.mxu0 0.0
    %1043 = vmatpush1.xpose.msra.mxu0 0.0
    %1044 = vmatprep.subr.mxu0 0.0
    %1045 = vmatpush1.xpose.msra.mxu0 0.0
    %1046 = vmatprep.subr.mxu0 0.0
    %1047 = vmatpush1.xpose.msra.mxu0 0.0
    %1048 = vmatprep.subr.mxu0 0.0
    %1049 = vmatpush1.xpose.msra.mxu0 0.0
    %1050 = vmatprep.subr.mxu0 0.0
    %1051 = vmatpush1.xpose.msra.mxu0 0.0
    %1052 = vmatprep.subr.mxu0 0.0
    %1053 = vmatpush1.xpose.msra.mxu0 0.0
    %1054 = vmatprep.subr.mxu0 0.0
    %1055 = vmatpush1.xpose.msra.mxu0 0.0
    %1056 = vmatprep.subr.mxu0 0.0
    %1057 = vmatpush1.xpose.msra.mxu0 0.0
    %1058 = vmatprep.subr.mxu0 0.0
    %1059 = vmatpush1.xpose.msra.mxu0 0.0
    %1060 = vmatprep.subr.mxu0 0.0
    %1061 = vmatpush1.xpose.msra.mxu0 0.0
    %1062 = vmatprep.subr.mxu0 0.0
    %1063 = vmatpush1.xpose.msra.mxu0 0.0
    %1064 = vmatprep.subr.mxu0 0.0
    %1065 = vmatpush1.xpose.msra.mxu0 0.0
    %1066 = vmatprep.subr.mxu0 0.0
    %1067 = vmatpush1.xpose.msra.mxu0 0.0
    %1068 = vmatprep.subr.mxu0 0.0
    %1069 = vmatpush1.xpose.msra.mxu0 0.0
    %1070 = vmatprep.mubr.f32.mxu0 0.0
    %1071 = vmatmul.mubr.f32.gmra.mrb[0].mxu0 %v1002
    %v1072 = vpop.f32.mrb[0].mxu0
    %v1073 = vadd.f32 0.0, %v1072
    %v1074 = vpop.f32.mrb[0].mxu0
    %1075 = vdwg.mxu0
    %v1076 = vsel %vm455, %v529, -inf
    %1077 = vmax.xlane.f32.xlu0 %v1076
    %v1078 = vpop.xlane.xlu0 %1077
    %v1079 = vsel %vm455, %v607, -inf
    %1080 = vmax.xlane.f32.xlu0 %v1079
    %v1081 = vpop.xlane.xlu0 %1080
    %v1082 = vsel %vm455, %v685, -inf
    %1083 = vmax.xlane.f32.xlu0 %v1082
    %v1084 = vpop.xlane.xlu0 %1083
    %v1085 = vsel %vm455, %v763, -inf
    %1086 = vmax.xlane.f32.xlu0 %v1085
    %v1087 = vpop.xlane.xlu0 %1086
    %v1088 = vsel %vm455, %v839, -inf
    %1089 = vmax.xlane.f32.xlu0 %v1088
    %v1090 = vpop.xlane.xlu0 %1089
    %v1091 = vsel %vm455, %v917, -inf
    %1092 = vmax.xlane.f32.xlu0 %v1091
    %v1093 = vpop.xlane.xlu0 %1092
    %v1094 = vsel %vm455, %v995, -inf
    %1095 = vmax.xlane.f32.xlu0 %v1094
    %v1096 = vpop.xlane.xlu0 %1095
    %v1097 = vsel %vm455, %v1073, -inf
    %1098 = vmax.xlane.f32.xlu0 %v1097
    %v1099 = vpop.xlane.xlu0 %1098
    %v1100 = vsub.f32 %v529, %v1078
    %v1101 = vsub.f32 %v607, %v1081
    %v1102 = vsub.f32 %v685, %v1084
    %v1103 = vsub.f32 %v763, %v1087
    %v1104 = vsub.f32 %v839, %v1090
    %v1105 = vsub.f32 %v917, %v1093
    %v1106 = vsub.f32 %v995, %v1096
    %v1107 = vsub.f32 %v1073, %v1099
    %v1108 = vsub.f32 %v1100, -0.5
    %v1109 = vsub.f32 %v1101, -0.5
    %v1110 = vsub.f32 %v1102, -0.5
    %v1111 = vsub.f32 %v1103, -0.5
    %v1112 = vsub.f32 %v1104, -0.5
    %v1113 = vsub.f32 %v1105, -0.5
    %v1114 = vsub.f32 %v1106, -0.5
    %v1115 = vsub.f32 %v1107, -0.5
    %v1116 = vmax.f32 %v1108, 0.0
    %v1117 = vmax.f32 %v1109, 0.0
    %v1118 = vmax.f32 %v1110, 0.0
    %v1119 = vmax.f32 %v1111, 0.0
    %v1120 = vmax.f32 %v1112, 0.0
    %v1121 = vmax.f32 %v1113, 0.0
    %v1122 = vmax.f32 %v1114, 0.0
    %v1123 = vmax.f32 %v1115, 0.0
    %v1124 = vmul.f32 %v1116, %v1116
    %v1125 = vmul.f32 %v1117, %v1117
    %v1126 = vmul.f32 %v1118, %v1118
    %v1127 = vmul.f32 %v1119, %v1119
    %v1128 = vmul.f32 %v1120, %v1120
    %v1129 = vmul.f32 %v1121, %v1121
    %v1130 = vmul.f32 %v1122, %v1122
    %v1131 = vmul.f32 %v1123, %v1123
    %v1132 = vsel %vm455, %v1124, 0.0
    %1133 = vadd.xlane.f32.xlu0 %v1132
    %v1134 = vpop.xlane.xlu0 %1133
    %v1135 = vsel %vm455, %v1125, 0.0
    %1136 = vadd.xlane.f32.xlu0 %v1135
    %v1137 = vpop.xlane.xlu0 %1136
    %v1138 = vsel %vm455, %v1126, 0.0
    %1139 = vadd.xlane.f32.xlu0 %v1138
    %v1140 = vpop.xlane.xlu0 %1139
    %v1141 = vsel %vm455, %v1127, 0.0
    %1142 = vadd.xlane.f32.xlu0 %v1141
    %v1143 = vpop.xlane.xlu0 %1142
    %v1144 = vsel %vm455, %v1128, 0.0
    %1145 = vadd.xlane.f32.xlu0 %v1144
    %v1146 = vpop.xlane.xlu0 %1145
    %v1147 = vsel %vm455, %v1129, 0.0
    %1148 = vadd.xlane.f32.xlu0 %v1147
    %v1149 = vpop.xlane.xlu0 %1148
    %v1150 = vsel %vm455, %v1130, 0.0
    %1151 = vadd.xlane.f32.xlu0 %v1150
    %v1152 = vpop.xlane.xlu0 %1151
    %v1153 = vsel %vm455, %v1131, 0.0
    %1154 = vadd.xlane.f32.xlu0 %v1153
    %v1155 = vpop.xlane.xlu0 %1154
    %vm1156 = vcmp.ge.f32.partialorder %v1134, 1.0
    %vm1157 = vcmp.ge.f32.partialorder %v1137, 1.0
    %vm1158 = vcmp.ge.f32.partialorder %v1140, 1.0
    %vm1159 = vcmp.ge.f32.partialorder %v1143, 1.0
    %vm1160 = vcmp.ge.f32.partialorder %v1146, 1.0
    %vm1161 = vcmp.ge.f32.partialorder %v1149, 1.0
    %vm1162 = vcmp.ge.f32.partialorder %v1152, 1.0
    %vm1163 = vcmp.ge.f32.partialorder %v1155, 1.0
    %v1164 = vsel %vm1156, -0.5, -1.0
    %v1165 = vsel %vm1157, -0.5, -1.0
    %v1166 = vsel %vm1158, -0.5, -1.0
    %v1167 = vsel %vm1159, -0.5, -1.0
    %v1168 = vsel %vm1160, -0.5, -1.0
    %v1169 = vsel %vm1161, -0.5, -1.0
    %v1170 = vsel %vm1162, -0.5, -1.0
    %v1171 = vsel %vm1163, -0.5, -1.0
    %v1172 = vsel %vm1156, 0.0, -0.5
    %v1173 = vsel %vm1157, 0.0, -0.5
    %v1174 = vsel %vm1158, 0.0, -0.5
    %v1175 = vsel %vm1159, 0.0, -0.5
    %v1176 = vsel %vm1160, 0.0, -0.5
    %v1177 = vsel %vm1161, 0.0, -0.5
    %v1178 = vsel %vm1162, 0.0, -0.5
    %v1179 = vsel %vm1163, 0.0, -0.5
    %v1180 = vadd.f32 %v1164, %v1172
    %v1181 = vadd.f32 %v1165, %v1173
    %v1182 = vadd.f32 %v1166, %v1174
    %v1183 = vadd.f32 %v1167, %v1175
    %v1184 = vadd.f32 %v1168, %v1176
    %v1185 = vadd.f32 %v1169, %v1177
    %v1186 = vadd.f32 %v1170, %v1178
    %v1187 = vadd.f32 %v1171, %v1179
    %v1188 = vmul.f32 %v1180, 0.5
    %v1189 = vmul.f32 %v1181, 0.5
    %v1190 = vmul.f32 %v1182, 0.5
    %v1191 = vmul.f32 %v1183, 0.5
    %v1192 = vmul.f32 %v1184, 0.5
    %v1193 = vmul.f32 %v1185, 0.5
    %v1194 = vmul.f32 %v1186, 0.5
    %v1195 = vmul.f32 %v1187, 0.5
    %v1196 = vsub.f32 %v1100, %v1188
    %v1197 = vsub.f32 %v1101, %v1189
    %v1198 = vsub.f32 %v1102, %v1190
    %v1199 = vsub.f32 %v1103, %v1191
    %v1200 = vsub.f32 %v1104, %v1192
    %v1201 = vsub.f32 %v1105, %v1193
    %v1202 = vsub.f32 %v1106, %v1194
    %v1203 = vsub.f32 %v1107, %v1195
    %v1204 = vmax.f32 %v1196, 0.0
    %v1205 = vmax.f32 %v1197, 0.0
    %v1206 = vmax.f32 %v1198, 0.0
    %v1207 = vmax.f32 %v1199, 0.0
    %v1208 = vmax.f32 %v1200, 0.0
    %v1209 = vmax.f32 %v1201, 0.0
    %v1210 = vmax.f32 %v1202, 0.0
    %v1211 = vmax.f32 %v1203, 0.0
    %v1212 = vmul.f32 %v1204, %v1204
    %v1213 = vmul.f32 %v1205, %v1205
    %v1214 = vmul.f32 %v1206, %v1206
    %v1215 = vmul.f32 %v1207, %v1207
    %v1216 = vmul.f32 %v1208, %v1208
    %v1217 = vmul.f32 %v1209, %v1209
    %v1218 = vmul.f32 %v1210, %v1210
    %v1219 = vmul.f32 %v1211, %v1211
    %v1220 = vsel %vm455, %v1212, 0.0
    %1221 = vadd.xlane.f32.xlu0 %v1220
    %v1222 = vpop.xlane.xlu0 %1221
    %v1223 = vsel %vm455, %v1213, 0.0
    %1224 = vadd.xlane.f32.xlu0 %v1223
    %v1225 = vpop.xlane.xlu0 %1224
    %v1226 = vsel %vm455, %v1214, 0.0
    %1227 = vadd.xlane.f32.xlu0 %v1226
    %v1228 = vpop.xlane.xlu0 %1227
    %v1229 = vsel %vm455, %v1215, 0.0
    %1230 = vadd.xlane.f32.xlu0 %v1229
    %v1231 = vpop.xlane.xlu0 %1230
    %v1232 = vsel %vm455, %v1216, 0.0
    %1233 = vadd.xlane.f32.xlu0 %v1232
    %v1234 = vpop.xlane.xlu0 %1233
    %v1235 = vsel %vm455, %v1217, 0.0
    %1236 = vadd.xlane.f32.xlu0 %v1235
    %v1237 = vpop.xlane.xlu0 %1236
    %v1238 = vsel %vm455, %v1218, 0.0
    %1239 = vadd.xlane.f32.xlu0 %v1238
    %v1240 = vpop.xlane.xlu0 %1239
    %v1241 = vsel %vm455, %v1219, 0.0
    %1242 = vadd.xlane.f32.xlu0 %v1241
    %v1243 = vpop.xlane.xlu0 %1242
    %vm1244 = vcmp.ge.f32.partialorder %v1222, 1.0
    %vm1245 = vcmp.ge.f32.partialorder %v1225, 1.0
    %vm1246 = vcmp.ge.f32.partialorder %v1228, 1.0
    %vm1247 = vcmp.ge.f32.partialorder %v1231, 1.0
    %vm1248 = vcmp.ge.f32.partialorder %v1234, 1.0
    %vm1249 = vcmp.ge.f32.partialorder %v1237, 1.0
    %vm1250 = vcmp.ge.f32.partialorder %v1240, 1.0
    %vm1251 = vcmp.ge.f32.partialorder %v1243, 1.0
    %v1252 = vsel %vm1244, %v1188, %v1164
    %v1253 = vsel %vm1245, %v1189, %v1165
    %v1254 = vsel %vm1246, %v1190, %v1166
    %v1255 = vsel %vm1247, %v1191, %v1167
    %v1256 = vsel %vm1248, %v1192, %v1168
    %v1257 = vsel %vm1249, %v1193, %v1169
    %v1258 = vsel %vm1250, %v1194, %v1170
    %v1259 = vsel %vm1251, %v1195, %v1171
    %v1260 = vsel %vm1244, %v1172, %v1188
    %v1261 = vsel %vm1245, %v1173, %v1189
    %v1262 = vsel %vm1246, %v1174, %v1190
    %v1263 = vsel %vm1247, %v1175, %v1191
    %v1264 = vsel %vm1248, %v1176, %v1192
    %v1265 = vsel %vm1249, %v1177, %v1193
    %v1266 = vsel %vm1250, %v1178, %v1194
    %v1267 = vsel %vm1251, %v1179, %v1195
    %v1268 = vadd.f32 %v1252, %v1260
    %v1269 = vadd.f32 %v1253, %v1261
    %v1270 = vadd.f32 %v1254, %v1262
    %v1271 = vadd.f32 %v1255, %v1263
    %v1272 = vadd.f32 %v1256, %v1264
    %v1273 = vadd.f32 %v1257, %v1265
    %v1274 = vadd.f32 %v1258, %v1266
    %v1275 = vadd.f32 %v1259, %v1267
    %v1276 = vmul.f32 %v1268, 0.5
    %v1277 = vmul.f32 %v1269, 0.5
    %v1278 = vmul.f32 %v1270, 0.5
    %v1279 = vmul.f32 %v1271, 0.5
    %v1280 = vmul.f32 %v1272, 0.5
    %v1281 = vmul.f32 %v1273, 0.5
    %v1282 = vmul.f32 %v1274, 0.5
    %v1283 = vmul.f32 %v1275, 0.5
    %v1284 = vsub.f32 %v1100, %v1276
    %v1285 = vsub.f32 %v1101, %v1277
    %v1286 = vsub.f32 %v1102, %v1278
    %v1287 = vsub.f32 %v1103, %v1279
    %v1288 = vsub.f32 %v1104, %v1280
    %v1289 = vsub.f32 %v1105, %v1281
    %v1290 = vsub.f32 %v1106, %v1282
    %v1291 = vsub.f32 %v1107, %v1283
    %v1292 = vmax.f32 %v1284, 0.0
    %v1293 = vmax.f32 %v1285, 0.0
    %v1294 = vmax.f32 %v1286, 0.0
    %v1295 = vmax.f32 %v1287, 0.0
    %v1296 = vmax.f32 %v1288, 0.0
    %v1297 = vmax.f32 %v1289, 0.0
    %v1298 = vmax.f32 %v1290, 0.0
    %v1299 = vmax.f32 %v1291, 0.0
    %v1300 = vmul.f32 %v1292, %v1292
    %v1301 = vmul.f32 %v1293, %v1293
    %v1302 = vmul.f32 %v1294, %v1294
    %v1303 = vmul.f32 %v1295, %v1295
    %v1304 = vmul.f32 %v1296, %v1296
    %v1305 = vmul.f32 %v1297, %v1297
    %v1306 = vmul.f32 %v1298, %v1298
    %v1307 = vmul.f32 %v1299, %v1299
    %v1308 = vsel %vm455, %v1300, 0.0
    %1309 = vadd.xlane.f32.xlu0 %v1308
    %v1310 = vpop.xlane.xlu0 %1309
    %v1311 = vsel %vm455, %v1301, 0.0
    %1312 = vadd.xlane.f32.xlu0 %v1311
    %v1313 = vpop.xlane.xlu0 %1312
    %v1314 = vsel %vm455, %v1302, 0.0
    %1315 = vadd.xlane.f32.xlu0 %v1314
    %v1316 = vpop.xlane.xlu0 %1315
    %v1317 = vsel %vm455, %v1303, 0.0
    %1318 = vadd.xlane.f32.xlu0 %v1317
    %v1319 = vpop.xlane.xlu0 %1318
    %v1320 = vsel %vm455, %v1304, 0.0
    %1321 = vadd.xlane.f32.xlu0 %v1320
    %v1322 = vpop.xlane.xlu0 %1321
    %v1323 = vsel %vm455, %v1305, 0.0
    %1324 = vadd.xlane.f32.xlu0 %v1323
    %v1325 = vpop.xlane.xlu0 %1324
    %v1326 = vsel %vm455, %v1306, 0.0
    %1327 = vadd.xlane.f32.xlu0 %v1326
    %v1328 = vpop.xlane.xlu0 %1327
    %v1329 = vsel %vm455, %v1307, 0.0
    %1330 = vadd.xlane.f32.xlu0 %v1329
    %v1331 = vpop.xlane.xlu0 %1330
    %vm1332 = vcmp.ge.f32.partialorder %v1310, 1.0
    %vm1333 = vcmp.ge.f32.partialorder %v1313, 1.0
    %vm1334 = vcmp.ge.f32.partialorder %v1316, 1.0
    %vm1335 = vcmp.ge.f32.partialorder %v1319, 1.0
    %vm1336 = vcmp.ge.f32.partialorder %v1322, 1.0
    %vm1337 = vcmp.ge.f32.partialorder %v1325, 1.0
    %vm1338 = vcmp.ge.f32.partialorder %v1328, 1.0
    %vm1339 = vcmp.ge.f32.partialorder %v1331, 1.0
    %v1340 = vsel %vm1332, %v1276, %v1252
    %v1341 = vsel %vm1333, %v1277, %v1253
    %v1342 = vsel %vm1334, %v1278, %v1254
    %v1343 = vsel %vm1335, %v1279, %v1255
    %v1344 = vsel %vm1336, %v1280, %v1256
    %v1345 = vsel %vm1337, %v1281, %v1257
    %v1346 = vsel %vm1338, %v1282, %v1258
    %v1347 = vsel %vm1339, %v1283, %v1259
    %v1348 = vsel %vm1332, %v1260, %v1276
    %v1349 = vsel %vm1333, %v1261, %v1277
    %v1350 = vsel %vm1334, %v1262, %v1278
    %v1351 = vsel %vm1335, %v1263, %v1279
    %v1352 = vsel %vm1336, %v1264, %v1280
    %v1353 = vsel %vm1337, %v1265, %v1281
    %v1354 = vsel %vm1338, %v1266, %v1282
    %v1355 = vsel %vm1339, %v1267, %v1283
    %v1356 = vadd.f32 %v1340, %v1348
    %v1357 = vadd.f32 %v1341, %v1349
    %v1358 = vadd.f32 %v1342, %v1350
    %v1359 = vadd.f32 %v1343, %v1351
    %v1360 = vadd.f32 %v1344, %v1352
    %v1361 = vadd.f32 %v1345, %v1353
    %v1362 = vadd.f32 %v1346, %v1354
    %v1363 = vadd.f32 %v1347, %v1355
    %v1364 = vmul.f32 %v1356, 0.5
    %v1365 = vmul.f32 %v1357, 0.5
    %v1366 = vmul.f32 %v1358, 0.5
    %v1367 = vmul.f32 %v1359, 0.5
    %v1368 = vmul.f32 %v1360, 0.5
    %v1369 = vmul.f32 %v1361, 0.5
    %v1370 = vmul.f32 %v1362, 0.5
    %v1371 = vmul.f32 %v1363, 0.5
    %v1372 = vsub.f32 %v1100, %v1364
    %v1373 = vsub.f32 %v1101, %v1365
    %v1374 = vsub.f32 %v1102, %v1366
    %v1375 = vsub.f32 %v1103, %v1367
    %v1376 = vsub.f32 %v1104, %v1368
    %v1377 = vsub.f32 %v1105, %v1369
    %v1378 = vsub.f32 %v1106, %v1370
    %v1379 = vsub.f32 %v1107, %v1371
    %v1380 = vmax.f32 %v1372, 0.0
    %v1381 = vmax.f32 %v1373, 0.0
    %v1382 = vmax.f32 %v1374, 0.0
    %v1383 = vmax.f32 %v1375, 0.0
    %v1384 = vmax.f32 %v1376, 0.0
    %v1385 = vmax.f32 %v1377, 0.0
    %v1386 = vmax.f32 %v1378, 0.0
    %v1387 = vmax.f32 %v1379, 0.0
    %v1388 = vmul.f32 %v1380, %v1380
    %v1389 = vmul.f32 %v1381, %v1381
    %v1390 = vmul.f32 %v1382, %v1382
    %v1391 = vmul.f32 %v1383, %v1383
    %v1392 = vmul.f32 %v1384, %v1384
    %v1393 = vmul.f32 %v1385, %v1385
    %v1394 = vmul.f32 %v1386, %v1386
    %v1395 = vmul.f32 %v1387, %v1387
    %v1396 = vsel %vm455, %v1388, 0.0
    %1397 = vadd.xlane.f32.xlu0 %v1396
    %v1398 = vpop.xlane.xlu0 %1397
    %v1399 = vsel %vm455, %v1389, 0.0
    %1400 = vadd.xlane.f32.xlu0 %v1399
    %v1401 = vpop.xlane.xlu0 %1400
    %v1402 = vsel %vm455, %v1390, 0.0
    %1403 = vadd.xlane.f32.xlu0 %v1402
    %v1404 = vpop.xlane.xlu0 %1403
    %v1405 = vsel %vm455, %v1391, 0.0
    %1406 = vadd.xlane.f32.xlu0 %v1405
    %v1407 = vpop.xlane.xlu0 %1406
    %v1408 = vsel %vm455, %v1392, 0.0
    %1409 = vadd.xlane.f32.xlu0 %v1408
    %v1410 = vpop.xlane.xlu0 %1409
    %v1411 = vsel %vm455, %v1393, 0.0
    %1412 = vadd.xlane.f32.xlu0 %v1411
    %v1413 = vpop.xlane.xlu0 %1412
    %v1414 = vsel %vm455, %v1394, 0.0
    %1415 = vadd.xlane.f32.xlu0 %v1414
    %v1416 = vpop.xlane.xlu0 %1415
    %v1417 = vsel %vm455, %v1395, 0.0
    %1418 = vadd.xlane.f32.xlu0 %v1417
    %v1419 = vpop.xlane.xlu0 %1418
    %vm1420 = vcmp.ge.f32.partialorder %v1398, 1.0
    %vm1421 = vcmp.ge.f32.partialorder %v1401, 1.0
    %vm1422 = vcmp.ge.f32.partialorder %v1404, 1.0
    %vm1423 = vcmp.ge.f32.partialorder %v1407, 1.0
    %vm1424 = vcmp.ge.f32.partialorder %v1410, 1.0
    %vm1425 = vcmp.ge.f32.partialorder %v1413, 1.0
    %vm1426 = vcmp.ge.f32.partialorder %v1416, 1.0
    %vm1427 = vcmp.ge.f32.partialorder %v1419, 1.0
    %v1428 = vsel %vm1420, %v1364, %v1340
    %v1429 = vsel %vm1421, %v1365, %v1341
    %v1430 = vsel %vm1422, %v1366, %v1342
    %v1431 = vsel %vm1423, %v1367, %v1343
    %v1432 = vsel %vm1424, %v1368, %v1344
    %v1433 = vsel %vm1425, %v1369, %v1345
    %v1434 = vsel %vm1426, %v1370, %v1346
    %v1435 = vsel %vm1427, %v1371, %v1347
    %v1436 = vsel %vm1420, %v1348, %v1364
    %v1437 = vsel %vm1421, %v1349, %v1365
    %v1438 = vsel %vm1422, %v1350, %v1366
    %v1439 = vsel %vm1423, %v1351, %v1367
    %v1440 = vsel %vm1424, %v1352, %v1368
    %v1441 = vsel %vm1425, %v1353, %v1369
    %v1442 = vsel %vm1426, %v1354, %v1370
    %v1443 = vsel %vm1427, %v1355, %v1371
    %v1444 = vadd.f32 %v1428, %v1436
    %v1445 = vadd.f32 %v1429, %v1437
    %v1446 = vadd.f32 %v1430, %v1438
    %v1447 = vadd.f32 %v1431, %v1439
    %v1448 = vadd.f32 %v1432, %v1440
    %v1449 = vadd.f32 %v1433, %v1441
    %v1450 = vadd.f32 %v1434, %v1442
    %v1451 = vadd.f32 %v1435, %v1443
    %v1452 = vmul.f32 %v1444, 0.5
    %v1453 = vmul.f32 %v1445, 0.5
    %v1454 = vmul.f32 %v1446, 0.5
    %v1455 = vmul.f32 %v1447, 0.5
    %v1456 = vmul.f32 %v1448, 0.5
    %v1457 = vmul.f32 %v1449, 0.5
    %v1458 = vmul.f32 %v1450, 0.5
    %v1459 = vmul.f32 %v1451, 0.5
    %v1460 = vsub.f32 %v1100, %v1452
    %v1461 = vsub.f32 %v1101, %v1453
    %v1462 = vsub.f32 %v1102, %v1454
    %v1463 = vsub.f32 %v1103, %v1455
    %v1464 = vsub.f32 %v1104, %v1456
    %v1465 = vsub.f32 %v1105, %v1457
    %v1466 = vsub.f32 %v1106, %v1458
    %v1467 = vsub.f32 %v1107, %v1459
    %v1468 = vmax.f32 %v1460, 0.0
    %v1469 = vmax.f32 %v1461, 0.0
    %v1470 = vmax.f32 %v1462, 0.0
    %v1471 = vmax.f32 %v1463, 0.0
    %v1472 = vmax.f32 %v1464, 0.0
    %v1473 = vmax.f32 %v1465, 0.0
    %v1474 = vmax.f32 %v1466, 0.0
    %v1475 = vmax.f32 %v1467, 0.0
    %v1476 = vmul.f32 %v1468, %v1468
    %v1477 = vmul.f32 %v1469, %v1469
    %v1478 = vmul.f32 %v1470, %v1470
    %v1479 = vmul.f32 %v1471, %v1471
    %v1480 = vmul.f32 %v1472, %v1472
    %v1481 = vmul.f32 %v1473, %v1473
    %v1482 = vmul.f32 %v1474, %v1474
    %v1483 = vmul.f32 %v1475, %v1475
    %v1484 = vsel %vm455, %v1476, 0.0
    %1485 = vadd.xlane.f32.xlu0 %v1484
    %v1486 = vpop.xlane.xlu0 %1485
    %v1487 = vsel %vm455, %v1477, 0.0
    %1488 = vadd.xlane.f32.xlu0 %v1487
    %v1489 = vpop.xlane.xlu0 %1488
    %v1490 = vsel %vm455, %v1478, 0.0
    %1491 = vadd.xlane.f32.xlu0 %v1490
    %v1492 = vpop.xlane.xlu0 %1491
    %v1493 = vsel %vm455, %v1479, 0.0
    %1494 = vadd.xlane.f32.xlu0 %v1493
    %v1495 = vpop.xlane.xlu0 %1494
    %v1496 = vsel %vm455, %v1480, 0.0
    %1497 = vadd.xlane.f32.xlu0 %v1496
    %v1498 = vpop.xlane.xlu0 %1497
    %v1499 = vsel %vm455, %v1481, 0.0
    %1500 = vadd.xlane.f32.xlu0 %v1499
    %v1501 = vpop.xlane.xlu0 %1500
    %v1502 = vsel %vm455, %v1482, 0.0
    %1503 = vadd.xlane.f32.xlu0 %v1502
    %v1504 = vpop.xlane.xlu0 %1503
    %v1505 = vsel %vm455, %v1483, 0.0
    %1506 = vadd.xlane.f32.xlu0 %v1505
    %v1507 = vpop.xlane.xlu0 %1506
    %vm1508 = vcmp.ge.f32.partialorder %v1486, 1.0
    %vm1509 = vcmp.ge.f32.partialorder %v1489, 1.0
    %vm1510 = vcmp.ge.f32.partialorder %v1492, 1.0
    %vm1511 = vcmp.ge.f32.partialorder %v1495, 1.0
    %vm1512 = vcmp.ge.f32.partialorder %v1498, 1.0
    %vm1513 = vcmp.ge.f32.partialorder %v1501, 1.0
    %vm1514 = vcmp.ge.f32.partialorder %v1504, 1.0
    %vm1515 = vcmp.ge.f32.partialorder %v1507, 1.0
    %v1516 = vsel %vm1508, %v1452, %v1428
    %v1517 = vsel %vm1509, %v1453, %v1429
    %v1518 = vsel %vm1510, %v1454, %v1430
    %v1519 = vsel %vm1511, %v1455, %v1431
    %v1520 = vsel %vm1512, %v1456, %v1432
    %v1521 = vsel %vm1513, %v1457, %v1433
    %v1522 = vsel %vm1514, %v1458, %v1434
    %v1523 = vsel %vm1515, %v1459, %v1435
    %v1524 = vsel %vm1508, %v1436, %v1452
    %v1525 = vsel %vm1509, %v1437, %v1453
    %v1526 = vsel %vm1510, %v1438, %v1454
    %v1527 = vsel %vm1511, %v1439, %v1455
    %v1528 = vsel %vm1512, %v1440, %v1456
    %v1529 = vsel %vm1513, %v1441, %v1457
    %v1530 = vsel %vm1514, %v1442, %v1458
    %v1531 = vsel %vm1515, %v1443, %v1459
    %v1532 = vadd.f32 %v1516, %v1524
    %v1533 = vadd.f32 %v1517, %v1525
    %v1534 = vadd.f32 %v1518, %v1526
    %v1535 = vadd.f32 %v1519, %v1527
    %v1536 = vadd.f32 %v1520, %v1528
    %v1537 = vadd.f32 %v1521, %v1529
    %v1538 = vadd.f32 %v1522, %v1530
    %v1539 = vadd.f32 %v1523, %v1531
    %v1540 = vmul.f32 %v1532, 0.5
    %v1541 = vmul.f32 %v1533, 0.5
    %v1542 = vmul.f32 %v1534, 0.5
    %v1543 = vmul.f32 %v1535, 0.5
    %v1544 = vmul.f32 %v1536, 0.5
    %v1545 = vmul.f32 %v1537, 0.5
    %v1546 = vmul.f32 %v1538, 0.5
    %v1547 = vmul.f32 %v1539, 0.5
    %v1548 = vsub.f32 %v1100, %v1540
    %v1549 = vsub.f32 %v1101, %v1541
    %v1550 = vsub.f32 %v1102, %v1542
    %v1551 = vsub.f32 %v1103, %v1543
    %v1552 = vsub.f32 %v1104, %v1544
    %v1553 = vsub.f32 %v1105, %v1545
    %v1554 = vsub.f32 %v1106, %v1546
    %v1555 = vsub.f32 %v1107, %v1547
    %v1556 = vmax.f32 %v1548, 0.0
    %v1557 = vmax.f32 %v1549, 0.0
    %v1558 = vmax.f32 %v1550, 0.0
    %v1559 = vmax.f32 %v1551, 0.0
    %v1560 = vmax.f32 %v1552, 0.0
    %v1561 = vmax.f32 %v1553, 0.0
    %v1562 = vmax.f32 %v1554, 0.0
    %v1563 = vmax.f32 %v1555, 0.0
    %v1564 = vmul.f32 %v1556, %v1556
    %v1565 = vmul.f32 %v1557, %v1557
    %v1566 = vmul.f32 %v1558, %v1558
    %v1567 = vmul.f32 %v1559, %v1559
    %v1568 = vmul.f32 %v1560, %v1560
    %v1569 = vmul.f32 %v1561, %v1561
    %v1570 = vmul.f32 %v1562, %v1562
    %v1571 = vmul.f32 %v1563, %v1563
    %v1572 = vsel %vm455, %v1564, 0.0
    %1573 = vadd.xlane.f32.xlu0 %v1572
    %v1574 = vpop.xlane.xlu0 %1573
    %v1575 = vsel %vm455, %v1565, 0.0
    %1576 = vadd.xlane.f32.xlu0 %v1575
    %v1577 = vpop.xlane.xlu0 %1576
    %v1578 = vsel %vm455, %v1566, 0.0
    %1579 = vadd.xlane.f32.xlu0 %v1578
    %v1580 = vpop.xlane.xlu0 %1579
    %v1581 = vsel %vm455, %v1567, 0.0
    %1582 = vadd.xlane.f32.xlu0 %v1581
    %v1583 = vpop.xlane.xlu0 %1582
    %v1584 = vsel %vm455, %v1568, 0.0
    %1585 = vadd.xlane.f32.xlu0 %v1584
    %v1586 = vpop.xlane.xlu0 %1585
    %v1587 = vsel %vm455, %v1569, 0.0
    %1588 = vadd.xlane.f32.xlu0 %v1587
    %v1589 = vpop.xlane.xlu0 %1588
    %v1590 = vsel %vm455, %v1570, 0.0
    %1591 = vadd.xlane.f32.xlu0 %v1590
    %v1592 = vpop.xlane.xlu0 %1591
    %v1593 = vsel %vm455, %v1571, 0.0
    %1594 = vadd.xlane.f32.xlu0 %v1593
    %v1595 = vpop.xlane.xlu0 %1594
    %vm1596 = vcmp.ge.f32.partialorder %v1574, 1.0
    %vm1597 = vcmp.ge.f32.partialorder %v1577, 1.0
    %vm1598 = vcmp.ge.f32.partialorder %v1580, 1.0
    %vm1599 = vcmp.ge.f32.partialorder %v1583, 1.0
    %vm1600 = vcmp.ge.f32.partialorder %v1586, 1.0
    %vm1601 = vcmp.ge.f32.partialorder %v1589, 1.0
    %vm1602 = vcmp.ge.f32.partialorder %v1592, 1.0
    %vm1603 = vcmp.ge.f32.partialorder %v1595, 1.0
    %v1604 = vsel %vm1596, %v1540, %v1516
    %v1605 = vsel %vm1597, %v1541, %v1517
    %v1606 = vsel %vm1598, %v1542, %v1518
    %v1607 = vsel %vm1599, %v1543, %v1519
    %v1608 = vsel %vm1600, %v1544, %v1520
    %v1609 = vsel %vm1601, %v1545, %v1521
    %v1610 = vsel %vm1602, %v1546, %v1522
    %v1611 = vsel %vm1603, %v1547, %v1523
    %v1612 = vsel %vm1596, %v1524, %v1540
    %v1613 = vsel %vm1597, %v1525, %v1541
    %v1614 = vsel %vm1598, %v1526, %v1542
    %v1615 = vsel %vm1599, %v1527, %v1543
    %v1616 = vsel %vm1600, %v1528, %v1544
    %v1617 = vsel %vm1601, %v1529, %v1545
    %v1618 = vsel %vm1602, %v1530, %v1546
    %v1619 = vsel %vm1603, %v1531, %v1547
    %v1620 = vadd.f32 %v1604, %v1612
    %v1621 = vadd.f32 %v1605, %v1613
    %v1622 = vadd.f32 %v1606, %v1614
    %v1623 = vadd.f32 %v1607, %v1615
    %v1624 = vadd.f32 %v1608, %v1616
    %v1625 = vadd.f32 %v1609, %v1617
    %v1626 = vadd.f32 %v1610, %v1618
    %v1627 = vadd.f32 %v1611, %v1619
    %v1628 = vmul.f32 %v1620, 0.5
    %v1629 = vmul.f32 %v1621, 0.5
    %v1630 = vmul.f32 %v1622, 0.5
    %v1631 = vmul.f32 %v1623, 0.5
    %v1632 = vmul.f32 %v1624, 0.5
    %v1633 = vmul.f32 %v1625, 0.5
    %v1634 = vmul.f32 %v1626, 0.5
    %v1635 = vmul.f32 %v1627, 0.5
    %v1636 = vsub.f32 %v1100, %v1628
    %v1637 = vsub.f32 %v1101, %v1629
    %v1638 = vsub.f32 %v1102, %v1630
    %v1639 = vsub.f32 %v1103, %v1631
    %v1640 = vsub.f32 %v1104, %v1632
    %v1641 = vsub.f32 %v1105, %v1633
    %v1642 = vsub.f32 %v1106, %v1634
    %v1643 = vsub.f32 %v1107, %v1635
    %v1644 = vmax.f32 %v1636, 0.0
    %v1645 = vmax.f32 %v1637, 0.0
    %v1646 = vmax.f32 %v1638, 0.0
    %v1647 = vmax.f32 %v1639, 0.0
    %v1648 = vmax.f32 %v1640, 0.0
    %v1649 = vmax.f32 %v1641, 0.0
    %v1650 = vmax.f32 %v1642, 0.0
    %v1651 = vmax.f32 %v1643, 0.0
    %v1652 = vmul.f32 %v1644, %v1644
    %v1653 = vmul.f32 %v1645, %v1645
    %v1654 = vmul.f32 %v1646, %v1646
    %v1655 = vmul.f32 %v1647, %v1647
    %v1656 = vmul.f32 %v1648, %v1648
    %v1657 = vmul.f32 %v1649, %v1649
    %v1658 = vmul.f32 %v1650, %v1650
    %v1659 = vmul.f32 %v1651, %v1651
    %v1660 = vsel %vm455, %v1652, 0.0
    %1661 = vadd.xlane.f32.xlu0 %v1660
    %v1662 = vpop.xlane.xlu0 %1661
    %v1663 = vsel %vm455, %v1653, 0.0
    %1664 = vadd.xlane.f32.xlu0 %v1663
    %v1665 = vpop.xlane.xlu0 %1664
    %v1666 = vsel %vm455, %v1654, 0.0
    %1667 = vadd.xlane.f32.xlu0 %v1666
    %v1668 = vpop.xlane.xlu0 %1667
    %v1669 = vsel %vm455, %v1655, 0.0
    %1670 = vadd.xlane.f32.xlu0 %v1669
    %v1671 = vpop.xlane.xlu0 %1670
    %v1672 = vsel %vm455, %v1656, 0.0
    %1673 = vadd.xlane.f32.xlu0 %v1672
    %v1674 = vpop.xlane.xlu0 %1673
    %v1675 = vsel %vm455, %v1657, 0.0
    %1676 = vadd.xlane.f32.xlu0 %v1675
    %v1677 = vpop.xlane.xlu0 %1676
    %v1678 = vsel %vm455, %v1658, 0.0
    %1679 = vadd.xlane.f32.xlu0 %v1678
    %v1680 = vpop.xlane.xlu0 %1679
    %v1681 = vsel %vm455, %v1659, 0.0
    %1682 = vadd.xlane.f32.xlu0 %v1681
    %v1683 = vpop.xlane.xlu0 %1682
    %vm1684 = vcmp.ge.f32.partialorder %v1662, 1.0
    %vm1685 = vcmp.ge.f32.partialorder %v1665, 1.0
    %vm1686 = vcmp.ge.f32.partialorder %v1668, 1.0
    %vm1687 = vcmp.ge.f32.partialorder %v1671, 1.0
    %vm1688 = vcmp.ge.f32.partialorder %v1674, 1.0
    %vm1689 = vcmp.ge.f32.partialorder %v1677, 1.0
    %vm1690 = vcmp.ge.f32.partialorder %v1680, 1.0
    %vm1691 = vcmp.ge.f32.partialorder %v1683, 1.0
    %v1692 = vsel %vm1684, %v1628, %v1604
    %v1693 = vsel %vm1685, %v1629, %v1605
    %v1694 = vsel %vm1686, %v1630, %v1606
    %v1695 = vsel %vm1687, %v1631, %v1607
    %v1696 = vsel %vm1688, %v1632, %v1608
    %v1697 = vsel %vm1689, %v1633, %v1609
    %v1698 = vsel %vm1690, %v1634, %v1610
    %v1699 = vsel %vm1691, %v1635, %v1611
    %v1700 = vsub.f32 %v1100, %v1692
    %v1701 = vsub.f32 %v1101, %v1693
    %v1702 = vsub.f32 %v1102, %v1694
    %v1703 = vsub.f32 %v1103, %v1695
    %v1704 = vsub.f32 %v1104, %v1696
    %v1705 = vsub.f32 %v1105, %v1697
    %v1706 = vsub.f32 %v1106, %v1698
    %v1707 = vsub.f32 %v1107, %v1699
    %v1708 = vmax.f32 %v1700, 0.0
    %v1709 = vmax.f32 %v1701, 0.0
    %v1710 = vmax.f32 %v1702, 0.0
    %v1711 = vmax.f32 %v1703, 0.0
    %v1712 = vmax.f32 %v1704, 0.0
    %v1713 = vmax.f32 %v1705, 0.0
    %v1714 = vmax.f32 %v1706, 0.0
    %v1715 = vmax.f32 %v1707, 0.0
    %v1716 = vmul.f32 %v1708, %v1708
    %v1717 = vmul.f32 %v1709, %v1709
    %v1718 = vmul.f32 %v1710, %v1710
    %v1719 = vmul.f32 %v1711, %v1711
    %v1720 = vmul.f32 %v1712, %v1712
    %v1721 = vmul.f32 %v1713, %v1713
    %v1722 = vmul.f32 %v1714, %v1714
    %v1723 = vmul.f32 %v1715, %v1715
    %v1724 = vsel %vm455, %v1716, 0.0
    %1725 = vadd.xlane.f32.xlu0 %v1724
    %v1726 = vpop.xlane.xlu0 %1725
    %v1727 = vsel %vm455, %v1717, 0.0
    %1728 = vadd.xlane.f32.xlu0 %v1727
    %v1729 = vpop.xlane.xlu0 %1728
    %v1730 = vsel %vm455, %v1718, 0.0
    %1731 = vadd.xlane.f32.xlu0 %v1730
    %v1732 = vpop.xlane.xlu0 %1731
    %v1733 = vsel %vm455, %v1719, 0.0
    %1734 = vadd.xlane.f32.xlu0 %v1733
    %v1735 = vpop.xlane.xlu0 %1734
    %v1736 = vsel %vm455, %v1720, 0.0
    %1737 = vadd.xlane.f32.xlu0 %v1736
    %v1738 = vpop.xlane.xlu0 %1737
    %v1739 = vsel %vm455, %v1721, 0.0
    %1740 = vadd.xlane.f32.xlu0 %v1739
    %v1741 = vpop.xlane.xlu0 %1740
    %v1742 = vsel %vm455, %v1722, 0.0
    %1743 = vadd.xlane.f32.xlu0 %v1742
    %v1744 = vpop.xlane.xlu0 %1743
    %v1745 = vsel %vm455, %v1723, 0.0
    %1746 = vadd.xlane.f32.xlu0 %v1745
    %v1747 = vpop.xlane.xlu0 %1746
    %v1748 = vsel %vm455, %v1708, 0.0
    %1749 = vadd.xlane.f32.xlu0 %v1748
    %v1750 = vpop.xlane.xlu0 %1749
    %v1751 = vsel %vm455, %v1709, 0.0
    %1752 = vadd.xlane.f32.xlu0 %v1751
    %v1753 = vpop.xlane.xlu0 %1752
    %v1754 = vsel %vm455, %v1710, 0.0
    %1755 = vadd.xlane.f32.xlu0 %v1754
    %v1756 = vpop.xlane.xlu0 %1755
    %v1757 = vsel %vm455, %v1711, 0.0
    %1758 = vadd.xlane.f32.xlu0 %v1757
    %v1759 = vpop.xlane.xlu0 %1758
    %v1760 = vsel %vm455, %v1712, 0.0
    %1761 = vadd.xlane.f32.xlu0 %v1760
    %v1762 = vpop.xlane.xlu0 %1761
    %v1763 = vsel %vm455, %v1713, 0.0
    %1764 = vadd.xlane.f32.xlu0 %v1763
    %v1765 = vpop.xlane.xlu0 %1764
    %v1766 = vsel %vm455, %v1714, 0.0
    %1767 = vadd.xlane.f32.xlu0 %v1766
    %v1768 = vpop.xlane.xlu0 %1767
    %v1769 = vsel %vm455, %v1715, 0.0
    %1770 = vadd.xlane.f32.xlu0 %v1769
    %v1771 = vpop.xlane.xlu0 %1770
    %v1772 = vsub.f32 %v1726, 1.0
    %v1773 = vsub.f32 %v1729, 1.0
    %v1774 = vsub.f32 %v1732, 1.0
    %v1775 = vsub.f32 %v1735, 1.0
    %v1776 = vsub.f32 %v1738, 1.0
    %v1777 = vsub.f32 %v1741, 1.0
    %v1778 = vsub.f32 %v1744, 1.0
    %v1779 = vsub.f32 %v1747, 1.0
    %v1780 = vmul.f32 %v1772, 0.5
    %v1781 = vmul.f32 %v1773, 0.5
    %v1782 = vmul.f32 %v1774, 0.5
    %v1783 = vmul.f32 %v1775, 0.5
    %v1784 = vmul.f32 %v1776, 0.5
    %v1785 = vmul.f32 %v1777, 0.5
    %v1786 = vmul.f32 %v1778, 0.5
    %v1787 = vmul.f32 %v1779, 0.5
    %v1788 = vrcp.pop %v1750
    %v1789 = vmul.f32 %v1780, %v1788
    %v1790 = vrcp.pop %v1753
    %v1791 = vmul.f32 %v1781, %v1790
    %v1792 = vrcp.pop %v1756
    %v1793 = vmul.f32 %v1782, %v1792
    %v1794 = vrcp.pop %v1759
    %v1795 = vmul.f32 %v1783, %v1794
    %v1796 = vrcp.pop %v1762
    %v1797 = vmul.f32 %v1784, %v1796
    %v1798 = vrcp.pop %v1765
    %v1799 = vmul.f32 %v1785, %v1798
    %v1800 = vrcp.pop %v1768
    %v1801 = vmul.f32 %v1786, %v1800
    %v1802 = vrcp.pop %v1771
    %v1803 = vmul.f32 %v1787, %v1802
    %v1804 = vadd.f32 %v1692, %v1789
    %v1805 = vadd.f32 %v1693, %v1791
    %v1806 = vadd.f32 %v1694, %v1793
    %v1807 = vadd.f32 %v1695, %v1795
    %v1808 = vadd.f32 %v1696, %v1797
    %v1809 = vadd.f32 %v1697, %v1799
    %v1810 = vadd.f32 %v1698, %v1801
    %v1811 = vadd.f32 %v1699, %v1803
    %v1812 = vsub.f32 %v1100, %v1804
    %v1813 = vsub.f32 %v1101, %v1805
    %v1814 = vsub.f32 %v1102, %v1806
    %v1815 = vsub.f32 %v1103, %v1807
    %v1816 = vsub.f32 %v1104, %v1808
    %v1817 = vsub.f32 %v1105, %v1809
    %v1818 = vsub.f32 %v1106, %v1810
    %v1819 = vsub.f32 %v1107, %v1811
    %v1820 = vmax.f32 %v1812, 0.0
    %v1821 = vmax.f32 %v1813, 0.0
    %v1822 = vmax.f32 %v1814, 0.0
    %v1823 = vmax.f32 %v1815, 0.0
    %v1824 = vmax.f32 %v1816, 0.0
    %v1825 = vmax.f32 %v1817, 0.0
    %v1826 = vmax.f32 %v1818, 0.0
    %v1827 = vmax.f32 %v1819, 0.0
    %v1828 = vmul.f32 %v1820, %v1820
    %v1829 = vmul.f32 %v1821, %v1821
    %v1830 = vmul.f32 %v1822, %v1822
    %v1831 = vmul.f32 %v1823, %v1823
    %v1832 = vmul.f32 %v1824, %v1824
    %v1833 = vmul.f32 %v1825, %v1825
    %v1834 = vmul.f32 %v1826, %v1826
    %v1835 = vmul.f32 %v1827, %v1827
    %v1836 = vsel %vm455, %v1828, 0.0
    %1837 = vadd.xlane.f32.xlu0 %v1836
    %v1838 = vpop.xlane.xlu0 %1837
    %v1839 = vsel %vm455, %v1829, 0.0
    %1840 = vadd.xlane.f32.xlu0 %v1839
    %v1841 = vpop.xlane.xlu0 %1840
    %v1842 = vsel %vm455, %v1830, 0.0
    %1843 = vadd.xlane.f32.xlu0 %v1842
    %v1844 = vpop.xlane.xlu0 %1843
    %v1845 = vsel %vm455, %v1831, 0.0
    %1846 = vadd.xlane.f32.xlu0 %v1845
    %v1847 = vpop.xlane.xlu0 %1846
    %v1848 = vsel %vm455, %v1832, 0.0
    %1849 = vadd.xlane.f32.xlu0 %v1848
    %v1850 = vpop.xlane.xlu0 %1849
    %v1851 = vsel %vm455, %v1833, 0.0
    %1852 = vadd.xlane.f32.xlu0 %v1851
    %v1853 = vpop.xlane.xlu0 %1852
    %v1854 = vsel %vm455, %v1834, 0.0
    %1855 = vadd.xlane.f32.xlu0 %v1854
    %v1856 = vpop.xlane.xlu0 %1855
    %v1857 = vsel %vm455, %v1835, 0.0
    %1858 = vadd.xlane.f32.xlu0 %v1857
    %v1859 = vpop.xlane.xlu0 %1858
    %v1860 = vsel %vm455, %v1820, 0.0
    %1861 = vadd.xlane.f32.xlu0 %v1860
    %v1862 = vpop.xlane.xlu0 %1861
    %v1863 = vsel %vm455, %v1821, 0.0
    %1864 = vadd.xlane.f32.xlu0 %v1863
    %v1865 = vpop.xlane.xlu0 %1864
    %v1866 = vsel %vm455, %v1822, 0.0
    %1867 = vadd.xlane.f32.xlu0 %v1866
    %v1868 = vpop.xlane.xlu0 %1867
    %v1869 = vsel %vm455, %v1823, 0.0
    %1870 = vadd.xlane.f32.xlu0 %v1869
    %v1871 = vpop.xlane.xlu0 %1870
    %v1872 = vsel %vm455, %v1824, 0.0
    %1873 = vadd.xlane.f32.xlu0 %v1872
    %v1874 = vpop.xlane.xlu0 %1873
    %v1875 = vsel %vm455, %v1825, 0.0
    %1876 = vadd.xlane.f32.xlu0 %v1875
    %v1877 = vpop.xlane.xlu0 %1876
    %v1878 = vsel %vm455, %v1826, 0.0
    %1879 = vadd.xlane.f32.xlu0 %v1878
    %v1880 = vpop.xlane.xlu0 %1879
    %v1881 = vsel %vm455, %v1827, 0.0
    %1882 = vadd.xlane.f32.xlu0 %v1881
    %v1883 = vpop.xlane.xlu0 %1882
    %v1884 = vsub.f32 %v1838, 1.0
    %v1885 = vsub.f32 %v1841, 1.0
    %v1886 = vsub.f32 %v1844, 1.0
    %v1887 = vsub.f32 %v1847, 1.0
    %v1888 = vsub.f32 %v1850, 1.0
    %v1889 = vsub.f32 %v1853, 1.0
    %v1890 = vsub.f32 %v1856, 1.0
    %v1891 = vsub.f32 %v1859, 1.0
    %v1892 = vmul.f32 %v1884, 0.5
    %v1893 = vmul.f32 %v1885, 0.5
    %v1894 = vmul.f32 %v1886, 0.5
    %v1895 = vmul.f32 %v1887, 0.5
    %v1896 = vmul.f32 %v1888, 0.5
    %v1897 = vmul.f32 %v1889, 0.5
    %v1898 = vmul.f32 %v1890, 0.5
    %v1899 = vmul.f32 %v1891, 0.5
    %v1900 = vrcp.pop %v1862
    %v1901 = vmul.f32 %v1892, %v1900
    %v1902 = vrcp.pop %v1865
    %v1903 = vmul.f32 %v1893, %v1902
    %v1904 = vrcp.pop %v1868
    %v1905 = vmul.f32 %v1894, %v1904
    %v1906 = vrcp.pop %v1871
    %v1907 = vmul.f32 %v1895, %v1906
    %v1908 = vrcp.pop %v1874
    %v1909 = vmul.f32 %v1896, %v1908
    %v1910 = vrcp.pop %v1877
    %v1911 = vmul.f32 %v1897, %v1910
    %v1912 = vrcp.pop %v1880
    %v1913 = vmul.f32 %v1898, %v1912
    %v1914 = vrcp.pop %v1883
    %v1915 = vmul.f32 %v1899, %v1914
    %v1916 = vadd.f32 %v1804, %v1901
    %v1917 = vadd.f32 %v1805, %v1903
    %v1918 = vadd.f32 %v1806, %v1905
    %v1919 = vadd.f32 %v1807, %v1907
    %v1920 = vadd.f32 %v1808, %v1909
    %v1921 = vadd.f32 %v1809, %v1911
    %v1922 = vadd.f32 %v1810, %v1913
    %v1923 = vadd.f32 %v1811, %v1915
    %v1924 = vsub.f32 %v1100, %v1916
    %v1925 = vsub.f32 %v1101, %v1917
    %v1926 = vsub.f32 %v1102, %v1918
    %v1927 = vsub.f32 %v1103, %v1919
    %v1928 = vsub.f32 %v1104, %v1920
    %v1929 = vsub.f32 %v1105, %v1921
    %v1930 = vsub.f32 %v1106, %v1922
    %v1931 = vsub.f32 %v1107, %v1923
    %v1932 = vmax.f32 %v1924, 0.0
    %v1933 = vmax.f32 %v1925, 0.0
    %v1934 = vmax.f32 %v1926, 0.0
    %v1935 = vmax.f32 %v1927, 0.0
    %v1936 = vmax.f32 %v1928, 0.0
    %v1937 = vmax.f32 %v1929, 0.0
    %v1938 = vmax.f32 %v1930, 0.0
    %v1939 = vmax.f32 %v1931, 0.0
    %v1940 = vmul.f32 %v1932, %v1932
    %v1941 = vmul.f32 %v1933, %v1933
    %v1942 = vmul.f32 %v1934, %v1934
    %v1943 = vmul.f32 %v1935, %v1935
    %v1944 = vmul.f32 %v1936, %v1936
    %v1945 = vmul.f32 %v1937, %v1937
    %v1946 = vmul.f32 %v1938, %v1938
    %v1947 = vmul.f32 %v1939, %v1939
    %v1948 = vsel %vm455, %v1940, 0.0
    %1949 = vadd.xlane.f32.xlu0 %v1948
    %v1950 = vpop.xlane.xlu0 %1949
    %v1951 = vsel %vm455, %v1941, 0.0
    %1952 = vadd.xlane.f32.xlu0 %v1951
    %v1953 = vpop.xlane.xlu0 %1952
    %v1954 = vsel %vm455, %v1942, 0.0
    %1955 = vadd.xlane.f32.xlu0 %v1954
    %v1956 = vpop.xlane.xlu0 %1955
    %v1957 = vsel %vm455, %v1943, 0.0
    %1958 = vadd.xlane.f32.xlu0 %v1957
    %v1959 = vpop.xlane.xlu0 %1958
    %v1960 = vsel %vm455, %v1944, 0.0
    %1961 = vadd.xlane.f32.xlu0 %v1960
    %v1962 = vpop.xlane.xlu0 %1961
    %v1963 = vsel %vm455, %v1945, 0.0
    %1964 = vadd.xlane.f32.xlu0 %v1963
    %v1965 = vpop.xlane.xlu0 %1964
    %v1966 = vsel %vm455, %v1946, 0.0
    %1967 = vadd.xlane.f32.xlu0 %v1966
    %v1968 = vpop.xlane.xlu0 %1967
    %v1969 = vsel %vm455, %v1947, 0.0
    %1970 = vadd.xlane.f32.xlu0 %v1969
    %v1971 = vpop.xlane.xlu0 %1970
    %v1972 = vsel %vm455, %v1932, 0.0
    %1973 = vadd.xlane.f32.xlu0 %v1972
    %v1974 = vpop.xlane.xlu0 %1973
    %v1975 = vsel %vm455, %v1933, 0.0
    %1976 = vadd.xlane.f32.xlu0 %v1975
    %v1977 = vpop.xlane.xlu0 %1976
    %v1978 = vsel %vm455, %v1934, 0.0
    %1979 = vadd.xlane.f32.xlu0 %v1978
    %v1980 = vpop.xlane.xlu0 %1979
    %v1981 = vsel %vm455, %v1935, 0.0
    %1982 = vadd.xlane.f32.xlu0 %v1981
    %v1983 = vpop.xlane.xlu0 %1982
    %v1984 = vsel %vm455, %v1936, 0.0
    %1985 = vadd.xlane.f32.xlu0 %v1984
    %v1986 = vpop.xlane.xlu0 %1985
    %v1987 = vsel %vm455, %v1937, 0.0
    %1988 = vadd.xlane.f32.xlu0 %v1987
    %v1989 = vpop.xlane.xlu0 %1988
    %v1990 = vsel %vm455, %v1938, 0.0
    %1991 = vadd.xlane.f32.xlu0 %v1990
    %v1992 = vpop.xlane.xlu0 %1991
    %v1993 = vsel %vm455, %v1939, 0.0
    %1994 = vadd.xlane.f32.xlu0 %v1993
    %v1995 = vpop.xlane.xlu0 %1994
    %v1996 = vsub.f32 %v1950, 1.0
    %v1997 = vsub.f32 %v1953, 1.0
    %v1998 = vsub.f32 %v1956, 1.0
    %v1999 = vsub.f32 %v1959, 1.0
    %v2000 = vsub.f32 %v1962, 1.0
    %v2001 = vsub.f32 %v1965, 1.0
    %v2002 = vsub.f32 %v1968, 1.0
    %v2003 = vsub.f32 %v1971, 1.0
    %v2004 = vmul.f32 %v1996, 0.5
    %v2005 = vmul.f32 %v1997, 0.5
    %v2006 = vmul.f32 %v1998, 0.5
    %v2007 = vmul.f32 %v1999, 0.5
    %v2008 = vmul.f32 %v2000, 0.5
    %v2009 = vmul.f32 %v2001, 0.5
    %v2010 = vmul.f32 %v2002, 0.5
    %v2011 = vmul.f32 %v2003, 0.5
    %v2012 = vrcp.pop %v1974
    %v2013 = vmul.f32 %v2004, %v2012
    %v2014 = vrcp.pop %v1977
    %v2015 = vmul.f32 %v2005, %v2014
    %v2016 = vrcp.pop %v1980
    %v2017 = vmul.f32 %v2006, %v2016
    %v2018 = vrcp.pop %v1983
    %v2019 = vmul.f32 %v2007, %v2018
    %v2020 = vrcp.pop %v1986
    %v2021 = vmul.f32 %v2008, %v2020
    %v2022 = vrcp.pop %v1989
    %v2023 = vmul.f32 %v2009, %v2022
    %v2024 = vrcp.pop %v1992
    %v2025 = vmul.f32 %v2010, %v2024
    %v2026 = vrcp.pop %v1995
    %v2027 = vmul.f32 %v2011, %v2026
    %v2028 = vadd.f32 %v1916, %v2013
    %v2029 = vadd.f32 %v1917, %v2015
    %v2030 = vadd.f32 %v1918, %v2017
    %v2031 = vadd.f32 %v1919, %v2019
    %v2032 = vadd.f32 %v1920, %v2021
    %v2033 = vadd.f32 %v1921, %v2023
    %v2034 = vadd.f32 %v1922, %v2025
    %v2035 = vadd.f32 %v1923, %v2027
    %v2036 = vsub.f32 %v1100, %v2028
    %v2037 = vsub.f32 %v1101, %v2029
    %v2038 = vsub.f32 %v1102, %v2030
    %v2039 = vsub.f32 %v1103, %v2031
    %v2040 = vsub.f32 %v1104, %v2032
    %v2041 = vsub.f32 %v1105, %v2033
    %v2042 = vsub.f32 %v1106, %v2034
    %v2043 = vsub.f32 %v1107, %v2035
    %v2044 = vmax.f32 %v2036, 0.0
    %v2045 = vmax.f32 %v2037, 0.0
    %v2046 = vmax.f32 %v2038, 0.0
    %v2047 = vmax.f32 %v2039, 0.0
    %v2048 = vmax.f32 %v2040, 0.0
    %v2049 = vmax.f32 %v2041, 0.0
    %v2050 = vmax.f32 %v2042, 0.0
    %v2051 = vmax.f32 %v2043, 0.0
    %v2052 = vmul.f32 %v2044, %v2044
    %v2053 = vmul.f32 %v2045, %v2045
    %v2054 = vmul.f32 %v2046, %v2046
    %v2055 = vmul.f32 %v2047, %v2047
    %v2056 = vmul.f32 %v2048, %v2048
    %v2057 = vmul.f32 %v2049, %v2049
    %v2058 = vmul.f32 %v2050, %v2050
    %v2059 = vmul.f32 %v2051, %v2051
    %v2061 = vsel %vm455, %v2052, 0
    %2063 = vmatprep.subr.mxu0 0.0
    %2064 = vmatpush1.msra.mxu0 %v447
    %2065 = vmatprep.subr.mxu0 0.0
    %2066 = vmatpush1.msra.mxu0 0.0
    %2067 = vmatprep.subr.mxu0 0.0
    %2068 = vmatpush1.msra.mxu0 0.0
    %2069 = vmatprep.subr.mxu0 0.0
    %2070 = vmatpush1.msra.mxu0 0.0
    %2071 = vmatprep.subr.mxu0 0.0
    %2072 = vmatpush1.msra.mxu0 0.0
    %2073 = vmatprep.subr.mxu0 0.0
    %2074 = vmatpush1.msra.mxu0 0.0
    %2075 = vmatprep.subr.mxu0 0.0
    %2076 = vmatpush1.msra.mxu0 0.0
    %2077 = vmatprep.subr.mxu0 0.0
    %2078 = vmatpush1.msra.mxu0 0.0
    %2079 = vmatprep.subr.mxu0 0.0
    %2080 = vmatpush1.msra.mxu0 0.0
    %2081 = vmatprep.subr.mxu0 0.0
    %2082 = vmatpush1.msra.mxu0 0.0
    %2083 = vmatprep.subr.mxu0 0.0
    %2084 = vmatpush1.msra.mxu0 0.0
    %2085 = vmatprep.subr.mxu0 0.0
    %2086 = vmatpush1.msra.mxu0 0.0
    %2087 = vmatprep.subr.mxu0 0.0
    %2088 = vmatpush1.msra.mxu0 0.0
    %2089 = vmatprep.subr.mxu0 0.0
    %2090 = vmatpush1.msra.mxu0 0.0
    %2091 = vmatprep.subr.mxu0 0.0
    %2092 = vmatpush1.msra.mxu0 0.0
    %2093 = vmatprep.subr.mxu0 0.0
    %2094 = vmatpush1.msra.mxu0 0.0
    %2095 = vmatprep.subr.mxu0 0.0
    %2096 = vmatpush1.msra.mxu0 0.0
    %2097 = vmatprep.subr.mxu0 0.0
    %2098 = vmatpush1.msra.mxu0 0.0
    %2099 = vmatprep.subr.mxu0 0.0
    %2100 = vmatpush1.msra.mxu0 0.0
    %2101 = vmatprep.subr.mxu0 0.0
    %2102 = vmatpush1.msra.mxu0 0.0
    %2103 = vmatprep.subr.mxu0 0.0
    %2104 = vmatpush1.msra.mxu0 0.0
    %2105 = vmatprep.subr.mxu0 0.0
    %2106 = vmatpush1.msra.mxu0 0.0
    %2107 = vmatprep.subr.mxu0 0.0
    %2108 = vmatpush1.msra.mxu0 0.0
    %2109 = vmatprep.subr.mxu0 0.0
    %2110 = vmatpush1.msra.mxu0 0.0
    %2111 = vmatprep.subr.mxu0 0.0
    %2112 = vmatpush1.msra.mxu0 0.0
    %2113 = vmatprep.subr.mxu0 0.0
    %2114 = vmatpush1.msra.mxu0 0.0
    %2115 = vmatprep.subr.mxu0 0.0
    %2116 = vmatpush1.msra.mxu0 0.0
    %2117 = vmatprep.subr.mxu0 0.0
    %2118 = vmatpush1.msra.mxu0 0.0
    %2119 = vmatprep.subr.mxu0 0.0
    %2120 = vmatpush1.msra.mxu0 0.0
    %2121 = vmatprep.subr.mxu0 0.0
    %2122 = vmatpush1.msra.mxu0 0.0
    %2123 = vmatprep.subr.mxu0 0.0
    %2124 = vmatpush1.msra.mxu0 0.0
    %2125 = vmatprep.subr.mxu0 0.0
    %2126 = vmatpush1.msra.mxu0 0.0
    %2127 = vmatprep.mubr.f32.mxu0 0.0
    %2128 = vmatmul.mubr.f32.gmra.mrb[0].mxu0 %v2061
    %v2129 = vpop.f32.mrb[0].mxu0
    %v2130 = vadd.f32 0.0, %v2129
    %v2131 = vpop.f32.mrb[0].mxu0
    %2132 = vdwg.mxu0
    %2134 = vrot.lane.b32.xlu0 %v447, 120
    %v2135 = vpop.permute.xlu0 %2134
    %v2138 = vsel %vm455, %v2053, 0
    %2140 = vmatprep.subr.mxu0 0.0
    %2141 = vmatpush1.msra.mxu0 %v2135
    %2142 = vmatprep.subr.mxu0 0.0
    %2143 = vmatpush1.msra.mxu0 0.0
    %2144 = vmatprep.subr.mxu0 0.0
    %2145 = vmatpush1.msra.mxu0 0.0
    %2146 = vmatprep.subr.mxu0 0.0
    %2147 = vmatpush1.msra.mxu0 0.0
    %2148 = vmatprep.subr.mxu0 0.0
    %2149 = vmatpush1.msra.mxu0 0.0
    %2150 = vmatprep.subr.mxu0 0.0
    %2151 = vmatpush1.msra.mxu0 0.0
    %2152 = vmatprep.subr.mxu0 0.0
    %2153 = vmatpush1.msra.mxu0 0.0
    %2154 = vmatprep.subr.mxu0 0.0
    %2155 = vmatpush1.msra.mxu0 0.0
    %2156 = vmatprep.subr.mxu0 0.0
    %2157 = vmatpush1.msra.mxu0 0.0
    %2158 = vmatprep.subr.mxu0 0.0
    %2159 = vmatpush1.msra.mxu0 0.0
    %2160 = vmatprep.subr.mxu0 0.0
    %2161 = vmatpush1.msra.mxu0 0.0
    %2162 = vmatprep.subr.mxu0 0.0
    %2163 = vmatpush1.msra.mxu0 0.0
    %2164 = vmatprep.subr.mxu0 0.0
    %2165 = vmatpush1.msra.mxu0 0.0
    %2166 = vmatprep.subr.mxu0 0.0
    %2167 = vmatpush1.msra.mxu0 0.0
    %2168 = vmatprep.subr.mxu0 0.0
    %2169 = vmatpush1.msra.mxu0 0.0
    %2170 = vmatprep.subr.mxu0 0.0
    %2171 = vmatpush1.msra.mxu0 0.0
    %2172 = vmatprep.subr.mxu0 0.0
    %2173 = vmatpush1.msra.mxu0 0.0
    %2174 = vmatprep.subr.mxu0 0.0
    %2175 = vmatpush1.msra.mxu0 0.0
    %2176 = vmatprep.subr.mxu0 0.0
    %2177 = vmatpush1.msra.mxu0 0.0
    %2178 = vmatprep.subr.mxu0 0.0
    %2179 = vmatpush1.msra.mxu0 0.0
    %2180 = vmatprep.subr.mxu0 0.0
    %2181 = vmatpush1.msra.mxu0 0.0
    %2182 = vmatprep.subr.mxu0 0.0
    %2183 = vmatpush1.msra.mxu0 0.0
    %2184 = vmatprep.subr.mxu0 0.0
    %2185 = vmatpush1.msra.mxu0 0.0
    %2186 = vmatprep.subr.mxu0 0.0
    %2187 = vmatpush1.msra.mxu0 0.0
    %2188 = vmatprep.subr.mxu0 0.0
    %2189 = vmatpush1.msra.mxu0 0.0
    %2190 = vmatprep.subr.mxu0 0.0
    %2191 = vmatpush1.msra.mxu0 0.0
    %2192 = vmatprep.subr.mxu0 0.0
    %2193 = vmatpush1.msra.mxu0 0.0
    %2194 = vmatprep.subr.mxu0 0.0
    %2195 = vmatpush1.msra.mxu0 0.0
    %2196 = vmatprep.subr.mxu0 0.0
    %2197 = vmatpush1.msra.mxu0 0.0
    %2198 = vmatprep.subr.mxu0 0.0
    %2199 = vmatpush1.msra.mxu0 0.0
    %2200 = vmatprep.subr.mxu0 0.0
    %2201 = vmatpush1.msra.mxu0 0.0
    %2202 = vmatprep.subr.mxu0 0.0
    %2203 = vmatpush1.msra.mxu0 0.0
    %2204 = vmatprep.mubr.f32.mxu0 0.0
    %2205 = vmatmul.mubr.f32.gmra.mrb[0].mxu0 %v2138
    %v2206 = vpop.f32.mrb[0].mxu0
    %v2207 = vadd.f32 0.0, %v2206
    %v2208 = vpop.f32.mrb[0].mxu0
    %2209 = vdwg.mxu0
    %2210 = vrot.lane.b32.xlu0 %v447, 112
    %v2211 = vpop.permute.xlu0 %2210
    %v2214 = vsel %vm455, %v2054, 0
    %2216 = vmatprep.subr.mxu0 0.0
    %2217 = vmatpush1.msra.mxu0 %v2211
    %2218 = vmatprep.subr.mxu0 0.0
    %2219 = vmatpush1.msra.mxu0 0.0
    %2220 = vmatprep.subr.mxu0 0.0
    %2221 = vmatpush1.msra.mxu0 0.0
    %2222 = vmatprep.subr.mxu0 0.0
    %2223 = vmatpush1.msra.mxu0 0.0
    %2224 = vmatprep.subr.mxu0 0.0
    %2225 = vmatpush1.msra.mxu0 0.0
    %2226 = vmatprep.subr.mxu0 0.0
    %2227 = vmatpush1.msra.mxu0 0.0
    %2228 = vmatprep.subr.mxu0 0.0
    %2229 = vmatpush1.msra.mxu0 0.0
    %2230 = vmatprep.subr.mxu0 0.0
    %2231 = vmatpush1.msra.mxu0 0.0
    %2232 = vmatprep.subr.mxu0 0.0
    %2233 = vmatpush1.msra.mxu0 0.0
    %2234 = vmatprep.subr.mxu0 0.0
    %2235 = vmatpush1.msra.mxu0 0.0
    %2236 = vmatprep.subr.mxu0 0.0
    %2237 = vmatpush1.msra.mxu0 0.0
    %2238 = vmatprep.subr.mxu0 0.0
    %2239 = vmatpush1.msra.mxu0 0.0
    %2240 = vmatprep.subr.mxu0 0.0
    %2241 = vmatpush1.msra.mxu0 0.0
    %2242 = vmatprep.subr.mxu0 0.0
    %2243 = vmatpush1.msra.mxu0 0.0
    %2244 = vmatprep.subr.mxu0 0.0
    %2245 = vmatpush1.msra.mxu0 0.0
    %2246 = vmatprep.subr.mxu0 0.0
    %2247 = vmatpush1.msra.mxu0 0.0
    %2248 = vmatprep.subr.mxu0 0.0
    %2249 = vmatpush1.msra.mxu0 0.0
    %2250 = vmatprep.subr.mxu0 0.0
    %2251 = vmatpush1.msra.mxu0 0.0
    %2252 = vmatprep.subr.mxu0 0.0
    %2253 = vmatpush1.msra.mxu0 0.0
    %2254 = vmatprep.subr.mxu0 0.0
    %2255 = vmatpush1.msra.mxu0 0.0
    %2256 = vmatprep.subr.mxu0 0.0
    %2257 = vmatpush1.msra.mxu0 0.0
    %2258 = vmatprep.subr.mxu0 0.0
    %2259 = vmatpush1.msra.mxu0 0.0
    %2260 = vmatprep.subr.mxu0 0.0
    %2261 = vmatpush1.msra.mxu0 0.0
    %2262 = vmatprep.subr.mxu0 0.0
    %2263 = vmatpush1.msra.mxu0 0.0
    %2264 = vmatprep.subr.mxu0 0.0
    %2265 = vmatpush1.msra.mxu0 0.0
    %2266 = vmatprep.subr.mxu0 0.0
    %2267 = vmatpush1.msra.mxu0 0.0
    %2268 = vmatprep.subr.mxu0 0.0
    %2269 = vmatpush1.msra.mxu0 0.0
    %2270 = vmatprep.subr.mxu0 0.0
    %2271 = vmatpush1.msra.mxu0 0.0
    %2272 = vmatprep.subr.mxu0 0.0
    %2273 = vmatpush1.msra.mxu0 0.0
    %2274 = vmatprep.subr.mxu0 0.0
    %2275 = vmatpush1.msra.mxu0 0.0
    %2276 = vmatprep.subr.mxu0 0.0
    %2277 = vmatpush1.msra.mxu0 0.0
    %2278 = vmatprep.subr.mxu0 0.0
    %2279 = vmatpush1.msra.mxu0 0.0
    %2280 = vmatprep.mubr.f32.mxu0 0.0
    %2281 = vmatmul.mubr.f32.gmra.mrb[0].mxu0 %v2214
    %v2282 = vpop.f32.mrb[0].mxu0
    %v2283 = vadd.f32 0.0, %v2282
    %v2284 = vpop.f32.mrb[0].mxu0
    %2285 = vdwg.mxu0
    %2286 = vrot.lane.b32.xlu0 %v447, 104
    %v2287 = vpop.permute.xlu0 %2286
    %v2290 = vsel %vm455, %v2055, 0
    %2292 = vmatprep.subr.mxu0 0.0
    %2293 = vmatpush1.msra.mxu0 %v2287
    %2294 = vmatprep.subr.mxu0 0.0
    %2295 = vmatpush1.msra.mxu0 0.0
    %2296 = vmatprep.subr.mxu0 0.0
    %2297 = vmatpush1.msra.mxu0 0.0
    %2298 = vmatprep.subr.mxu0 0.0
    %2299 = vmatpush1.msra.mxu0 0.0
    %2300 = vmatprep.subr.mxu0 0.0
    %2301 = vmatpush1.msra.mxu0 0.0
    %2302 = vmatprep.subr.mxu0 0.0
    %2303 = vmatpush1.msra.mxu0 0.0
    %2304 = vmatprep.subr.mxu0 0.0
    %2305 = vmatpush1.msra.mxu0 0.0
    %2306 = vmatprep.subr.mxu0 0.0
    %2307 = vmatpush1.msra.mxu0 0.0
    %2308 = vmatprep.subr.mxu0 0.0
    %2309 = vmatpush1.msra.mxu0 0.0
    %2310 = vmatprep.subr.mxu0 0.0
    %2311 = vmatpush1.msra.mxu0 0.0
    %2312 = vmatprep.subr.mxu0 0.0
    %2313 = vmatpush1.msra.mxu0 0.0
    %2314 = vmatprep.subr.mxu0 0.0
    %2315 = vmatpush1.msra.mxu0 0.0
    %2316 = vmatprep.subr.mxu0 0.0
    %2317 = vmatpush1.msra.mxu0 0.0
    %2318 = vmatprep.subr.mxu0 0.0
    %2319 = vmatpush1.msra.mxu0 0.0
    %2320 = vmatprep.subr.mxu0 0.0
    %2321 = vmatpush1.msra.mxu0 0.0
    %2322 = vmatprep.subr.mxu0 0.0
    %2323 = vmatpush1.msra.mxu0 0.0
    %2324 = vmatprep.subr.mxu0 0.0
    %2325 = vmatpush1.msra.mxu0 0.0
    %2326 = vmatprep.subr.mxu0 0.0
    %2327 = vmatpush1.msra.mxu0 0.0
    %2328 = vmatprep.subr.mxu0 0.0
    %2329 = vmatpush1.msra.mxu0 0.0
    %2330 = vmatprep.subr.mxu0 0.0
    %2331 = vmatpush1.msra.mxu0 0.0
    %2332 = vmatprep.subr.mxu0 0.0
    %2333 = vmatpush1.msra.mxu0 0.0
    %2334 = vmatprep.subr.mxu0 0.0
    %2335 = vmatpush1.msra.mxu0 0.0
    %2336 = vmatprep.subr.mxu0 0.0
    %2337 = vmatpush1.msra.mxu0 0.0
    %2338 = vmatprep.subr.mxu0 0.0
    %2339 = vmatpush1.msra.mxu0 0.0
    %2340 = vmatprep.subr.mxu0 0.0
    %2341 = vmatpush1.msra.mxu0 0.0
    %2342 = vmatprep.subr.mxu0 0.0
    %2343 = vmatpush1.msra.mxu0 0.0
    %2344 = vmatprep.subr.mxu0 0.0
    %2345 = vmatpush1.msra.mxu0 0.0
    %2346 = vmatprep.subr.mxu0 0.0
    %2347 = vmatpush1.msra.mxu0 0.0
    %2348 = vmatprep.subr.mxu0 0.0
    %2349 = vmatpush1.msra.mxu0 0.0
    %2350 = vmatprep.subr.mxu0 0.0
    %2351 = vmatpush1.msra.mxu0 0.0
    %2352 = vmatprep.subr.mxu0 0.0
    %2353 = vmatpush1.msra.mxu0 0.0
    %2354 = vmatprep.subr.mxu0 0.0
    %2355 = vmatpush1.msra.mxu0 0.0
    %2356 = vmatprep.mubr.f32.mxu0 0.0
    %2357 = vmatmul.mubr.f32.gmra.mrb[0].mxu0 %v2290
    %v2358 = vpop.f32.mrb[0].mxu0
    %v2359 = vadd.f32 0.0, %v2358
    %v2360 = vpop.f32.mrb[0].mxu0
    %2361 = vdwg.mxu0
    %2363 = vrot.lane.b32.xlu0 %v2207, 8
    %v2364 = vpop.permute.xlu0 %2363
    %2367 = vrot.lane.b32.xlu0 %v2283, 16
    %v2368 = vpop.permute.xlu0 %2367
    %2371 = vrot.lane.b32.xlu0 %v2359, 24
    %v2372 = vpop.permute.xlu0 %2371
    %v2374 = vsel %vm455, %v2130, %v2364
    %vm2375 = vcmask 130048
    %v2376 = vsel %vm2375, %v2374, %v2368
    %vm2377 = vcmask 195584
    %v2378 = vsel %vm2377, %v2376, %v2372
    %v2380 = vsel %vm455, %v2056, 0
    %2382 = vmatprep.subr.mxu0 0.0
    %2383 = vmatpush1.msra.mxu0 %v452
    %2384 = vmatprep.subr.mxu0 0.0
    %2385 = vmatpush1.msra.mxu0 0.0
    %2386 = vmatprep.subr.mxu0 0.0
    %2387 = vmatpush1.msra.mxu0 0.0
    %2388 = vmatprep.subr.mxu0 0.0
    %2389 = vmatpush1.msra.mxu0 0.0
    %2390 = vmatprep.subr.mxu0 0.0
    %2391 = vmatpush1.msra.mxu0 0.0
    %2392 = vmatprep.subr.mxu0 0.0
    %2393 = vmatpush1.msra.mxu0 0.0
    %2394 = vmatprep.subr.mxu0 0.0
    %2395 = vmatpush1.msra.mxu0 0.0
    %2396 = vmatprep.subr.mxu0 0.0
    %2397 = vmatpush1.msra.mxu0 0.0
    %2398 = vmatprep.subr.mxu0 0.0
    %2399 = vmatpush1.msra.mxu0 0.0
    %2400 = vmatprep.subr.mxu0 0.0
    %2401 = vmatpush1.msra.mxu0 0.0
    %2402 = vmatprep.subr.mxu0 0.0
    %2403 = vmatpush1.msra.mxu0 0.0
    %2404 = vmatprep.subr.mxu0 0.0
    %2405 = vmatpush1.msra.mxu0 0.0
    %2406 = vmatprep.subr.mxu0 0.0
    %2407 = vmatpush1.msra.mxu0 0.0
    %2408 = vmatprep.subr.mxu0 0.0
    %2409 = vmatpush1.msra.mxu0 0.0
    %2410 = vmatprep.subr.mxu0 0.0
    %2411 = vmatpush1.msra.mxu0 0.0
    %2412 = vmatprep.subr.mxu0 0.0
    %2413 = vmatpush1.msra.mxu0 0.0
    %2414 = vmatprep.subr.mxu0 0.0
    %2415 = vmatpush1.msra.mxu0 0.0
    %2416 = vmatprep.subr.mxu0 0.0
    %2417 = vmatpush1.msra.mxu0 0.0
    %2418 = vmatprep.subr.mxu0 0.0
    %2419 = vmatpush1.msra.mxu0 0.0
    %2420 = vmatprep.subr.mxu0 0.0
    %2421 = vmatpush1.msra.mxu0 0.0
    %2422 = vmatprep.subr.mxu0 0.0
    %2423 = vmatpush1.msra.mxu0 0.0
    %2424 = vmatprep.subr.mxu0 0.0
    %2425 = vmatpush1.msra.mxu0 0.0
    %2426 = vmatprep.subr.mxu0 0.0
    %2427 = vmatpush1.msra.mxu0 0.0
    %2428 = vmatprep.subr.mxu0 0.0
    %2429 = vmatpush1.msra.mxu0 0.0
    %2430 = vmatprep.subr.mxu0 0.0
    %2431 = vmatpush1.msra.mxu0 0.0
    %2432 = vmatprep.subr.mxu0 0.0
    %2433 = vmatpush1.msra.mxu0 0.0
    %2434 = vmatprep.subr.mxu0 0.0
    %2435 = vmatpush1.msra.mxu0 0.0
    %2436 = vmatprep.subr.mxu0 0.0
    %2437 = vmatpush1.msra.mxu0 0.0
    %2438 = vmatprep.subr.mxu0 0.0
    %2439 = vmatpush1.msra.mxu0 0.0
    %2440 = vmatprep.subr.mxu0 0.0
    %2441 = vmatpush1.msra.mxu0 0.0
    %2442 = vmatprep.subr.mxu0 0.0
    %2443 = vmatpush1.msra.mxu0 0.0
    %2444 = vmatprep.subr.mxu0 0.0
    %2445 = vmatpush1.msra.mxu0 0.0
    %2446 = vmatprep.mubr.f32.mxu0 0.0
    %2447 = vmatmul.mubr.f32.gmra.mrb[0].mxu0 %v2380
    %v2448 = vpop.f32.mrb[0].mxu0
    %v2449 = vadd.f32 0.0, %v2448
    %v2450 = vpop.f32.mrb[0].mxu0
    %2451 = vdwg.mxu0
    %2453 = vrot.lane.b32.xlu0 %v452, 120
    %v2454 = vpop.permute.xlu0 %2453
    %v2457 = vsel %vm455, %v2057, 0
    %2459 = vmatprep.subr.mxu0 0.0
    %2460 = vmatpush1.msra.mxu0 %v2454
    %2461 = vmatprep.subr.mxu0 0.0
    %2462 = vmatpush1.msra.mxu0 0.0
    %2463 = vmatprep.subr.mxu0 0.0
    %2464 = vmatpush1.msra.mxu0 0.0
    %2465 = vmatprep.subr.mxu0 0.0
    %2466 = vmatpush1.msra.mxu0 0.0
    %2467 = vmatprep.subr.mxu0 0.0
    %2468 = vmatpush1.msra.mxu0 0.0
    %2469 = vmatprep.subr.mxu0 0.0
    %2470 = vmatpush1.msra.mxu0 0.0
    %2471 = vmatprep.subr.mxu0 0.0
    %2472 = vmatpush1.msra.mxu0 0.0
    %2473 = vmatprep.subr.mxu0 0.0
    %2474 = vmatpush1.msra.mxu0 0.0
    %2475 = vmatprep.subr.mxu0 0.0
    %2476 = vmatpush1.msra.mxu0 0.0
    %2477 = vmatprep.subr.mxu0 0.0
    %2478 = vmatpush1.msra.mxu0 0.0
    %2479 = vmatprep.subr.mxu0 0.0
    %2480 = vmatpush1.msra.mxu0 0.0
    %2481 = vmatprep.subr.mxu0 0.0
    %2482 = vmatpush1.msra.mxu0 0.0
    %2483 = vmatprep.subr.mxu0 0.0
    %2484 = vmatpush1.msra.mxu0 0.0
    %2485 = vmatprep.subr.mxu0 0.0
    %2486 = vmatpush1.msra.mxu0 0.0
    %2487 = vmatprep.subr.mxu0 0.0
    %2488 = vmatpush1.msra.mxu0 0.0
    %2489 = vmatprep.subr.mxu0 0.0
    %2490 = vmatpush1.msra.mxu0 0.0
    %2491 = vmatprep.subr.mxu0 0.0
    %2492 = vmatpush1.msra.mxu0 0.0
    %2493 = vmatprep.subr.mxu0 0.0
    %2494 = vmatpush1.msra.mxu0 0.0
    %2495 = vmatprep.subr.mxu0 0.0
    %2496 = vmatpush1.msra.mxu0 0.0
    %2497 = vmatprep.subr.mxu0 0.0
    %2498 = vmatpush1.msra.mxu0 0.0
    %2499 = vmatprep.subr.mxu0 0.0
    %2500 = vmatpush1.msra.mxu0 0.0
    %2501 = vmatprep.subr.mxu0 0.0
    %2502 = vmatpush1.msra.mxu0 0.0
    %2503 = vmatprep.subr.mxu0 0.0
    %2504 = vmatpush1.msra.mxu0 0.0
    %2505 = vmatprep.subr.mxu0 0.0
    %2506 = vmatpush1.msra.mxu0 0.0
    %2507 = vmatprep.subr.mxu0 0.0
    %2508 = vmatpush1.msra.mxu0 0.0
    %2509 = vmatprep.subr.mxu0 0.0
    %2510 = vmatpush1.msra.mxu0 0.0
    %2511 = vmatprep.subr.mxu0 0.0
    %2512 = vmatpush1.msra.mxu0 0.0
    %2513 = vmatprep.subr.mxu0 0.0
    %2514 = vmatpush1.msra.mxu0 0.0
    %2515 = vmatprep.subr.mxu0 0.0
    %2516 = vmatpush1.msra.mxu0 0.0
    %2517 = vmatprep.subr.mxu0 0.0
    %2518 = vmatpush1.msra.mxu0 0.0
    %2519 = vmatprep.subr.mxu0 0.0
    %2520 = vmatpush1.msra.mxu0 0.0
    %2521 = vmatprep.subr.mxu0 0.0
    %2522 = vmatpush1.msra.mxu0 0.0
    %2523 = vmatprep.mubr.f32.mxu0 0.0
    %2524 = vmatmul.mubr.f32.gmra.mrb[0].mxu0 %v2457
    %v2525 = vpop.f32.mrb[0].mxu0
    %v2526 = vadd.f32 0.0, %v2525
    %v2527 = vpop.f32.mrb[0].mxu0
    %2528 = vdwg.mxu0
    %2529 = vrot.lane.b32.xlu0 %v452, 112
    %v2530 = vpop.permute.xlu0 %2529
    %v2533 = vsel %vm455, %v2058, 0
    %2535 = vmatprep.subr.mxu0 0.0
    %2536 = vmatpush1.msra.mxu0 %v2530
    %2537 = vmatprep.subr.mxu0 0.0
    %2538 = vmatpush1.msra.mxu0 0.0
    %2539 = vmatprep.subr.mxu0 0.0
    %2540 = vmatpush1.msra.mxu0 0.0
    %2541 = vmatprep.subr.mxu0 0.0
    %2542 = vmatpush1.msra.mxu0 0.0
    %2543 = vmatprep.subr.mxu0 0.0
    %2544 = vmatpush1.msra.mxu0 0.0
    %2545 = vmatprep.subr.mxu0 0.0
    %2546 = vmatpush1.msra.mxu0 0.0
    %2547 = vmatprep.subr.mxu0 0.0
    %2548 = vmatpush1.msra.mxu0 0.0
    %2549 = vmatprep.subr.mxu0 0.0
    %2550 = vmatpush1.msra.mxu0 0.0
    %2551 = vmatprep.subr.mxu0 0.0
    %2552 = vmatpush1.msra.mxu0 0.0
    %2553 = vmatprep.subr.mxu0 0.0
    %2554 = vmatpush1.msra.mxu0 0.0
    %2555 = vmatprep.subr.mxu0 0.0
    %2556 = vmatpush1.msra.mxu0 0.0
    %2557 = vmatprep.subr.mxu0 0.0
    %2558 = vmatpush1.msra.mxu0 0.0
    %2559 = vmatprep.subr.mxu0 0.0
    %2560 = vmatpush1.msra.mxu0 0.0
    %2561 = vmatprep.subr.mxu0 0.0
    %2562 = vmatpush1.msra.mxu0 0.0
    %2563 = vmatprep.subr.mxu0 0.0
    %2564 = vmatpush1.msra.mxu0 0.0
    %2565 = vmatprep.subr.mxu0 0.0
    %2566 = vmatpush1.msra.mxu0 0.0
    %2567 = vmatprep.subr.mxu0 0.0
    %2568 = vmatpush1.msra.mxu0 0.0
    %2569 = vmatprep.subr.mxu0 0.0
    %2570 = vmatpush1.msra.mxu0 0.0
    %2571 = vmatprep.subr.mxu0 0.0
    %2572 = vmatpush1.msra.mxu0 0.0
    %2573 = vmatprep.subr.mxu0 0.0
    %2574 = vmatpush1.msra.mxu0 0.0
    %2575 = vmatprep.subr.mxu0 0.0
    %2576 = vmatpush1.msra.mxu0 0.0
    %2577 = vmatprep.subr.mxu0 0.0
    %2578 = vmatpush1.msra.mxu0 0.0
    %2579 = vmatprep.subr.mxu0 0.0
    %2580 = vmatpush1.msra.mxu0 0.0
    %2581 = vmatprep.subr.mxu0 0.0
    %2582 = vmatpush1.msra.mxu0 0.0
    %2583 = vmatprep.subr.mxu0 0.0
    %2584 = vmatpush1.msra.mxu0 0.0
    %2585 = vmatprep.subr.mxu0 0.0
    %2586 = vmatpush1.msra.mxu0 0.0
    %2587 = vmatprep.subr.mxu0 0.0
    %2588 = vmatpush1.msra.mxu0 0.0
    %2589 = vmatprep.subr.mxu0 0.0
    %2590 = vmatpush1.msra.mxu0 0.0
    %2591 = vmatprep.subr.mxu0 0.0
    %2592 = vmatpush1.msra.mxu0 0.0
    %2593 = vmatprep.subr.mxu0 0.0
    %2594 = vmatpush1.msra.mxu0 0.0
    %2595 = vmatprep.subr.mxu0 0.0
    %2596 = vmatpush1.msra.mxu0 0.0
    %2597 = vmatprep.subr.mxu0 0.0
    %2598 = vmatpush1.msra.mxu0 0.0
    %2599 = vmatprep.mubr.f32.mxu0 0.0
    %2600 = vmatmul.mubr.f32.gmra.mrb[0].mxu0 %v2533
    %v2601 = vpop.f32.mrb[0].mxu0
    %v2602 = vadd.f32 0.0, %v2601
    %v2603 = vpop.f32.mrb[0].mxu0
    %2604 = vdwg.mxu0
    %2605 = vrot.lane.b32.xlu0 %v452, 104
    %v2606 = vpop.permute.xlu0 %2605
    %v2609 = vsel %vm455, %v2059, 0
    %2611 = vmatprep.subr.mxu0 0.0
    %2612 = vmatpush1.msra.mxu0 %v2606
    %2613 = vmatprep.subr.mxu0 0.0
    %2614 = vmatpush1.msra.mxu0 0.0
    %2615 = vmatprep.subr.mxu0 0.0
    %2616 = vmatpush1.msra.mxu0 0.0
    %2617 = vmatprep.subr.mxu0 0.0
    %2618 = vmatpush1.msra.mxu0 0.0
    %2619 = vmatprep.subr.mxu0 0.0
    %2620 = vmatpush1.msra.mxu0 0.0
    %2621 = vmatprep.subr.mxu0 0.0
    %2622 = vmatpush1.msra.mxu0 0.0
    %2623 = vmatprep.subr.mxu0 0.0
    %2624 = vmatpush1.msra.mxu0 0.0
    %2625 = vmatprep.subr.mxu0 0.0
    %2626 = vmatpush1.msra.mxu0 0.0
    %2627 = vmatprep.subr.mxu0 0.0
    %2628 = vmatpush1.msra.mxu0 0.0
    %2629 = vmatprep.subr.mxu0 0.0
    %2630 = vmatpush1.msra.mxu0 0.0
    %2631 = vmatprep.subr.mxu0 0.0
    %2632 = vmatpush1.msra.mxu0 0.0
    %2633 = vmatprep.subr.mxu0 0.0
    %2634 = vmatpush1.msra.mxu0 0.0
    %2635 = vmatprep.subr.mxu0 0.0
    %2636 = vmatpush1.msra.mxu0 0.0
    %2637 = vmatprep.subr.mxu0 0.0
    %2638 = vmatpush1.msra.mxu0 0.0
    %2639 = vmatprep.subr.mxu0 0.0
    %2640 = vmatpush1.msra.mxu0 0.0
    %2641 = vmatprep.subr.mxu0 0.0
    %2642 = vmatpush1.msra.mxu0 0.0
    %2643 = vmatprep.subr.mxu0 0.0
    %2644 = vmatpush1.msra.mxu0 0.0
    %2645 = vmatprep.subr.mxu0 0.0
    %2646 = vmatpush1.msra.mxu0 0.0
    %2647 = vmatprep.subr.mxu0 0.0
    %2648 = vmatpush1.msra.mxu0 0.0
    %2649 = vmatprep.subr.mxu0 0.0
    %2650 = vmatpush1.msra.mxu0 0.0
    %2651 = vmatprep.subr.mxu0 0.0
    %2652 = vmatpush1.msra.mxu0 0.0
    %2653 = vmatprep.subr.mxu0 0.0
    %2654 = vmatpush1.msra.mxu0 0.0
    %2655 = vmatprep.subr.mxu0 0.0
    %2656 = vmatpush1.msra.mxu0 0.0
    %2657 = vmatprep.subr.mxu0 0.0
    %2658 = vmatpush1.msra.mxu0 0.0
    %2659 = vmatprep.subr.mxu0 0.0
    %2660 = vmatpush1.msra.mxu0 0.0
    %2661 = vmatprep.subr.mxu0 0.0
    %2662 = vmatpush1.msra.mxu0 0.0
    %2663 = vmatprep.subr.mxu0 0.0
    %2664 = vmatpush1.msra.mxu0 0.0
    %2665 = vmatprep.subr.mxu0 0.0
    %2666 = vmatpush1.msra.mxu0 0.0
    %2667 = vmatprep.subr.mxu0 0.0
    %2668 = vmatpush1.msra.mxu0 0.0
    %2669 = vmatprep.subr.mxu0 0.0
    %2670 = vmatpush1.msra.mxu0 0.0
    %2671 = vmatprep.subr.mxu0 0.0
    %2672 = vmatpush1.msra.mxu0 0.0
    %2673 = vmatprep.subr.mxu0 0.0
    %2674 = vmatpush1.msra.mxu0 0.0
    %2675 = vmatprep.mubr.f32.mxu0 0.0
    %2676 = vmatmul.mubr.f32.gmra.mrb[0].mxu0 %v2609
    %v2677 = vpop.f32.mrb[0].mxu0
    %v2678 = vadd.f32 0.0, %v2677
    %v2679 = vpop.f32.mrb[0].mxu0
    %2680 = vdwg.mxu0
    %2682 = vrot.lane.b32.xlu0 %v2526, 8
    %v2683 = vpop.permute.xlu0 %2682
    %2686 = vrot.lane.b32.xlu0 %v2602, 16
    %v2687 = vpop.permute.xlu0 %2686
    %2690 = vrot.lane.b32.xlu0 %v2678, 24
    %v2691 = vpop.permute.xlu0 %2690
    %v2693 = vsel %vm455, %v2449, %v2683
    %v2694 = vsel %vm2375, %v2693, %v2687
    %v2695 = vsel %vm2377, %v2694, %v2691
    %v2696 = vld [vmem:[#allocation13] sm:$0xff]
    %v2697 = vld [vmem:[#allocation13 + $0x8] sm:$0xff]
    %v2698 = vld [vmem:[#allocation13 + $0x10] sm:$0xff]
    %v2699 = vld [vmem:[#allocation13 + $0x18] sm:$0xff]
    %v2700 = vld [vmem:[%s10] sm:$0x1]
    %v2702 = vlaneseq
    %v2703 = vshrl.u32 %v2702, 7
    %v2704 = vsub.s32 0, %v2703
    %v2705 = vrot.slane %v2700, %v2704
    %v2708 = vsel %vm151, %v2378, 0
    %v2711 = vsel %vm151, %v2695, 0
    %v2714 = vsel %vm151, %v2696, 0
    %v2717 = vsel %vm151, %v2697, 0
    %v2720 = vsel %vm151, %v2698, 0
    %v2723 = vsel %vm151, %v2699, 0
    %2725 = vmatprep.subr.mxu0 0.0
    %2726 = vmatpush1.xpose.msra.mxu0 %v2714
    %2727 = vmatprep.subr.mxu0 0.0
    %2728 = vmatpush1.xpose.msra.mxu0 %v2717
    %2729 = vmatprep.subr.mxu0 0.0
    %2730 = vmatpush1.xpose.msra.mxu0 %v2720
    %2731 = vmatprep.subr.mxu0 0.0
    %2732 = vmatpush1.xpose.msra.mxu0 %v2723
    %2733 = vmatprep.subr.mxu0 0.0
    %2734 = vmatpush1.xpose.msra.mxu0 0.0
    %2735 = vmatprep.subr.mxu0 0.0
    %2736 = vmatpush1.xpose.msra.mxu0 0.0
    %2737 = vmatprep.subr.mxu0 0.0
    %2738 = vmatpush1.xpose.msra.mxu0 0.0
    %2739 = vmatprep.subr.mxu0 0.0
    %2740 = vmatpush1.xpose.msra.mxu0 0.0
    %2741 = vmatprep.subr.mxu0 0.0
    %2742 = vmatpush1.xpose.msra.mxu0 0.0
    %2743 = vmatprep.subr.mxu0 0.0
    %2744 = vmatpush1.xpose.msra.mxu0 0.0
    %2745 = vmatprep.subr.mxu0 0.0
    %2746 = vmatpush1.xpose.msra.mxu0 0.0
    %2747 = vmatprep.subr.mxu0 0.0
    %2748 = vmatpush1.xpose.msra.mxu0 0.0
    %2749 = vmatprep.subr.mxu0 0.0
    %2750 = vmatpush1.xpose.msra.mxu0 0.0
    %2751 = vmatprep.subr.mxu0 0.0
    %2752 = vmatpush1.xpose.msra.mxu0 0.0
    %2753 = vmatprep.subr.mxu0 0.0
    %2754 = vmatpush1.xpose.msra.mxu0 0.0
    %2755 = vmatprep.subr.mxu0 0.0
    %2756 = vmatpush1.xpose.msra.mxu0 0.0
    %2757 = vmatprep.subr.mxu0 0.0
    %2758 = vmatpush1.xpose.msra.mxu0 0.0
    %2759 = vmatprep.subr.mxu0 0.0
    %2760 = vmatpush1.xpose.msra.mxu0 0.0
    %2761 = vmatprep.subr.mxu0 0.0
    %2762 = vmatpush1.xpose.msra.mxu0 0.0
    %2763 = vmatprep.subr.mxu0 0.0
    %2764 = vmatpush1.xpose.msra.mxu0 0.0
    %2765 = vmatprep.subr.mxu0 0.0
    %2766 = vmatpush1.xpose.msra.mxu0 0.0
    %2767 = vmatprep.subr.mxu0 0.0
    %2768 = vmatpush1.xpose.msra.mxu0 0.0
    %2769 = vmatprep.subr.mxu0 0.0
    %2770 = vmatpush1.xpose.msra.mxu0 0.0
    %2771 = vmatprep.subr.mxu0 0.0
    %2772 = vmatpush1.xpose.msra.mxu0 0.0
    %2773 = vmatprep.subr.mxu0 0.0
    %2774 = vmatpush1.xpose.msra.mxu0 0.0
    %2775 = vmatprep.subr.mxu0 0.0
    %2776 = vmatpush1.xpose.msra.mxu0 0.0
    %2777 = vmatprep.subr.mxu0 0.0
    %2778 = vmatpush1.xpose.msra.mxu0 0.0
    %2779 = vmatprep.subr.mxu0 0.0
    %2780 = vmatpush1.xpose.msra.mxu0 0.0
    %2781 = vmatprep.subr.mxu0 0.0
    %2782 = vmatpush1.xpose.msra.mxu0 0.0
    %2783 = vmatprep.subr.mxu0 0.0
    %2784 = vmatpush1.xpose.msra.mxu0 0.0
    %2785 = vmatprep.subr.mxu0 0.0
    %2786 = vmatpush1.xpose.msra.mxu0 0.0
    %2787 = vmatprep.subr.mxu0 0.0
    %2788 = vmatpush1.xpose.msra.mxu0 0.0
    %2789 = vmatprep.mubr.f32.mxu0 0.0
    %2790 = vmatmul.mubr.f32.gmra.mrb[0].mxu0 %v2708
    %v2791 = vpop.f32.mrb[0].mxu0
    %v2792 = vadd.f32 %v2705, %v2791
    %v2793 = vpop.f32.mrb[0].mxu0
    %2794 = vmatprep.mubr.f32.mxu0 0.0
    %2795 = vmatmul.mubr.f32.gmra.mrb[0].mxu0 %v2711
    %v2796 = vpop.f32.mrb[0].mxu0
    %v2797 = vadd.f32 %v2705, %v2796
    %v2798 = vpop.f32.mrb[0].mxu0
    %2799 = vdwg.mxu0
    %2800 = vst.msk [vmem:[#allocation14] sm:$0xff] %vm151, %v2792
    %2801 = vst.msk [vmem:[#allocation14 + $0x8] sm:$0xff] %vm151, %v2797
    // Predicated region
    $region74: #{tpu_custom_call.1} parent=1 // pred_check
      _
    $region75: #{tpu_custom_call.1} parent=1 // pred_check_branch
      %2803 = sbr.rel (0) target = $region77
    $region76: #{tpu_custom_call.1} parent=1 // pred_region
      %s2805 = ssub.s32 256, 256
      %2806 = vsyncadd [#allocation4], %s2805
      %s2807 = sshll.u32 [#allocation14], 4
      %s2808 = int_to_ptr.vmem [resolvable:$true] %s2807
      %2813 = dma.vmem_to_hbm [thread:$0]  %s2808, 256, %s11, [#allocation4], 128, 128, 8
    $region77: #{tpu_custom_call.1} parent=1 // pred_fallthru
      _
    // Predicated region
    $region78: #{tpu_custom_call.1} parent=1 // pred_check
      _
    $region79: #{tpu_custom_call.1} parent=1 // pred_check_branch
      %2815 = sbr.rel (0) target = $region81
    $region80: #{tpu_custom_call.1} parent=1 // pred_region
      %2816 = dma.done [#allocation4], 256
    $region81: #{tpu_custom_call.1} parent=1 // pred_fallthru
      _
    %2817 = vsyncpa [#allocation3], 1
    %2818 = vsyncpa [#allocation6], 1
    %2819 = vsyncpa [#allocation9], 1
    %2820 = vsyncpa [#allocation12], 1
    %2821 = vsyncpa [#allocation4], 1

</llo_original>
